<compile_context>
chip_gen: v7x
topology: tpu7x:2x2x1
jax: 0.10.0
libtpu: 0.0.40
codegen_flags: <defaults>
</compile_context>

<pallas_src>
import functools

import jax
import jax.numpy as jnp
from jax.experimental import pallas as pl
from jax.experimental.pallas import tpu as pltpu


def _round_up(x, m):
    return (x + m - 1) // m * m


def _conv3x3_rowtile_kernel(x_ref, w_ref, b_ref, o_ref, xpad_ref, acc_ref, *,
                            th, wd, wpad):
    # x_ref   : (1, Hd, Wd, Cin)   downsampled NHWC image (resident per batch)
    # w_ref   : (9, Cin, Cout)     3x3 taps, tap (dy,dx) stored at dy*3+dx
    # b_ref   : (1, Cout)          bias (f32)
    # o_ref   : (1, TH, Wd, Cout)  output row tile
    # xpad_ref: (TH+4, Wpad, Cin)  staging tile:
    #   row 0           : zeros (lead; lets the dx=0 tap read "column -1")
    #   row 1           : top halo  (image row row0-1, or zeros at t==0)
    #   rows 2..TH+1    : image rows row0 .. row0+TH-1
    #   row TH+2        : bottom halo (image row row0+TH, or zeros at t==last)
    #   row TH+3        : zeros (trail)
    #   cols [Wd,Wpad)  : zeros (right pad; doubles as the next row's left pad
    #                     in the flattened view)
    # acc_ref : (TH*Wpad, Cout) f32 accumulator in the padded-width space
    cin = x_ref.shape[-1]
    cout = o_ref.shape[-1]
    cdtype = x_ref.dtype

    t = pl.program_id(1)
    nt = pl.num_programs(1)
    row0 = pl.multiple_of(t * th, th)

    # ---- bias folded into the accumulator init --------------------------
    acc_ref[...] = jnp.broadcast_to(b_ref[...].astype(jnp.float32),
                                    (th * wpad, cout))

    # ---- build the zero-padded staging tile (padding fused in-kernel) ---
    zrow = jnp.zeros((1, wpad, cin), cdtype)
    xpad_ref[0:1, :, :] = zrow                     # lead zero row
    xpad_ref[th + 3:th + 4, :, :] = zrow           # trail zero row
    # right zero-pad for halo + interior rows only (lead/trail already zero)
    xpad_ref[1:th + 3, wd:wpad, :] = jnp.zeros((th + 2, wpad - wd, cin),
                                               cdtype)

    # interior rows (one contiguous copy)
    xpad_ref[2:th + 2, 0:wd, :] = x_ref[0, pl.ds(row0, th), :, :]

    # top halo (zeros on the first row tile)
    @pl.when(t == 0)
    def _():
        xpad_ref[1:2, 0:wd, :] = jnp.zeros((1, wd, cin), cdtype)

    @pl.when(t > 0)
    def _():
        xpad_ref[1:2, 0:wd, :] = x_ref[0, pl.ds(row0 - 1, 1), :, :]

    # bottom halo (zeros on the last row tile)
    @pl.when(t == nt - 1)
    def _():
        xpad_ref[th + 2:th + 3, 0:wd, :] = jnp.zeros((1, wd, cin), cdtype)

    @pl.when(t < nt - 1)
    def _():
        xpad_ref[th + 2:th + 3, 0:wd, :] = x_ref[0, pl.ds(row0 + th, 1), :, :]

    # ---- 9 taps: static-offset slices of one flat slab per dy -----------
    n_rows = th * wpad
    for dy in range(3):                       # static unroll (9 MXU matmuls)
        slab = xpad_ref[dy:dy + th + 2, :, :]           # (TH+2, Wpad, Cin)
        flat = slab.reshape((th + 2) * wpad, cin)       # free relabel (Wpad%8==0)
        for dx in range(3):
            off = wpad + dx - 1                         # static per tap
            patch = flat[off:off + n_rows, :]           # (TH*Wpad, Cin)
            acc_ref[...] += jnp.dot(patch, w_ref[dy * 3 + dx],
                                    preferred_element_type=jnp.float32)

    # ---- store only the valid columns (channels stay on the lane axis) --
    out = acc_ref[...].reshape(th, wpad, cout)[:, 0:wd, :]
    o_ref[0] = out.astype(o_ref.dtype)


def prepare_conv_params(weight_oihw, bias, compute_dtype=None):
    """(O,I,3,3) -> (9,I,O) tap-major weights + (1,O) f32 bias.

    In a real model this should be computed once and cached (hoisted out of
    the per-call path)."""
    c_out, c_in = weight_oihw.shape[0], weight_oihw.shape[1]
    w9 = jnp.transpose(weight_oihw, (2, 3, 1, 0)).reshape(9, c_in, c_out)
    if compute_dtype is not None:
        w9 = w9.astype(compute_dtype)
    b2 = bias.reshape(1, c_out).astype(jnp.float32)
    return w9, b2


def _nearest_downsample_nhwc(x_nchw, sample_kernel):
    """nn.Upsample(scale_factor=1/s, mode='nearest') + NCHW->NHWC as a single
    strided-slice/gather + transpose (XLA fuses this into one copy)."""
    B, C, H, W = x_nchw.shape
    sh, sw = sample_kernel
    out_h, out_w = H // sh, W // sw
    if H % sh == 0 and W % sw == 0:
        x_ds = x_nchw[:, :, ::sh, ::sw]                 # pure strided slice
    else:
        # TODO(synk): re-verify vs PyTorch 'nearest' for non-integer ratios.
        idx_h = (jnp.arange(out_h) * H) // out_h
        idx_w = (jnp.arange(out_w) * W) // out_w
        x_ds = x_nchw[:, :, idx_h][:, :, :, idx_w]
    return jnp.transpose(x_ds, (0, 2, 3, 1))            # (B, Hd, Wd, C)


def _pick_row_tile(hd, row_tile):
    """Largest divisor of Hd not exceeding `row_tile` (bigger tiles -> fewer
    grid steps, larger DMAs, better pipelining)."""
    for cand in range(min(row_tile, hd), 0, -1):
        if hd % cand == 0:
            return cand
    return 1


def downsample_forward(x_nchw, weight_oihw, bias, sample_kernel=(2, 2),
                       compute_dtype=None, row_tile=16):
    """Pallas implementation of Downsample.forward (dims=2, use_conv=False)."""
    B, C, H, W = x_nchw.shape
    c_out = weight_oihw.shape[0]

    x_nhwc = _nearest_downsample_nhwc(x_nchw, sample_kernel)
    if compute_dtype is not None:
        x_nhwc = x_nhwc.astype(compute_dtype)           # bf16 MXU path (v6e/v7x)
    Hd, Wd = x_nhwc.shape[1], x_nhwc.shape[2]

    w9, b2 = prepare_conv_params(weight_oihw, bias, compute_dtype)

    th = _pick_row_tile(Hd, row_tile)
    nt = Hd // th
    wpad = max(_round_up(Wd + 2, 8), 8)                 # keep flattening free

    kernel = functools.partial(_conv3x3_rowtile_kernel,
                               th=th, wd=Wd, wpad=wpad)

    flops = int(2 * B * Hd * Wd * C * c_out * 9)
    bytes_accessed = int(x_nhwc.size * x_nhwc.dtype.itemsize
                         + w9.size * w9.dtype.itemsize
                         + B * Hd * Wd * c_out * x_nchw.dtype.itemsize)

    out_nhwc = pl.pallas_call(
        kernel,
        out_shape=jax.ShapeDtypeStruct((B, Hd, Wd, c_out), x_nchw.dtype),
        grid_spec=pltpu.PrefetchScalarGridSpec(
            num_scalar_prefetch=0,
            grid=(B, nt),
            in_specs=[
                # full downsampled image: resident across the row-tile axis,
                # DMA'd once per batch element (each HBM byte read once)
                pl.BlockSpec((1, Hd, Wd, C), lambda b, t: (b, 0, 0, 0)),
                pl.BlockSpec((9, C, c_out), lambda b, t: (0, 0, 0)),
                pl.BlockSpec((1, c_out), lambda b, t: (0, 0)),
            ],
            out_specs=pl.BlockSpec((1, th, Wd, c_out),
                                   lambda b, t: (b, t, 0, 0)),
            scratch_shapes=[
                pltpu.VMEM((th + 4, wpad, C), x_nhwc.dtype),   # staging tile
                pltpu.VMEM((th * wpad, c_out), jnp.float32),   # f32 accumulator
            ],
        ),
        compiler_params=pltpu.CompilerParams(
            dimension_semantics=("parallel", "parallel"),
            vmem_limit_bytes=48 * 1024 * 1024,
        ),
        cost_estimate=pl.CostEstimate(flops=flops, transcendentals=0,
                                      bytes_accessed=bytes_accessed),
    )(x_nhwc, w9, b2)

    return jnp.transpose(out_nhwc, (0, 3, 1, 2))        # back to NCHW


def reference_forward(x_nchw, weight_oihw, bias, sample_kernel=(2, 2)):
    x_ds = jnp.transpose(_nearest_downsample_nhwc(x_nchw, sample_kernel),
                         (0, 3, 1, 2))
    y = jax.lax.conv_general_dilated(
        x_ds, weight_oihw, window_strides=(1, 1),
        padding=((1, 1), (1, 1)),
        dimension_numbers=("NCHW", "OIHW", "NCHW"))
    return y + bias[None, :, None, None]


if __name__ == "__main__":
    key = jax.random.PRNGKey(0)
    k_x, k_w, k_b = jax.random.split(key, 3)

    B, C, H, W = 2, 4, 16, 16
    sample_kernel = (2, 2)      # module stores 1/sample_kernel as scale_factor

    x = jax.random.normal(k_x, (B, C, H, W), dtype=jnp.float32)
    # conv_nd(2, C, C, 3, padding=1) -> weight (C, C, 3, 3), bias (C,)
    weight = jax.random.normal(k_w, (C, C, 3, 3), dtype=jnp.float32) * 0.1
    bias = jax.random.normal(k_b, (C,), dtype=jnp.float32) * 0.1

    ref = reference_forward(x, weight, bias, sample_kernel)

    # f32 path (tight check)
    out = downsample_forward(x, weight, bias, sample_kernel)
    out = jax.block_until_ready(out)
    assert out.shape == (B, C, H // 2, W // 2), out.shape
    assert jnp.allclose(out, ref, atol=1e-5, rtol=1e-5), "f32 mismatch vs reference"

    # bf16 MXU path (v6e/v7x recommendation); output stays f32, looser tolerance
    out_bf16 = downsample_forward(x, weight, bias, sample_kernel,
                                  compute_dtype=jnp.bfloat16)
    out_bf16 = jax.block_until_ready(out_bf16)
    assert out_bf16.shape == ref.shape
    assert jnp.allclose(out_bf16, ref, atol=1e-1, rtol=1e-1), "bf16 mismatch vs reference"

    print("KERNEL_OK")
</pallas_src>

<mosaic_0001>
module attributes {stable_mosaic.version = 11 : i64} {
  func.func @_conv3x3_rowtile_kernel(%arg0: i32, %arg1: i32, %arg2: memref<1x8x8x4xf32, #tpu.memory_space<vmem>>, %arg3: memref<9x4x4xf32, #tpu.memory_space<vmem>>, %arg4: memref<1x4xf32, #tpu.memory_space<vmem>>, %arg5: memref<1x8x8x4xf32, #tpu.memory_space<vmem>>, %arg6: memref<12x16x4xf32, #tpu.memory_space<vmem>>, %arg7: memref<128x4xf32, #tpu.memory_space<vmem>>) attributes {dimension_semantics = [#tpu.dimension_semantics<parallel>, #tpu.dimension_semantics<parallel>], iteration_bounds = array<i64: 2, 1>, scalar_prefetch = 0 : i64, scratch_operands = 2 : i64, tpu.core_type = #tpu.core_type<tc>, window_params = [{transform_indices = @transform_0, window_bounds = array<i64: 1, 8, 8, 4>}, {pipeline_mode = #tpu.pipeline_mode<synchronous>, transform_indices = @transform_1, window_bounds = array<i64: 9, 4, 4>}, {pipeline_mode = #tpu.pipeline_mode<synchronous>, transform_indices = @transform_2, window_bounds = array<i64: 1, 4>}, {transform_indices = @transform_3, window_bounds = array<i64: 1, 8, 8, 4>}]} {
    %c8_i32 = arith.constant 8 : i32
    %0 = arith.muli %arg1, %c8_i32 : i32
    %1 = tpu.assume_multiple %0, 8 : i32
    %c0 = arith.constant 0 : index
    %c0_0 = arith.constant 0 : index
    %2 = vector.load %arg4[%c0, %c0_0] : memref<1x4xf32, #tpu.memory_space<vmem>>, vector<1x4xf32>
    %3 = vector.shape_cast %2 : vector<1x4xf32> to vector<1x4xf32>
    %4 = vector.broadcast %3 : vector<1x4xf32> to vector<128x4xf32>
    %c0_1 = arith.constant 0 : index
    %c0_2 = arith.constant 0 : index
    %5 = vector.load %arg7[%c0_1, %c0_2] : memref<128x4xf32, #tpu.memory_space<vmem>>, vector<128x4xf32>
    tpu.vector_store %arg7[%c0_1, %c0_2], %4 {strides = array<i32>} : memref<128x4xf32, #tpu.memory_space<vmem>>, vector<128x4xf32>,
    %cst = arith.constant 0.000000e+00 : f32
    %6 = vector.broadcast %cst : f32 to vector<1x16x4xf32>
    %c0_3 = arith.constant 0 : index
    %c0_4 = arith.constant 0 : index
    %c0_5 = arith.constant 0 : index
    %7 = vector.load %arg6[%c0_3, %c0_4, %c0_5] : memref<12x16x4xf32, #tpu.memory_space<vmem>>, vector<1x16x4xf32>
    tpu.vector_store %arg6[%c0_3, %c0_4, %c0_5], %6 {strides = array<i32>} : memref<12x16x4xf32, #tpu.memory_space<vmem>>, vector<1x16x4xf32>,
    %c11 = arith.constant 11 : index
    %c0_6 = arith.constant 0 : index
    %c0_7 = arith.constant 0 : index
    %8 = vector.load %arg6[%c11, %c0_6, %c0_7] : memref<12x16x4xf32, #tpu.memory_space<vmem>>, vector<1x16x4xf32>
    tpu.vector_store %arg6[%c11, %c0_6, %c0_7], %6 {strides = array<i32>} : memref<12x16x4xf32, #tpu.memory_space<vmem>>, vector<1x16x4xf32>,
    %cst_8 = arith.constant 0.000000e+00 : f32
    %9 = vector.broadcast %cst_8 : f32 to vector<10x8x4xf32>
    %c1 = arith.constant 1 : index
    %c8 = arith.constant 8 : index
    %c0_9 = arith.constant 0 : index
    %10 = vector.load %arg6[%c1, %c8, %c0_9] : memref<12x16x4xf32, #tpu.memory_space<vmem>>, vector<10x8x4xf32>
    tpu.vector_store %arg6[%c1, %c8, %c0_9], %9 {strides = array<i32>} : memref<12x16x4xf32, #tpu.memory_space<vmem>>, vector<10x8x4xf32>,
    %c0_10 = arith.constant 0 : index
    %11 = arith.index_cast %1 : i32 to index
    %c0_11 = arith.constant 0 : index
    %c0_12 = arith.constant 0 : index
    %12 = vector.load %arg2[%c0_10, %11, %c0_11, %c0_12] : memref<1x8x8x4xf32, #tpu.memory_space<vmem>>, vector<1x8x8x4xf32>
    %13 = vector.shape_cast %12 : vector<1x8x8x4xf32> to vector<8x8x4xf32>
    %c2 = arith.constant 2 : index
    %c0_13 = arith.constant 0 : index
    %c0_14 = arith.constant 0 : index
    %14 = vector.load %arg6[%c2, %c0_13, %c0_14] : memref<12x16x4xf32, #tpu.memory_space<vmem>>, vector<8x8x4xf32>
    tpu.vector_store %arg6[%c2, %c0_13, %c0_14], %13 {strides = array<i32>} : memref<12x16x4xf32, #tpu.memory_space<vmem>>, vector<8x8x4xf32>,
    %c0_i32 = arith.constant 0 : i32
    %15 = arith.cmpi eq, %arg1, %c0_i32 : i32
    %16 = arith.extui %15 : i1 to i32
    %c0_i32_15 = arith.constant 0 : i32
    %17 = arith.cmpi ne, %16, %c0_i32_15 : i32
    scf.if %17 {
      %cst_104 = arith.constant 0.000000e+00 : f32
      %102 = vector.broadcast %cst_104 : f32 to vector<1x8x4xf32>
      %c1_105 = arith.constant 1 : index
      %c0_106 = arith.constant 0 : index
      %c0_107 = arith.constant 0 : index
      %103 = vector.load %arg6[%c1_105, %c0_106, %c0_107] : memref<12x16x4xf32, #tpu.memory_space<vmem>>, vector<1x8x4xf32>
      tpu.vector_store %arg6[%c1_105, %c0_106, %c0_107], %102 {strides = array<i32>} : memref<12x16x4xf32, #tpu.memory_space<vmem>>, vector<1x8x4xf32>,
    } else {
    }
    %c0_i32_16 = arith.constant 0 : i32
    %18 = arith.cmpi sgt, %arg1, %c0_i32_16 : i32
    %19 = arith.extui %18 : i1 to i32
    %c0_i32_17 = arith.constant 0 : i32
    %20 = arith.cmpi ne, %19, %c0_i32_17 : i32
    scf.if %20 {
      %c1_i32 = arith.constant 1 : i32
      %102 = arith.subi %1, %c1_i32 : i32
      %c0_104 = arith.constant 0 : index
      %103 = arith.index_cast %102 : i32 to index
      %c0_105 = arith.constant 0 : index
      %c0_106 = arith.constant 0 : index
      %104 = vector.load %arg2[%c0_104, %103, %c0_105, %c0_106] : memref<1x8x8x4xf32, #tpu.memory_space<vmem>>, vector<1x1x8x4xf32>
      %105 = vector.shape_cast %104 : vector<1x1x8x4xf32> to vector<1x8x4xf32>
      %c1_107 = arith.constant 1 : index
      %c0_108 = arith.constant 0 : index
      %c0_109 = arith.constant 0 : index
      %106 = vector.load %arg6[%c1_107, %c0_108, %c0_109] : memref<12x16x4xf32, #tpu.memory_space<vmem>>, vector<1x8x4xf32>
      tpu.vector_store %arg6[%c1_107, %c0_108, %c0_109], %105 {strides = array<i32>} : memref<12x16x4xf32, #tpu.memory_space<vmem>>, vector<1x8x4xf32>,
    } else {
    }
    %c0_i32_18 = arith.constant 0 : i32
    %21 = arith.cmpi eq, %arg1, %c0_i32_18 : i32
    %22 = arith.extui %21 : i1 to i32
    %c0_i32_19 = arith.constant 0 : i32
    %23 = arith.cmpi ne, %22, %c0_i32_19 : i32
    scf.if %23 {
      %cst_104 = arith.constant 0.000000e+00 : f32
      %102 = vector.broadcast %cst_104 : f32 to vector<1x8x4xf32>
      %c10 = arith.constant 10 : index
      %c0_105 = arith.constant 0 : index
      %c0_106 = arith.constant 0 : index
      %103 = vector.load %arg6[%c10, %c0_105, %c0_106] : memref<12x16x4xf32, #tpu.memory_space<vmem>>, vector<1x8x4xf32>
      tpu.vector_store %arg6[%c10, %c0_105, %c0_106], %102 {strides = array<i32>} : memref<12x16x4xf32, #tpu.memory_space<vmem>>, vector<1x8x4xf32>,
    } else {
    }
    %c0_i32_20 = arith.constant 0 : i32
    %24 = arith.cmpi slt, %arg1, %c0_i32_20 : i32
    %25 = arith.extui %24 : i1 to i32
    %c0_i32_21 = arith.constant 0 : i32
    %26 = arith.cmpi ne, %25, %c0_i32_21 : i32
    scf.if %26 {
      %c8_i32_104 = arith.constant 8 : i32
      %102 = arith.addi %1, %c8_i32_104 : i32
      %c0_105 = arith.constant 0 : index
      %103 = arith.index_cast %102 : i32 to index
      %c0_106 = arith.constant 0 : index
      %c0_107 = arith.constant 0 : index
      %104 = vector.load %arg2[%c0_105, %103, %c0_106, %c0_107] : memref<1x8x8x4xf32, #tpu.memory_space<vmem>>, vector<1x1x8x4xf32>
      %105 = vector.shape_cast %104 : vector<1x1x8x4xf32> to vector<1x8x4xf32>
      %c10 = arith.constant 10 : index
      %c0_108 = arith.constant 0 : index
      %c0_109 = arith.constant 0 : index
      %106 = vector.load %arg6[%c10, %c0_108, %c0_109] : memref<12x16x4xf32, #tpu.memory_space<vmem>>, vector<1x8x4xf32>
      tpu.vector_store %arg6[%c10, %c0_108, %c0_109], %105 {strides = array<i32>} : memref<12x16x4xf32, #tpu.memory_space<vmem>>, vector<1x8x4xf32>,
    } else {
    }
    %c0_22 = arith.constant 0 : index
    %c0_23 = arith.constant 0 : index
    %c0_24 = arith.constant 0 : index
    %27 = vector.load %arg6[%c0_22, %c0_23, %c0_24] : memref<12x16x4xf32, #tpu.memory_space<vmem>>, vector<10x16x4xf32>
    %28 = vector.shape_cast %27 : vector<10x16x4xf32> to vector<160x4xf32>
    %29 = vector.extract_strided_slice %28 {offsets = [15, 0], sizes = [128, 4], strides = [1, 1]} : vector<160x4xf32> to vector<128x4xf32>
    %c0_25 = arith.constant 0 : index
    %c0_26 = arith.constant 0 : index
    %30 = vector.load %arg7[%c0_25, %c0_26] : memref<128x4xf32, #tpu.memory_space<vmem>>, vector<128x4xf32>
    %c0_27 = arith.constant 0 : index
    %c0_28 = arith.constant 0 : index
    %c0_29 = arith.constant 0 : index
    %31 = vector.load %arg3[%c0_27, %c0_28, %c0_29] : memref<9x4x4xf32, #tpu.memory_space<vmem>>, vector<1x4x4xf32>
    %32 = vector.shape_cast %31 : vector<1x4x4xf32> to vector<4x4xf32>
    %cst_30 = arith.constant dense<0.000000e+00> : vector<128x4xf32>
    %33 = tpu.matmul %29, %32, %cst_30 {dimension_numbers = #tpu.dot_dimension_numbers<[1], [0], [0], [1], [0, 0, 1, 1], [], []>} : vector<128x4xf32>, vector<4x4xf32>, vector<128x4xf32> -> vector<128x4xf32>
    %34 = arith.addf %30, %33 : vector<128x4xf32>
    %c0_31 = arith.constant 0 : index
    %c0_32 = arith.constant 0 : index
    %35 = vector.load %arg7[%c0_31, %c0_32] : memref<128x4xf32, #tpu.memory_space<vmem>>, vector<128x4xf32>
    tpu.vector_store %arg7[%c0_31, %c0_32], %34 {strides = array<i32>} : memref<128x4xf32, #tpu.memory_space<vmem>>, vector<128x4xf32>,
    %36 = vector.extract_strided_slice %28 {offsets = [16, 0], sizes = [128, 4], strides = [1, 1]} : vector<160x4xf32> to vector<128x4xf32>
    %c0_33 = arith.constant 0 : index
    %c0_34 = arith.constant 0 : index
    %37 = vector.load %arg7[%c0_33, %c0_34] : memref<128x4xf32, #tpu.memory_space<vmem>>, vector<128x4xf32>
    %c1_35 = arith.constant 1 : index
    %c0_36 = arith.constant 0 : index
    %c0_37 = arith.constant 0 : index
    %38 = vector.load %arg3[%c1_35, %c0_36, %c0_37] : memref<9x4x4xf32, #tpu.memory_space<vmem>>, vector<1x4x4xf32>
    %39 = vector.shape_cast %38 : vector<1x4x4xf32> to vector<4x4xf32>
    %cst_38 = arith.constant dense<0.000000e+00> : vector<128x4xf32>
    %40 = tpu.matmul %36, %39, %cst_38 {dimension_numbers = #tpu.dot_dimension_numbers<[1], [0], [0], [1], [0, 0, 1, 1], [], []>} : vector<128x4xf32>, vector<4x4xf32>, vector<128x4xf32> -> vector<128x4xf32>
    %41 = arith.addf %37, %40 : vector<128x4xf32>
    %c0_39 = arith.constant 0 : index
    %c0_40 = arith.constant 0 : index
    %42 = vector.load %arg7[%c0_39, %c0_40] : memref<128x4xf32, #tpu.memory_space<vmem>>, vector<128x4xf32>
    tpu.vector_store %arg7[%c0_39, %c0_40], %41 {strides = array<i32>} : memref<128x4xf32, #tpu.memory_space<vmem>>, vector<128x4xf32>,
    %43 = vector.extract_strided_slice %28 {offsets = [17, 0], sizes = [128, 4], strides = [1, 1]} : vector<160x4xf32> to vector<128x4xf32>
    %c0_41 = arith.constant 0 : index
    %c0_42 = arith.constant 0 : index
    %44 = vector.load %arg7[%c0_41, %c0_42] : memref<128x4xf32, #tpu.memory_space<vmem>>, vector<128x4xf32>
    %c2_43 = arith.constant 2 : index
    %c0_44 = arith.constant 0 : index
    %c0_45 = arith.constant 0 : index
    %45 = vector.load %arg3[%c2_43, %c0_44, %c0_45] : memref<9x4x4xf32, #tpu.memory_space<vmem>>, vector<1x4x4xf32>
    %46 = vector.shape_cast %45 : vector<1x4x4xf32> to vector<4x4xf32>
    %cst_46 = arith.constant dense<0.000000e+00> : vector<128x4xf32>
    %47 = tpu.matmul %43, %46, %cst_46 {dimension_numbers = #tpu.dot_dimension_numbers<[1], [0], [0], [1], [0, 0, 1, 1], [], []>} : vector<128x4xf32>, vector<4x4xf32>, vector<128x4xf32> -> vector<128x4xf32>
    %48 = arith.addf %44, %47 : vector<128x4xf32>
    %c0_47 = arith.constant 0 : index
    %c0_48 = arith.constant 0 : index
    %49 = vector.load %arg7[%c0_47, %c0_48] : memref<128x4xf32, #tpu.memory_space<vmem>>, vector<128x4xf32>
    tpu.vector_store %arg7[%c0_47, %c0_48], %48 {strides = array<i32>} : memref<128x4xf32, #tpu.memory_space<vmem>>, vector<128x4xf32>,
    %c1_49 = arith.constant 1 : index
    %c0_50 = arith.constant 0 : index
    %c0_51 = arith.constant 0 : index
    %50 = vector.load %arg6[%c1_49, %c0_50, %c0_51] : memref<12x16x4xf32, #tpu.memory_space<vmem>>, vector<10x16x4xf32>
    %51 = vector.shape_cast %50 : vector<10x16x4xf32> to vector<160x4xf32>
    %52 = vector.extract_strided_slice %51 {offsets = [15, 0], sizes = [128, 4], strides = [1, 1]} : vector<160x4xf32> to vector<128x4xf32>
    %c0_52 = arith.constant 0 : index
    %c0_53 = arith.constant 0 : index
    %53 = vector.load %arg7[%c0_52, %c0_53] : memref<128x4xf32, #tpu.memory_space<vmem>>, vector<128x4xf32>
    %c3 = arith.constant 3 : index
    %c0_54 = arith.constant 0 : index
    %c0_55 = arith.constant 0 : index
    %54 = vector.load %arg3[%c3, %c0_54, %c0_55] : memref<9x4x4xf32, #tpu.memory_space<vmem>>, vector<1x4x4xf32>
    %55 = vector.shape_cast %54 : vector<1x4x4xf32> to vector<4x4xf32>
    %cst_56 = arith.constant dense<0.000000e+00> : vector<128x4xf32>
    %56 = tpu.matmul %52, %55, %cst_56 {dimension_numbers = #tpu.dot_dimension_numbers<[1], [0], [0], [1], [0, 0, 1, 1], [], []>} : vector<128x4xf32>, vector<4x4xf32>, vector<128x4xf32> -> vector<128x4xf32>
    %57 = arith.addf %53, %56 : vector<128x4xf32>
    %c0_57 = arith.constant 0 : index
    %c0_58 = arith.constant 0 : index
    %58 = vector.load %arg7[%c0_57, %c0_58] : memref<128x4xf32, #tpu.memory_space<vmem>>, vector<128x4xf32>
    tpu.vector_store %arg7[%c0_57, %c0_58], %57 {strides = array<i32>} : memref<128x4xf32, #tpu.memory_space<vmem>>, vector<128x4xf32>,
    %59 = vector.extract_strided_slice %51 {offsets = [16, 0], sizes = [128, 4], strides = [1, 1]} : vector<160x4xf32> to vector<128x4xf32>
    %c0_59 = arith.constant 0 : index
    %c0_60 = arith.constant 0 : index
    %60 = vector.load %arg7[%c0_59, %c0_60] : memref<128x4xf32, #tpu.memory_space<vmem>>, vector<128x4xf32>
    %c4 = arith.constant 4 : index
    %c0_61 = arith.constant 0 : index
    %c0_62 = arith.constant 0 : index
    %61 = vector.load %arg3[%c4, %c0_61, %c0_62] : memref<9x4x4xf32, #tpu.memory_space<vmem>>, vector<1x4x4xf32>
    %62 = vector.shape_cast %61 : vector<1x4x4xf32> to vector<4x4xf32>
    %cst_63 = arith.constant dense<0.000000e+00> : vector<128x4xf32>
    %63 = tpu.matmul %59, %62, %cst_63 {dimension_numbers = #tpu.dot_dimension_numbers<[1], [0], [0], [1], [0, 0, 1, 1], [], []>} : vector<128x4xf32>, vector<4x4xf32>, vector<128x4xf32> -> vector<128x4xf32>
    %64 = arith.addf %60, %63 : vector<128x4xf32>
    %c0_64 = arith.constant 0 : index
    %c0_65 = arith.constant 0 : index
    %65 = vector.load %arg7[%c0_64, %c0_65] : memref<128x4xf32, #tpu.memory_space<vmem>>, vector<128x4xf32>
    tpu.vector_store %arg7[%c0_64, %c0_65], %64 {strides = array<i32>} : memref<128x4xf32, #tpu.memory_space<vmem>>, vector<128x4xf32>,
    %66 = vector.extract_strided_slice %51 {offsets = [17, 0], sizes = [128, 4], strides = [1, 1]} : vector<160x4xf32> to vector<128x4xf32>
    %c0_66 = arith.constant 0 : index
    %c0_67 = arith.constant 0 : index
    %67 = vector.load %arg7[%c0_66, %c0_67] : memref<128x4xf32, #tpu.memory_space<vmem>>, vector<128x4xf32>
    %c5 = arith.constant 5 : index
    %c0_68 = arith.constant 0 : index
    %c0_69 = arith.constant 0 : index
    %68 = vector.load %arg3[%c5, %c0_68, %c0_69] : memref<9x4x4xf32, #tpu.memory_space<vmem>>, vector<1x4x4xf32>
    %69 = vector.shape_cast %68 : vector<1x4x4xf32> to vector<4x4xf32>
    %cst_70 = arith.constant dense<0.000000e+00> : vector<128x4xf32>
    %70 = tpu.matmul %66, %69, %cst_70 {dimension_numbers = #tpu.dot_dimension_numbers<[1], [0], [0], [1], [0, 0, 1, 1], [], []>} : vector<128x4xf32>, vector<4x4xf32>, vector<128x4xf32> -> vector<128x4xf32>
    %71 = arith.addf %67, %70 : vector<128x4xf32>
    %c0_71 = arith.constant 0 : index
    %c0_72 = arith.constant 0 : index
    %72 = vector.load %arg7[%c0_71, %c0_72] : memref<128x4xf32, #tpu.memory_space<vmem>>, vector<128x4xf32>
    tpu.vector_store %arg7[%c0_71, %c0_72], %71 {strides = array<i32>} : memref<128x4xf32, #tpu.memory_space<vmem>>, vector<128x4xf32>,
    %c2_73 = arith.constant 2 : index
    %c0_74 = arith.constant 0 : index
    %c0_75 = arith.constant 0 : index
    %73 = vector.load %arg6[%c2_73, %c0_74, %c0_75] : memref<12x16x4xf32, #tpu.memory_space<vmem>>, vector<10x16x4xf32>
    %74 = vector.shape_cast %73 : vector<10x16x4xf32> to vector<160x4xf32>
    %75 = vector.extract_strided_slice %74 {offsets = [15, 0], sizes = [128, 4], strides = [1, 1]} : vector<160x4xf32> to vector<128x4xf32>
    %c0_76 = arith.constant 0 : index
    %c0_77 = arith.constant 0 : index
    %76 = vector.load %arg7[%c0_76, %c0_77] : memref<128x4xf32, #tpu.memory_space<vmem>>, vector<128x4xf32>
    %c6 = arith.constant 6 : index
    %c0_78 = arith.constant 0 : index
    %c0_79 = arith.constant 0 : index
    %77 = vector.load %arg3[%c6, %c0_78, %c0_79] : memref<9x4x4xf32, #tpu.memory_space<vmem>>, vector<1x4x4xf32>
    %78 = vector.shape_cast %77 : vector<1x4x4xf32> to vector<4x4xf32>
    %cst_80 = arith.constant dense<0.000000e+00> : vector<128x4xf32>
    %79 = tpu.matmul %75, %78, %cst_80 {dimension_numbers = #tpu.dot_dimension_numbers<[1], [0], [0], [1], [0, 0, 1, 1], [], []>} : vector<128x4xf32>, vector<4x4xf32>, vector<128x4xf32> -> vector<128x4xf32>
    %80 = arith.addf %76, %79 : vector<128x4xf32>
    %c0_81 = arith.constant 0 : index
    %c0_82 = arith.constant 0 : index
    %81 = vector.load %arg7[%c0_81, %c0_82] : memref<128x4xf32, #tpu.memory_space<vmem>>, vector<128x4xf32>
    tpu.vector_store %arg7[%c0_81, %c0_82], %80 {strides = array<i32>} : memref<128x4xf32, #tpu.memory_space<vmem>>, vector<128x4xf32>,
    %82 = vector.extract_strided_slice %74 {offsets = [16, 0], sizes = [128, 4], strides = [1, 1]} : vector<160x4xf32> to vector<128x4xf32>
    %c0_83 = arith.constant 0 : index
    %c0_84 = arith.constant 0 : index
    %83 = vector.load %arg7[%c0_83, %c0_84] : memref<128x4xf32, #tpu.memory_space<vmem>>, vector<128x4xf32>
    %c7 = arith.constant 7 : index
    %c0_85 = arith.constant 0 : index
    %c0_86 = arith.constant 0 : index
    %84 = vector.load %arg3[%c7, %c0_85, %c0_86] : memref<9x4x4xf32, #tpu.memory_space<vmem>>, vector<1x4x4xf32>
    %85 = vector.shape_cast %84 : vector<1x4x4xf32> to vector<4x4xf32>
    %cst_87 = arith.constant dense<0.000000e+00> : vector<128x4xf32>
    %86 = tpu.matmul %82, %85, %cst_87 {dimension_numbers = #tpu.dot_dimension_numbers<[1], [0], [0], [1], [0, 0, 1, 1], [], []>} : vector<128x4xf32>, vector<4x4xf32>, vector<128x4xf32> -> vector<128x4xf32>
    %87 = arith.addf %83, %86 : vector<128x4xf32>
    %c0_88 = arith.constant 0 : index
    %c0_89 = arith.constant 0 : index
    %88 = vector.load %arg7[%c0_88, %c0_89] : memref<128x4xf32, #tpu.memory_space<vmem>>, vector<128x4xf32>
    tpu.vector_store %arg7[%c0_88, %c0_89], %87 {strides = array<i32>} : memref<128x4xf32, #tpu.memory_space<vmem>>, vector<128x4xf32>,
    %89 = vector.extract_strided_slice %74 {offsets = [17, 0], sizes = [128, 4], strides = [1, 1]} : vector<160x4xf32> to vector<128x4xf32>
    %c0_90 = arith.constant 0 : index
    %c0_91 = arith.constant 0 : index
    %90 = vector.load %arg7[%c0_90, %c0_91] : memref<128x4xf32, #tpu.memory_space<vmem>>, vector<128x4xf32>
    %c8_92 = arith.constant 8 : index
    %c0_93 = arith.constant 0 : index
    %c0_94 = arith.constant 0 : index
    %91 = vector.load %arg3[%c8_92, %c0_93, %c0_94] : memref<9x4x4xf32, #tpu.memory_space<vmem>>, vector<1x4x4xf32>
    %92 = vector.shape_cast %91 : vector<1x4x4xf32> to vector<4x4xf32>
    %cst_95 = arith.constant dense<0.000000e+00> : vector<128x4xf32>
    %93 = tpu.matmul %89, %92, %cst_95 {dimension_numbers = #tpu.dot_dimension_numbers<[1], [0], [0], [1], [0, 0, 1, 1], [], []>} : vector<128x4xf32>, vector<4x4xf32>, vector<128x4xf32> -> vector<128x4xf32>
    %94 = arith.addf %90, %93 : vector<128x4xf32>
    %c0_96 = arith.constant 0 : index
    %c0_97 = arith.constant 0 : index
    %95 = vector.load %arg7[%c0_96, %c0_97] : memref<128x4xf32, #tpu.memory_space<vmem>>, vector<128x4xf32>
    tpu.vector_store %arg7[%c0_96, %c0_97], %94 {strides = array<i32>} : memref<128x4xf32, #tpu.memory_space<vmem>>, vector<128x4xf32>,
    %c0_98 = arith.constant 0 : index
    %c0_99 = arith.constant 0 : index
    %96 = vector.load %arg7[%c0_98, %c0_99] : memref<128x4xf32, #tpu.memory_space<vmem>>, vector<128x4xf32>
    %97 = vector.shape_cast %96 : vector<128x4xf32> to vector<8x16x4xf32>
    %98 = vector.extract_strided_slice %97 {offsets = [0, 0, 0], sizes = [8, 8, 4], strides = [1, 1, 1]} : vector<8x16x4xf32> to vector<8x8x4xf32>
    %c0_100 = arith.constant 0 : index
    %c0_101 = arith.constant 0 : index
    %c0_102 = arith.constant 0 : index
    %c0_103 = arith.constant 0 : index
    %99 = vector.load %arg5[%c0_100, %c0_101, %c0_102, %c0_103] : memref<1x8x8x4xf32, #tpu.memory_space<vmem>>, vector<1x8x8x4xf32>
    %100 = vector.shape_cast %99 : vector<1x8x8x4xf32> to vector<8x8x4xf32>
    %101 = vector.shape_cast %98 : vector<8x8x4xf32> to vector<1x8x8x4xf32>
    tpu.vector_store %arg5[%c0_100, %c0_101, %c0_102, %c0_103], %101 {strides = array<i32>} : memref<1x8x8x4xf32, #tpu.memory_space<vmem>>, vector<1x8x8x4xf32>,
    return
  }
  func.func @transform_0(%arg0: i32, %arg1: i32) -> (i32, i32, i32, i32) {
    %c0_i32 = arith.constant 0 : i32
    %c0_i32_0 = arith.constant 0 : i32
    %c0_i32_1 = arith.constant 0 : i32
    %c0_i32_2 = arith.constant 0 : i32
    return %arg0, %c0_i32, %c0_i32_0, %c0_i32_1 : i32, i32, i32, i32
  }
  func.func @transform_1(%arg0: i32, %arg1: i32) -> (i32, i32, i32) {
    %c0_i32 = arith.constant 0 : i32
    %c0_i32_0 = arith.constant 0 : i32
    %c0_i32_1 = arith.constant 0 : i32
    %c0_i32_2 = arith.constant 0 : i32
    return %c0_i32, %c0_i32_0, %c0_i32_1 : i32, i32, i32
  }
  func.func @transform_2(%arg0: i32, %arg1: i32) -> (i32, i32) {
    %c0_i32 = arith.constant 0 : i32
    %c0_i32_0 = arith.constant 0 : i32
    %c0_i32_1 = arith.constant 0 : i32
    return %c0_i32, %c0_i32_0 : i32, i32
  }
  func.func @transform_3(%arg0: i32, %arg1: i32) -> (i32, i32, i32, i32) {
    %c0_i32 = arith.constant 0 : i32
    %c0_i32_0 = arith.constant 0 : i32
    %c0_i32_1 = arith.constant 0 : i32
    return %arg0, %arg1, %c0_i32, %c0_i32_0 : i32, i32, i32, i32
  }
}

</mosaic_0001>

<llo_original>
// kernel: tpu_custom_call.1
$region0: #{tpu_custom_call.1}
  #allocation0 [shape = 'u32[]', space=smem, size = 0x4, offset = 0x4, fixed_abs, tag = 'smem constant byte address 0x4 - core index']
  #allocation1 [shape = 'u32[144,128]{1,0:T(1,128)}', space=vmem, size = 0x12000, scoped, tag = 'internal scratch']
  #allocation2 [shape = 'f32[12,16,4]{2,1,0:T(8,128)}', space=vmem, size = 0x18000, scoped, tag = 'scratch operand']
  #allocation3 [shape = 'f32[128,4]{1,0:T(8,128)}', space=vmem, size = 0x10000, scoped, tag = 'scratch operand']
  %s0 = inlined_call_operand.vmem [shape: f32[2,8,8,4], index: 0, kind: input, shape index: {}]
  %s1 = inlined_call_operand.vmem [shape: f32[9,4,4], index: 1, kind: input, shape index: {}]
  %s2 = inlined_call_operand.vmem [shape: f32[1,4], index: 2, kind: input, shape index: {}]
  %s3 = inlined_call_operand.vmem [shape: f32[2,8,8,4], index: 3, kind: output, shape index: {}]
  %s4 = sld [smem:[#allocation0]]
  $region61: #{tpu_custom_call.1} parent=0
    _
  %s6 = ssub.s32 1, %s4
  %s7 = scalar_select 0, %s6, %s4
  loop: start=0, step=1, limit=4
  $region2: #{tpu_custom_call.1} parent=0 // loop_pre_header
    _
  $region3: #{tpu_custom_call.1} parent=0 // loop_header
    %s9 = sphi 0, %s13
    %p10 = scmp.ge.s32.totalorder %s9, 4
    %s16 = sphi 0, %s28
    %s17 = sphi 0, %s24
    %s18 = sphi 0, %s16
    %s19 = sphi 0, %s17
    %s20 = sphi 0, %s18
    %s21 = sphi 0, %s19
    %s31 = sphi 0, %s33
    %s34 = sphi 0, %s31
    %s35 = sphi 0, %s34
    %s51 = sphi 0, %s35
    %s55 = sphi 0, %s55
    %s57 = sphi 0, %s55
    %s58 = sphi 0, %s57
    %s72 = sphi 0, %s58
    %s76 = sphi 0, %s76
    %s78 = sphi 0, %s76
    %s79 = sphi 0, %s78
    %s93 = sphi 0, %s79
    %s101 = sphi 0, %s103
    %s104 = sphi 0, %s101
    %s105 = sphi 0, %s104
    %s121 = sphi 0, %s105
  $region4: #{tpu_custom_call.1} parent=0 // loop_header_branch
    %12 = sbr.rel (%p10) target = $region8
  $region5: #{tpu_custom_call.1} parent=0 // loop_body
    %s14 = ssub.s32 %s9, 1
    %s15 = ssub.s32 %s9, 2
    %s22 = sadd.s32 1, %s17
    %p23 = scmp.ge.s32.totalorder %s22, 1
    %s24 = scalar_select %p23, 0, %s22
    %s25 = sadd.s32 1, %s16
    %s26 = scalar_select %p23, %s25, %s16
    %p27 = scmp.ge.s32.totalorder %s26, 2
    %s28 = scalar_select %p27, 0, %s26
    %s29 = ssub.s32 %s16, %s28
    %p30 = scmp.eq.s32.totalorder %s29, 0
    %s32 = sadd.s32 %s31, 1
    %s33 = scalar_select %p30, %s31, %s32
    %p36 = pneg %p30
    %p37 = scmp.eq.s32.totalorder %s9, 1
    %p38 = por %p36, %p37
    %p39 = scmp.ne.s32.totalorder %s31, %s34
    %p40 = scmp.eq.s32.totalorder %s9, 0
    %p41 = por %p39, %p40
    %p42 = scmp.ne.s32.totalorder %s31, %s34
    %p43 = scmp.eq.s32.totalorder %s14, 1
    %p44 = por %p42, %p43
    %p45 = scmp.ne.s32.totalorder %s34, %s35
    %p46 = scmp.eq.s32.totalorder %s14, 0
    %p47 = por %p45, %p46
    %p48 = scmp.ne.s32.totalorder %s34, %s35
    %p49 = scmp.eq.s32.totalorder %s15, 1
    %p50 = por %p48, %p49
    %p52 = scmp.ne.s32.totalorder %s35, %s51
    %p53 = scmp.eq.s32.totalorder %s15, 0
    %p54 = por %p52, %p53
    %s56 = sadd.s32 %s55, 1
    %p59 = scmp.eq.s32.totalorder %s9, 1
    %p60 = scmp.ne.s32.totalorder %s55, %s57
    %p61 = scmp.eq.s32.totalorder %s9, 0
    %p62 = por %p60, %p61
    %p63 = scmp.ne.s32.totalorder %s55, %s57
    %p64 = scmp.eq.s32.totalorder %s14, 1
    %p65 = por %p63, %p64
    %p66 = scmp.ne.s32.totalorder %s57, %s58
    %p67 = scmp.eq.s32.totalorder %s14, 0
    %p68 = por %p66, %p67
    %p69 = scmp.ne.s32.totalorder %s57, %s58
    %p70 = scmp.eq.s32.totalorder %s15, 1
    %p71 = por %p69, %p70
    %p73 = scmp.ne.s32.totalorder %s58, %s72
    %p74 = scmp.eq.s32.totalorder %s15, 0
    %p75 = por %p73, %p74
    %s77 = sadd.s32 %s76, 1
    %p80 = scmp.eq.s32.totalorder %s9, 1
    %p81 = scmp.ne.s32.totalorder %s76, %s78
    %p82 = scmp.eq.s32.totalorder %s9, 0
    %p83 = por %p81, %p82
    %p84 = scmp.ne.s32.totalorder %s76, %s78
    %p85 = scmp.eq.s32.totalorder %s14, 1
    %p86 = por %p84, %p85
    %p87 = scmp.ne.s32.totalorder %s78, %s79
    %p88 = scmp.eq.s32.totalorder %s14, 0
    %p89 = por %p87, %p88
    %p90 = scmp.ne.s32.totalorder %s78, %s79
    %p91 = scmp.eq.s32.totalorder %s15, 1
    %p92 = por %p90, %p91
    %p94 = scmp.ne.s32.totalorder %s79, %s93
    %p95 = scmp.eq.s32.totalorder %s15, 0
    %p96 = por %p94, %p95
    %s97 = ssub.s32 %s16, %s28
    %s98 = ssub.s32 %s17, %s24
    %s99 = sor.u32 %s97, %s98
    %p100 = scmp.eq.s32.totalorder %s99, 0
    %s102 = sadd.s32 %s101, 1
    %s103 = scalar_select %p100, %s101, %s102
    %p106 = pneg %p100
    %p107 = scmp.eq.s32.totalorder %s9, 1
    %p108 = por %p106, %p107
    %p109 = scmp.ne.s32.totalorder %s101, %s104
    %p110 = scmp.eq.s32.totalorder %s9, 0
    %p111 = por %p109, %p110
    %p112 = scmp.ne.s32.totalorder %s101, %s104
    %p113 = scmp.eq.s32.totalorder %s14, 1
    %p114 = por %p112, %p113
    %p115 = scmp.ne.s32.totalorder %s104, %s105
    %p116 = scmp.eq.s32.totalorder %s14, 0
    %p117 = por %p115, %p116
    %p118 = scmp.ne.s32.totalorder %s104, %s105
    %p119 = scmp.eq.s32.totalorder %s15, 1
    %p120 = por %p118, %p119
    %p122 = scmp.ne.s32.totalorder %s105, %s121
    %p123 = scmp.eq.s32.totalorder %s15, 0
    %p124 = por %p122, %p123
    %p125 = scmp.le.s32.totalorder 1, %s9
    %p126 = scmp.lt.s32.totalorder %s9, 3
    %p127 = pnand %p125, %p126
    %p128 = pneg %p127
    // Predicated region
    $region9: #{tpu_custom_call.1} parent=5 // pred_check
      _
    $region10: #{tpu_custom_call.1} parent=5 // pred_check_branch
      %130 = sbr.rel (%p127) target = $region12
    $region11: #{tpu_custom_call.1} parent=5 // pred_region
      %s131 = ssub.s32 %s9, 1
      // Predicated region
      $region13: #{tpu_custom_call.1} parent=11 // pred_check
        %p132 = pneg %p68
      $region14: #{tpu_custom_call.1} parent=11 // pred_check_branch
        %134 = sbr.rel (%p132) target = $region16
      $region15: #{tpu_custom_call.1} parent=11 // pred_region
        _
      $region16: #{tpu_custom_call.1} parent=11 // pred_fallthru
        _
      // Predicated region
      $region17: #{tpu_custom_call.1} parent=11 // pred_check
        %p135 = pneg %p89
      $region18: #{tpu_custom_call.1} parent=11 // pred_check_branch
        %137 = sbr.rel (%p135) target = $region20
      $region19: #{tpu_custom_call.1} parent=11 // pred_region
        _
      $region20: #{tpu_custom_call.1} parent=11 // pred_fallthru
        _
    $region12: #{tpu_custom_call.1} parent=5 // pred_fallthru
      _
    %p138 = scmp.lt.s32.totalorder %s9, 2
    // Predicated region
    $region21: #{tpu_custom_call.1} parent=5 // pred_check
      %p139 = pneg %p138
    $region22: #{tpu_custom_call.1} parent=5 // pred_check_branch
      %141 = sbr.rel (%p139) target = $region24
    $region23: #{tpu_custom_call.1} parent=5 // pred_region
      // Predicated region
      $region25: #{tpu_custom_call.1} parent=23 // pred_check
        %p142 = pneg %p41
      $region26: #{tpu_custom_call.1} parent=23 // pred_check_branch
        %144 = sbr.rel (%p142) target = $region28
      $region27: #{tpu_custom_call.1} parent=23 // pred_region
        %p145 = scmp.lt.s32.totalorder %s16, 1
        %s146 = scalar_select %p145, %s16, 1
        %s147 = smul.addr %s146, 8
        %s148 = smul.addr %s147, 8
        %s149 = scalar_lea.vmem %s0, %s148
      $region28: #{tpu_custom_call.1} parent=23 // pred_fallthru
        _
    $region24: #{tpu_custom_call.1} parent=5 // pred_fallthru
      _
    %p150 = scmp.le.s32.totalorder 1, %s9
    %p151 = scmp.lt.s32.totalorder %s9, 3
    %p152 = pnand %p150, %p151
    %p153 = pneg %p152
    // Predicated region
    $region29: #{tpu_custom_call.1} parent=5 // pred_check
      _
    $region30: #{tpu_custom_call.1} parent=5 // pred_check_branch
      %155 = sbr.rel (%p152) target = $region32
    $region31: #{tpu_custom_call.1} parent=5 // pred_region
      %s156 = ssub.s32 %s9, 1
      %p157 = scmp.lt.s32.totalorder %s18, 1
      %s158 = scalar_select %p157, %s18, 1
      %s159 = smul.addr %s158, 8
      %s160 = smul.addr %s159, 8
      %s161 = scalar_lea.vmem %s0, %s160
      %p162 = pneg %p47
      %p163 = pneg %p44
      %p164 = pneg %p68
      %p165 = pneg %p65
      %p166 = pneg %p89
      %p167 = pneg %p86
      %p168 = pneg %p117
      %p169 = pneg %p114
      %s170 = smul.u32 8, %s19
      %p171 = scmp.lt.s32.totalorder %s18, 1
      %s172 = scalar_select %p171, %s18, 1
      %p173 = scmp.lt.s32.totalorder %s170, 7
      %s174 = scalar_select %p173, %s170, 7
      %s175 = smul.addr %s172, 8
      %s176 = sadd.s32 %s174, %s175
      %s177 = smul.addr %s176, 8
      %s178 = scalar_lea.vmem %s3, %s177
      %p179 = scmp.lt.s32.totalorder %s18, 1
      %s180 = scalar_select %p179, %s18, 1
      %s181 = smul.addr %s180, 8
      %s182 = smul.addr %s181, 8
      %s183 = scalar_lea.vmem %s0, %s182
      %s184 = smul.u32 8, %s19
      %p185 = scmp.lt.s32.totalorder %s18, 1
      %s186 = scalar_select %p185, %s18, 1
      %p187 = scmp.lt.s32.totalorder %s184, 7
      %s188 = scalar_select %p187, %s184, 7
      %s189 = smul.addr %s186, 8
      %s190 = sadd.s32 %s188, %s189
      %s191 = smul.addr %s190, 8
      %s192 = scalar_lea.vmem %s3, %s191
      %s193 = smul.u32 8, %s19
      %s194 = smul.u32 %s19, 8
      %v195 = vld [vmem:[%s2] sm:$0x1]
      %v197 = vlaneseq
      %v198 = vshrl.u32 %v197, 7
      %v199 = vsub.s32 0, %v198
      %v200 = vrot.slane %v195, %v199
      %vm202 = vcmask 31744
      %203 = vst.msk [vmem:[#allocation3] sm:$0xff] %vm202, %v200
      %204 = vst.msk [vmem:[#allocation3 + $0x8] sm:$0xff] %vm202, %v200
      %205 = vst.msk [vmem:[#allocation3 + $0x10] sm:$0xff] %vm202, %v200
      %206 = vst.msk [vmem:[#allocation3 + $0x18] sm:$0xff] %vm202, %v200
      %207 = vst.msk [vmem:[#allocation3 + $0x20] sm:$0xff] %vm202, %v200
      %208 = vst.msk [vmem:[#allocation3 + $0x28] sm:$0xff] %vm202, %v200
      %209 = vst.msk [vmem:[#allocation3 + $0x30] sm:$0xff] %vm202, %v200
      %210 = vst.msk [vmem:[#allocation3 + $0x38] sm:$0xff] %vm202, %v200
      %211 = vst.msk [vmem:[#allocation3 + $0x40] sm:$0xff] %vm202, %v200
      %212 = vst.msk [vmem:[#allocation3 + $0x48] sm:$0xff] %vm202, %v200
      %213 = vst.msk [vmem:[#allocation3 + $0x50] sm:$0xff] %vm202, %v200
      %214 = vst.msk [vmem:[#allocation3 + $0x58] sm:$0xff] %vm202, %v200
      %215 = vst.msk [vmem:[#allocation3 + $0x60] sm:$0xff] %vm202, %v200
      %216 = vst.msk [vmem:[#allocation3 + $0x68] sm:$0xff] %vm202, %v200
      %217 = vst.msk [vmem:[#allocation3 + $0x70] sm:$0xff] %vm202, %v200
      %218 = vst.msk [vmem:[#allocation3 + $0x78] sm:$0xff] %vm202, %v200
      %219 = vst.msk [vmem:[#allocation2] sm:$0xff] %vm202, 0.0
      %220 = vst.msk [vmem:[#allocation2 + $0x8] sm:$0xff] %vm202, 0.0
      %s221 = scalar_lea.vmem [#allocation2], 176
      %222 = vst.msk [vmem:[%s221] sm:$0xff] %vm202, 0.0
      %223 = vst.msk [vmem:[%s221 + $0x8] sm:$0xff] %vm202, 0.0
      %s224 = scalar_lea.vmem [#allocation2], 16
      %225 = vst.msk [vmem:[%s224 + $0x8] sm:$0xff] %vm202, 0.0
      %226 = vst.msk [vmem:[%s224 + $0x18] sm:$0xff] %vm202, 0.0
      %227 = vst.msk [vmem:[%s224 + $0x28] sm:$0xff] %vm202, 0.0
      %228 = vst.msk [vmem:[%s224 + $0x38] sm:$0xff] %vm202, 0.0
      %229 = vst.msk [vmem:[%s224 + $0x48] sm:$0xff] %vm202, 0.0
      %230 = vst.msk [vmem:[%s224 + $0x58] sm:$0xff] %vm202, 0.0
      %231 = vst.msk [vmem:[%s224 + $0x68] sm:$0xff] %vm202, 0.0
      %232 = vst.msk [vmem:[%s224 + $0x78] sm:$0xff] %vm202, 0.0
      %233 = vst.msk [vmem:[%s224 + $0x88] sm:$0xff] %vm202, 0.0
      %234 = vst.msk [vmem:[%s224 + $0x98] sm:$0xff] %vm202, 0.0
      %s235 = smul.u32 %s194, 8
      %s236 = scalar_lea.vmem %s183, %s235
      %v237 = vld [vmem:[%s236] sm:$0xff]
      %v238 = vld [vmem:[%s236 + $0x8] sm:$0xff]
      %v239 = vld [vmem:[%s236 + $0x10] sm:$0xff]
      %v240 = vld [vmem:[%s236 + $0x18] sm:$0xff]
      %v241 = vld [vmem:[%s236 + $0x20] sm:$0xff]
      %v242 = vld [vmem:[%s236 + $0x28] sm:$0xff]
      %v243 = vld [vmem:[%s236 + $0x30] sm:$0xff]
      %v244 = vld [vmem:[%s236 + $0x38] sm:$0xff]
      %s245 = scalar_lea.vmem [#allocation2], 32
      %246 = vst.msk [vmem:[%s245] sm:$0xff] %vm202, %v237
      %247 = vst.msk [vmem:[%s245 + $0x10] sm:$0xff] %vm202, %v238
      %248 = vst.msk [vmem:[%s245 + $0x20] sm:$0xff] %vm202, %v239
      %249 = vst.msk [vmem:[%s245 + $0x30] sm:$0xff] %vm202, %v240
      %250 = vst.msk [vmem:[%s245 + $0x40] sm:$0xff] %vm202, %v241
      %251 = vst.msk [vmem:[%s245 + $0x50] sm:$0xff] %vm202, %v242
      %252 = vst.msk [vmem:[%s245 + $0x60] sm:$0xff] %vm202, %v243
      %253 = vst.msk [vmem:[%s245 + $0x70] sm:$0xff] %vm202, %v244
      %p254 = scmp.eq.s32.totalorder %s19, 0
      // Predicated region
      $region33: #{tpu_custom_call.1} parent=31 // pred_check
        %p255 = pneg %p254
      $region34: #{tpu_custom_call.1} parent=31 // pred_check_branch
        %257 = sbr.rel (%p255) target = $region36
      $region35: #{tpu_custom_call.1} parent=31 // pred_region
        %258 = vst.msk [vmem:[%s224] sm:$0xff] %vm202, 0.0
      $region36: #{tpu_custom_call.1} parent=31 // pred_fallthru
        _
      %p259 = scmp.gt.s32.totalorder %s19, 0
      // Predicated region
      $region37: #{tpu_custom_call.1} parent=31 // pred_check
        %p260 = pneg %p259
      $region38: #{tpu_custom_call.1} parent=31 // pred_check_branch
        %262 = sbr.rel (%p260) target = $region40
      $region39: #{tpu_custom_call.1} parent=31 // pred_region
        %s263 = ssub.s32 %s194, 1
        %s264 = smul.u32 %s263, 8
        %s265 = scalar_lea.vmem %s183, %s264
        %v266 = vld [vmem:[%s265] sm:$0xff]
        %267 = vst.msk [vmem:[%s224] sm:$0xff] %vm202, %v266
      $region40: #{tpu_custom_call.1} parent=31 // pred_fallthru
        _
      // Predicated region
      $region41: #{tpu_custom_call.1} parent=31 // pred_check
        %p268 = pneg %p254
      $region42: #{tpu_custom_call.1} parent=31 // pred_check_branch
        %270 = sbr.rel (%p268) target = $region44
      $region43: #{tpu_custom_call.1} parent=31 // pred_region
        %s271 = scalar_lea.vmem [#allocation2], 160
        %272 = vst.msk [vmem:[%s271] sm:$0xff] %vm202, 0.0
      $region44: #{tpu_custom_call.1} parent=31 // pred_fallthru
        _
      %p273 = scmp.lt.s32.totalorder %s19, 0
      // Predicated region
      $region45: #{tpu_custom_call.1} parent=31 // pred_check
        %p274 = pneg %p273
      $region46: #{tpu_custom_call.1} parent=31 // pred_check_branch
        %276 = sbr.rel (%p274) target = $region48
      $region47: #{tpu_custom_call.1} parent=31 // pred_region
        %s277 = sadd.s32 %s194, 8
        %s278 = smul.u32 %s277, 8
        %s279 = scalar_lea.vmem %s183, %s278
        %v280 = vld [vmem:[%s279] sm:$0xff]
        %s281 = scalar_lea.vmem [#allocation2], 160
        %282 = vst.msk [vmem:[%s281] sm:$0xff] %vm202, %v280
      $region48: #{tpu_custom_call.1} parent=31 // pred_fallthru
        _
      %v283 = vld [vmem:[#allocation2 + $0x8] sm:$0xff]
      %v284 = vld [vmem:[#allocation2 + $0x10] sm:$0xff]
      %v285 = vld [vmem:[#allocation2 + $0x18] sm:$0xff]
      %v286 = vld [vmem:[#allocation2 + $0x20] sm:$0xff]
      %v287 = vld [vmem:[#allocation2 + $0x28] sm:$0xff]
      %v288 = vld [vmem:[#allocation2 + $0x30] sm:$0xff]
      %v289 = vld [vmem:[#allocation2 + $0x38] sm:$0xff]
      %v290 = vld [vmem:[#allocation2 + $0x40] sm:$0xff]
      %v291 = vld [vmem:[#allocation2 + $0x48] sm:$0xff]
      %v292 = vld [vmem:[#allocation2 + $0x50] sm:$0xff]
      %v293 = vld [vmem:[#allocation2 + $0x58] sm:$0xff]
      %v294 = vld [vmem:[#allocation2 + $0x60] sm:$0xff]
      %v295 = vld [vmem:[#allocation2 + $0x68] sm:$0xff]
      %v296 = vld [vmem:[#allocation2 + $0x70] sm:$0xff]
      %v297 = vld [vmem:[#allocation2 + $0x78] sm:$0xff]
      %v298 = vld [vmem:[#allocation2 + $0x80] sm:$0xff]
      %v299 = vld [vmem:[#allocation2 + $0x88] sm:$0xff]
      %v300 = vld [vmem:[#allocation2 + $0x90] sm:$0xff]
      %v301 = vld [vmem:[#allocation3] sm:$0xff]
      %v302 = vld [vmem:[#allocation3 + $0x8] sm:$0xff]
      %v303 = vld [vmem:[#allocation3 + $0x10] sm:$0xff]
      %v304 = vld [vmem:[#allocation3 + $0x18] sm:$0xff]
      %v305 = vld [vmem:[#allocation3 + $0x20] sm:$0xff]
      %v306 = vld [vmem:[#allocation3 + $0x28] sm:$0xff]
      %v307 = vld [vmem:[#allocation3 + $0x30] sm:$0xff]
      %v308 = vld [vmem:[#allocation3 + $0x38] sm:$0xff]
      %v309 = vld [vmem:[#allocation3 + $0x40] sm:$0xff]
      %v310 = vld [vmem:[#allocation3 + $0x48] sm:$0xff]
      %v311 = vld [vmem:[#allocation3 + $0x50] sm:$0xff]
      %v312 = vld [vmem:[#allocation3 + $0x58] sm:$0xff]
      %v313 = vld [vmem:[#allocation3 + $0x60] sm:$0xff]
      %v314 = vld [vmem:[#allocation3 + $0x68] sm:$0xff]
      %v315 = vld [vmem:[#allocation3 + $0x70] sm:$0xff]
      %v316 = vld [vmem:[#allocation3 + $0x78] sm:$0xff]
      %v317 = vld [vmem:[%s1] sm:$0xf]
      %vm335 = vcmask 1040384
      %v336 = vrot.slane %v283, 7
      %v337 = vrot.slane %v284, 7
      %v338 = vsel %vm335, %v336, %v337
      %v339 = vrot.slane %v285, 7
      %v340 = vsel %vm335, %v337, %v339
      %v341 = vrot.slane %v286, 7
      %v342 = vsel %vm335, %v339, %v341
      %v343 = vrot.slane %v287, 7
      %v344 = vsel %vm335, %v341, %v343
      %v345 = vrot.slane %v288, 7
      %v346 = vsel %vm335, %v343, %v345
      %v347 = vrot.slane %v289, 7
      %v348 = vsel %vm335, %v345, %v347
      %v349 = vrot.slane %v290, 7
      %v350 = vsel %vm335, %v347, %v349
      %v351 = vrot.slane %v291, 7
      %v352 = vsel %vm335, %v349, %v351
      %v353 = vrot.slane %v292, 7
      %v354 = vsel %vm335, %v351, %v353
      %v355 = vrot.slane %v293, 7
      %v356 = vsel %vm335, %v353, %v355
      %v357 = vrot.slane %v294, 7
      %v358 = vsel %vm335, %v355, %v357
      %v359 = vrot.slane %v295, 7
      %v360 = vsel %vm335, %v357, %v359
      %v361 = vrot.slane %v296, 7
      %v362 = vsel %vm335, %v359, %v361
      %v363 = vrot.slane %v297, 7
      %v364 = vsel %vm335, %v361, %v363
      %v365 = vrot.slane %v298, 7
      %v366 = vsel %vm335, %v363, %v365
      %v367 = vrot.slane %v299, 7
      %v368 = vsel %vm335, %v365, %v367
      %v369 = vsel %vm202, %v338, 0
      %v371 = vsel %vm202, %v340, 0
      %v373 = vsel %vm202, %v342, 0
      %v375 = vsel %vm202, %v344, 0
      %v377 = vsel %vm202, %v346, 0
      %v379 = vsel %vm202, %v348, 0
      %v381 = vsel %vm202, %v350, 0
      %v383 = vsel %vm202, %v352, 0
      %v385 = vsel %vm202, %v354, 0
      %v387 = vsel %vm202, %v356, 0
      %v389 = vsel %vm202, %v358, 0
      %v391 = vsel %vm202, %v360, 0
      %v393 = vsel %vm202, %v362, 0
      %v395 = vsel %vm202, %v364, 0
      %v397 = vsel %vm202, %v366, 0
      %v399 = vsel %vm202, %v368, 0
      %vm401 = vcmask 1043456
      %v403 = vsel %vm401, %v317, 0
      %405 = vmatprep.subr.mxu0 0.0
      %406 = vmatpush1.msra.mxu0 %v403
      %407 = vmatprep.subr.mxu0 0.0
      %408 = vmatpush1.msra.mxu0 0.0
      %409 = vmatprep.subr.mxu0 0.0
      %410 = vmatpush1.msra.mxu0 0.0
      %411 = vmatprep.subr.mxu0 0.0
      %412 = vmatpush1.msra.mxu0 0.0
      %413 = vmatprep.subr.mxu0 0.0
      %414 = vmatpush1.msra.mxu0 0.0
      %415 = vmatprep.subr.mxu0 0.0
      %416 = vmatpush1.msra.mxu0 0.0
      %417 = vmatprep.subr.mxu0 0.0
      %418 = vmatpush1.msra.mxu0 0.0
      %419 = vmatprep.subr.mxu0 0.0
      %420 = vmatpush1.msra.mxu0 0.0
      %421 = vmatprep.subr.mxu0 0.0
      %422 = vmatpush1.msra.mxu0 0.0
      %423 = vmatprep.subr.mxu0 0.0
      %424 = vmatpush1.msra.mxu0 0.0
      %425 = vmatprep.subr.mxu0 0.0
      %426 = vmatpush1.msra.mxu0 0.0
      %427 = vmatprep.subr.mxu0 0.0
      %428 = vmatpush1.msra.mxu0 0.0
      %429 = vmatprep.subr.mxu0 0.0
      %430 = vmatpush1.msra.mxu0 0.0
      %431 = vmatprep.subr.mxu0 0.0
      %432 = vmatpush1.msra.mxu0 0.0
      %433 = vmatprep.subr.mxu0 0.0
      %434 = vmatpush1.msra.mxu0 0.0
      %435 = vmatprep.subr.mxu0 0.0
      %436 = vmatpush1.msra.mxu0 0.0
      %437 = vmatprep.subr.mxu0 0.0
      %438 = vmatpush1.msra.mxu0 0.0
      %439 = vmatprep.subr.mxu0 0.0
      %440 = vmatpush1.msra.mxu0 0.0
      %441 = vmatprep.subr.mxu0 0.0
      %442 = vmatpush1.msra.mxu0 0.0
      %443 = vmatprep.subr.mxu0 0.0
      %444 = vmatpush1.msra.mxu0 0.0
      %445 = vmatprep.subr.mxu0 0.0
      %446 = vmatpush1.msra.mxu0 0.0
      %447 = vmatprep.subr.mxu0 0.0
      %448 = vmatpush1.msra.mxu0 0.0
      %449 = vmatprep.subr.mxu0 0.0
      %450 = vmatpush1.msra.mxu0 0.0
      %451 = vmatprep.subr.mxu0 0.0
      %452 = vmatpush1.msra.mxu0 0.0
      %453 = vmatprep.subr.mxu0 0.0
      %454 = vmatpush1.msra.mxu0 0.0
      %455 = vmatprep.subr.mxu0 0.0
      %456 = vmatpush1.msra.mxu0 0.0
      %457 = vmatprep.subr.mxu0 0.0
      %458 = vmatpush1.msra.mxu0 0.0
      %459 = vmatprep.subr.mxu0 0.0
      %460 = vmatpush1.msra.mxu0 0.0
      %461 = vmatprep.subr.mxu0 0.0
      %462 = vmatpush1.msra.mxu0 0.0
      %463 = vmatprep.subr.mxu0 0.0
      %464 = vmatpush1.msra.mxu0 0.0
      %465 = vmatprep.subr.mxu0 0.0
      %466 = vmatpush1.msra.mxu0 0.0
      %467 = vmatprep.subr.mxu0 0.0
      %468 = vmatpush1.msra.mxu0 0.0
      %469 = vmatprep.mubr.f32.mxu0 0.0
      %470 = vmatmul.mubr.f32.gmra.mrb[0].mxu0 %v369
      %v471 = vpop.f32.mrb[0].mxu0
      %v472 = vadd.f32 0.0, %v471
      %v473 = vpop.f32.mrb[0].mxu0
      %474 = vmatprep.mubr.f32.mxu0 0.0
      %475 = vmatmul.mubr.f32.gmra.mrb[0].mxu0 %v371
      %v476 = vpop.f32.mrb[0].mxu0
      %v477 = vadd.f32 0.0, %v476
      %v478 = vpop.f32.mrb[0].mxu0
      %479 = vmatprep.mubr.f32.mxu0 0.0
      %480 = vmatmul.mubr.f32.gmra.mrb[0].mxu0 %v373
      %v481 = vpop.f32.mrb[0].mxu0
      %v482 = vadd.f32 0.0, %v481
      %v483 = vpop.f32.mrb[0].mxu0
      %484 = vmatprep.mubr.f32.mxu0 0.0
      %485 = vmatmul.mubr.f32.gmra.mrb[0].mxu0 %v375
      %v486 = vpop.f32.mrb[0].mxu0
      %v487 = vadd.f32 0.0, %v486
      %v488 = vpop.f32.mrb[0].mxu0
      %489 = vmatprep.mubr.f32.mxu0 0.0
      %490 = vmatmul.mubr.f32.gmra.mrb[0].mxu0 %v377
      %v491 = vpop.f32.mrb[0].mxu0
      %v492 = vadd.f32 0.0, %v491
      %v493 = vpop.f32.mrb[0].mxu0
      %494 = vmatprep.mubr.f32.mxu0 0.0
      %495 = vmatmul.mubr.f32.gmra.mrb[0].mxu0 %v379
      %v496 = vpop.f32.mrb[0].mxu0
      %v497 = vadd.f32 0.0, %v496
      %v498 = vpop.f32.mrb[0].mxu0
      %499 = vmatprep.mubr.f32.mxu0 0.0
      %500 = vmatmul.mubr.f32.gmra.mrb[0].mxu0 %v381
      %v501 = vpop.f32.mrb[0].mxu0
      %v502 = vadd.f32 0.0, %v501
      %v503 = vpop.f32.mrb[0].mxu0
      %504 = vmatprep.mubr.f32.mxu0 0.0
      %505 = vmatmul.mubr.f32.gmra.mrb[0].mxu0 %v383
      %v506 = vpop.f32.mrb[0].mxu0
      %v507 = vadd.f32 0.0, %v506
      %v508 = vpop.f32.mrb[0].mxu0
      %509 = vmatprep.mubr.f32.mxu0 0.0
      %510 = vmatmul.mubr.f32.gmra.mrb[0].mxu0 %v385
      %v511 = vpop.f32.mrb[0].mxu0
      %v512 = vadd.f32 0.0, %v511
      %v513 = vpop.f32.mrb[0].mxu0
      %514 = vmatprep.mubr.f32.mxu0 0.0
      %515 = vmatmul.mubr.f32.gmra.mrb[0].mxu0 %v387
      %v516 = vpop.f32.mrb[0].mxu0
      %v517 = vadd.f32 0.0, %v516
      %v518 = vpop.f32.mrb[0].mxu0
      %519 = vmatprep.mubr.f32.mxu0 0.0
      %520 = vmatmul.mubr.f32.gmra.mrb[0].mxu0 %v389
      %v521 = vpop.f32.mrb[0].mxu0
      %v522 = vadd.f32 0.0, %v521
      %v523 = vpop.f32.mrb[0].mxu0
      %524 = vmatprep.mubr.f32.mxu0 0.0
      %525 = vmatmul.mubr.f32.gmra.mrb[0].mxu0 %v391
      %v526 = vpop.f32.mrb[0].mxu0
      %v527 = vadd.f32 0.0, %v526
      %v528 = vpop.f32.mrb[0].mxu0
      %529 = vmatprep.mubr.f32.mxu0 0.0
      %530 = vmatmul.mubr.f32.gmra.mrb[0].mxu0 %v393
      %v531 = vpop.f32.mrb[0].mxu0
      %v532 = vadd.f32 0.0, %v531
      %v533 = vpop.f32.mrb[0].mxu0
      %534 = vmatprep.mubr.f32.mxu0 0.0
      %535 = vmatmul.mubr.f32.gmra.mrb[0].mxu0 %v395
      %v536 = vpop.f32.mrb[0].mxu0
      %v537 = vadd.f32 0.0, %v536
      %v538 = vpop.f32.mrb[0].mxu0
      %539 = vmatprep.mubr.f32.mxu0 0.0
      %540 = vmatmul.mubr.f32.gmra.mrb[0].mxu0 %v397
      %v541 = vpop.f32.mrb[0].mxu0
      %v542 = vadd.f32 0.0, %v541
      %v543 = vpop.f32.mrb[0].mxu0
      %544 = vmatprep.mubr.f32.mxu0 0.0
      %545 = vmatmul.mubr.f32.gmra.mrb[0].mxu0 %v399
      %v546 = vpop.f32.mrb[0].mxu0
      %v547 = vadd.f32 0.0, %v546
      %v548 = vpop.f32.mrb[0].mxu0
      %549 = vdwg.mxu0
      %v550 = vadd.f32 %v301, %v472
      %v551 = vadd.f32 %v302, %v477
      %v552 = vadd.f32 %v303, %v482
      %v553 = vadd.f32 %v304, %v487
      %v554 = vadd.f32 %v305, %v492
      %v555 = vadd.f32 %v306, %v497
      %v556 = vadd.f32 %v307, %v502
      %v557 = vadd.f32 %v308, %v507
      %v558 = vadd.f32 %v309, %v512
      %v559 = vadd.f32 %v310, %v517
      %v560 = vadd.f32 %v311, %v522
      %v561 = vadd.f32 %v312, %v527
      %v562 = vadd.f32 %v313, %v532
      %v563 = vadd.f32 %v314, %v537
      %v564 = vadd.f32 %v315, %v542
      %v565 = vadd.f32 %v316, %v547
      %566 = vst.msk [vmem:[#allocation3] sm:$0xff] %vm202, %v550
      %567 = vst.msk [vmem:[#allocation3 + $0x8] sm:$0xff] %vm202, %v551
      %568 = vst.msk [vmem:[#allocation3 + $0x10] sm:$0xff] %vm202, %v552
      %569 = vst.msk [vmem:[#allocation3 + $0x18] sm:$0xff] %vm202, %v553
      %570 = vst.msk [vmem:[#allocation3 + $0x20] sm:$0xff] %vm202, %v554
      %571 = vst.msk [vmem:[#allocation3 + $0x28] sm:$0xff] %vm202, %v555
      %572 = vst.msk [vmem:[#allocation3 + $0x30] sm:$0xff] %vm202, %v556
      %573 = vst.msk [vmem:[#allocation3 + $0x38] sm:$0xff] %vm202, %v557
      %574 = vst.msk [vmem:[#allocation3 + $0x40] sm:$0xff] %vm202, %v558
      %575 = vst.msk [vmem:[#allocation3 + $0x48] sm:$0xff] %vm202, %v559
      %576 = vst.msk [vmem:[#allocation3 + $0x50] sm:$0xff] %vm202, %v560
      %577 = vst.msk [vmem:[#allocation3 + $0x58] sm:$0xff] %vm202, %v561
      %578 = vst.msk [vmem:[#allocation3 + $0x60] sm:$0xff] %vm202, %v562
      %579 = vst.msk [vmem:[#allocation3 + $0x68] sm:$0xff] %vm202, %v563
      %580 = vst.msk [vmem:[#allocation3 + $0x70] sm:$0xff] %vm202, %v564
      %581 = vst.msk [vmem:[#allocation3 + $0x78] sm:$0xff] %vm202, %v565
      %v582 = vld [vmem:[#allocation3] sm:$0xff]
      %v583 = vld [vmem:[#allocation3 + $0x8] sm:$0xff]
      %v584 = vld [vmem:[#allocation3 + $0x10] sm:$0xff]
      %v585 = vld [vmem:[#allocation3 + $0x18] sm:$0xff]
      %v586 = vld [vmem:[#allocation3 + $0x20] sm:$0xff]
      %v587 = vld [vmem:[#allocation3 + $0x28] sm:$0xff]
      %v588 = vld [vmem:[#allocation3 + $0x30] sm:$0xff]
      %v589 = vld [vmem:[#allocation3 + $0x38] sm:$0xff]
      %v590 = vld [vmem:[#allocation3 + $0x40] sm:$0xff]
      %v591 = vld [vmem:[#allocation3 + $0x48] sm:$0xff]
      %v592 = vld [vmem:[#allocation3 + $0x50] sm:$0xff]
      %v593 = vld [vmem:[#allocation3 + $0x58] sm:$0xff]
      %v594 = vld [vmem:[#allocation3 + $0x60] sm:$0xff]
      %v595 = vld [vmem:[#allocation3 + $0x68] sm:$0xff]
      %v596 = vld [vmem:[#allocation3 + $0x70] sm:$0xff]
      %v597 = vld [vmem:[#allocation3 + $0x78] sm:$0xff]
      %s598 = scalar_lea.vmem %s1, 4
      %v599 = vld [vmem:[%s598] sm:$0xf]
      %v600 = vsel %vm202, %v284, 0
      %v602 = vsel %vm202, %v285, 0
      %v604 = vsel %vm202, %v286, 0
      %v606 = vsel %vm202, %v287, 0
      %v608 = vsel %vm202, %v288, 0
      %v610 = vsel %vm202, %v289, 0
      %v612 = vsel %vm202, %v290, 0
      %v614 = vsel %vm202, %v291, 0
      %v616 = vsel %vm202, %v292, 0
      %v618 = vsel %vm202, %v293, 0
      %v620 = vsel %vm202, %v294, 0
      %v622 = vsel %vm202, %v295, 0
      %v624 = vsel %vm202, %v296, 0
      %v626 = vsel %vm202, %v297, 0
      %v628 = vsel %vm202, %v298, 0
      %v630 = vsel %vm202, %v299, 0
      %v633 = vsel %vm401, %v599, 0
      %635 = vmatprep.subr.mxu0 0.0
      %636 = vmatpush1.msra.mxu0 %v633
      %637 = vmatprep.subr.mxu0 0.0
      %638 = vmatpush1.msra.mxu0 0.0
      %639 = vmatprep.subr.mxu0 0.0
      %640 = vmatpush1.msra.mxu0 0.0
      %641 = vmatprep.subr.mxu0 0.0
      %642 = vmatpush1.msra.mxu0 0.0
      %643 = vmatprep.subr.mxu0 0.0
      %644 = vmatpush1.msra.mxu0 0.0
      %645 = vmatprep.subr.mxu0 0.0
      %646 = vmatpush1.msra.mxu0 0.0
      %647 = vmatprep.subr.mxu0 0.0
      %648 = vmatpush1.msra.mxu0 0.0
      %649 = vmatprep.subr.mxu0 0.0
      %650 = vmatpush1.msra.mxu0 0.0
      %651 = vmatprep.subr.mxu0 0.0
      %652 = vmatpush1.msra.mxu0 0.0
      %653 = vmatprep.subr.mxu0 0.0
      %654 = vmatpush1.msra.mxu0 0.0
      %655 = vmatprep.subr.mxu0 0.0
      %656 = vmatpush1.msra.mxu0 0.0
      %657 = vmatprep.subr.mxu0 0.0
      %658 = vmatpush1.msra.mxu0 0.0
      %659 = vmatprep.subr.mxu0 0.0
      %660 = vmatpush1.msra.mxu0 0.0
      %661 = vmatprep.subr.mxu0 0.0
      %662 = vmatpush1.msra.mxu0 0.0
      %663 = vmatprep.subr.mxu0 0.0
      %664 = vmatpush1.msra.mxu0 0.0
      %665 = vmatprep.subr.mxu0 0.0
      %666 = vmatpush1.msra.mxu0 0.0
      %667 = vmatprep.subr.mxu0 0.0
      %668 = vmatpush1.msra.mxu0 0.0
      %669 = vmatprep.subr.mxu0 0.0
      %670 = vmatpush1.msra.mxu0 0.0
      %671 = vmatprep.subr.mxu0 0.0
      %672 = vmatpush1.msra.mxu0 0.0
      %673 = vmatprep.subr.mxu0 0.0
      %674 = vmatpush1.msra.mxu0 0.0
      %675 = vmatprep.subr.mxu0 0.0
      %676 = vmatpush1.msra.mxu0 0.0
      %677 = vmatprep.subr.mxu0 0.0
      %678 = vmatpush1.msra.mxu0 0.0
      %679 = vmatprep.subr.mxu0 0.0
      %680 = vmatpush1.msra.mxu0 0.0
      %681 = vmatprep.subr.mxu0 0.0
      %682 = vmatpush1.msra.mxu0 0.0
      %683 = vmatprep.subr.mxu0 0.0
      %684 = vmatpush1.msra.mxu0 0.0
      %685 = vmatprep.subr.mxu0 0.0
      %686 = vmatpush1.msra.mxu0 0.0
      %687 = vmatprep.subr.mxu0 0.0
      %688 = vmatpush1.msra.mxu0 0.0
      %689 = vmatprep.subr.mxu0 0.0
      %690 = vmatpush1.msra.mxu0 0.0
      %691 = vmatprep.subr.mxu0 0.0
      %692 = vmatpush1.msra.mxu0 0.0
      %693 = vmatprep.subr.mxu0 0.0
      %694 = vmatpush1.msra.mxu0 0.0
      %695 = vmatprep.subr.mxu0 0.0
      %696 = vmatpush1.msra.mxu0 0.0
      %697 = vmatprep.subr.mxu0 0.0
      %698 = vmatpush1.msra.mxu0 0.0
      %699 = vmatprep.mubr.f32.mxu0 0.0
      %700 = vmatmul.mubr.f32.gmra.mrb[0].mxu0 %v600
      %v701 = vpop.f32.mrb[0].mxu0
      %v702 = vadd.f32 0.0, %v701
      %v703 = vpop.f32.mrb[0].mxu0
      %704 = vmatprep.mubr.f32.mxu0 0.0
      %705 = vmatmul.mubr.f32.gmra.mrb[0].mxu0 %v602
      %v706 = vpop.f32.mrb[0].mxu0
      %v707 = vadd.f32 0.0, %v706
      %v708 = vpop.f32.mrb[0].mxu0
      %709 = vmatprep.mubr.f32.mxu0 0.0
      %710 = vmatmul.mubr.f32.gmra.mrb[0].mxu0 %v604
      %v711 = vpop.f32.mrb[0].mxu0
      %v712 = vadd.f32 0.0, %v711
      %v713 = vpop.f32.mrb[0].mxu0
      %714 = vmatprep.mubr.f32.mxu0 0.0
      %715 = vmatmul.mubr.f32.gmra.mrb[0].mxu0 %v606
      %v716 = vpop.f32.mrb[0].mxu0
      %v717 = vadd.f32 0.0, %v716
      %v718 = vpop.f32.mrb[0].mxu0
      %719 = vmatprep.mubr.f32.mxu0 0.0
      %720 = vmatmul.mubr.f32.gmra.mrb[0].mxu0 %v608
      %v721 = vpop.f32.mrb[0].mxu0
      %v722 = vadd.f32 0.0, %v721
      %v723 = vpop.f32.mrb[0].mxu0
      %724 = vmatprep.mubr.f32.mxu0 0.0
      %725 = vmatmul.mubr.f32.gmra.mrb[0].mxu0 %v610
      %v726 = vpop.f32.mrb[0].mxu0
      %v727 = vadd.f32 0.0, %v726
      %v728 = vpop.f32.mrb[0].mxu0
      %729 = vmatprep.mubr.f32.mxu0 0.0
      %730 = vmatmul.mubr.f32.gmra.mrb[0].mxu0 %v612
      %v731 = vpop.f32.mrb[0].mxu0
      %v732 = vadd.f32 0.0, %v731
      %v733 = vpop.f32.mrb[0].mxu0
      %734 = vmatprep.mubr.f32.mxu0 0.0
      %735 = vmatmul.mubr.f32.gmra.mrb[0].mxu0 %v614
      %v736 = vpop.f32.mrb[0].mxu0
      %v737 = vadd.f32 0.0, %v736
      %v738 = vpop.f32.mrb[0].mxu0
      %739 = vmatprep.mubr.f32.mxu0 0.0
      %740 = vmatmul.mubr.f32.gmra.mrb[0].mxu0 %v616
      %v741 = vpop.f32.mrb[0].mxu0
      %v742 = vadd.f32 0.0, %v741
      %v743 = vpop.f32.mrb[0].mxu0
      %744 = vmatprep.mubr.f32.mxu0 0.0
      %745 = vmatmul.mubr.f32.gmra.mrb[0].mxu0 %v618
      %v746 = vpop.f32.mrb[0].mxu0
      %v747 = vadd.f32 0.0, %v746
      %v748 = vpop.f32.mrb[0].mxu0
      %749 = vmatprep.mubr.f32.mxu0 0.0
      %750 = vmatmul.mubr.f32.gmra.mrb[0].mxu0 %v620
      %v751 = vpop.f32.mrb[0].mxu0
      %v752 = vadd.f32 0.0, %v751
      %v753 = vpop.f32.mrb[0].mxu0
      %754 = vmatprep.mubr.f32.mxu0 0.0
      %755 = vmatmul.mubr.f32.gmra.mrb[0].mxu0 %v622
      %v756 = vpop.f32.mrb[0].mxu0
      %v757 = vadd.f32 0.0, %v756
      %v758 = vpop.f32.mrb[0].mxu0
      %759 = vmatprep.mubr.f32.mxu0 0.0
      %760 = vmatmul.mubr.f32.gmra.mrb[0].mxu0 %v624
      %v761 = vpop.f32.mrb[0].mxu0
      %v762 = vadd.f32 0.0, %v761
      %v763 = vpop.f32.mrb[0].mxu0
      %764 = vmatprep.mubr.f32.mxu0 0.0
      %765 = vmatmul.mubr.f32.gmra.mrb[0].mxu0 %v626
      %v766 = vpop.f32.mrb[0].mxu0
      %v767 = vadd.f32 0.0, %v766
      %v768 = vpop.f32.mrb[0].mxu0
      %769 = vmatprep.mubr.f32.mxu0 0.0
      %770 = vmatmul.mubr.f32.gmra.mrb[0].mxu0 %v628
      %v771 = vpop.f32.mrb[0].mxu0
      %v772 = vadd.f32 0.0, %v771
      %v773 = vpop.f32.mrb[0].mxu0
      %774 = vmatprep.mubr.f32.mxu0 0.0
      %775 = vmatmul.mubr.f32.gmra.mrb[0].mxu0 %v630
      %v776 = vpop.f32.mrb[0].mxu0
      %v777 = vadd.f32 0.0, %v776
      %v778 = vpop.f32.mrb[0].mxu0
      %779 = vdwg.mxu0
      %v780 = vadd.f32 %v582, %v702
      %v781 = vadd.f32 %v583, %v707
      %v782 = vadd.f32 %v584, %v712
      %v783 = vadd.f32 %v585, %v717
      %v784 = vadd.f32 %v586, %v722
      %v785 = vadd.f32 %v587, %v727
      %v786 = vadd.f32 %v588, %v732
      %v787 = vadd.f32 %v589, %v737
      %v788 = vadd.f32 %v590, %v742
      %v789 = vadd.f32 %v591, %v747
      %v790 = vadd.f32 %v592, %v752
      %v791 = vadd.f32 %v593, %v757
      %v792 = vadd.f32 %v594, %v762
      %v793 = vadd.f32 %v595, %v767
      %v794 = vadd.f32 %v596, %v772
      %v795 = vadd.f32 %v597, %v777
      %796 = vst.msk [vmem:[#allocation3] sm:$0xff] %vm202, %v780
      %797 = vst.msk [vmem:[#allocation3 + $0x8] sm:$0xff] %vm202, %v781
      %798 = vst.msk [vmem:[#allocation3 + $0x10] sm:$0xff] %vm202, %v782
      %799 = vst.msk [vmem:[#allocation3 + $0x18] sm:$0xff] %vm202, %v783
      %800 = vst.msk [vmem:[#allocation3 + $0x20] sm:$0xff] %vm202, %v784
      %801 = vst.msk [vmem:[#allocation3 + $0x28] sm:$0xff] %vm202, %v785
      %802 = vst.msk [vmem:[#allocation3 + $0x30] sm:$0xff] %vm202, %v786
      %803 = vst.msk [vmem:[#allocation3 + $0x38] sm:$0xff] %vm202, %v787
      %804 = vst.msk [vmem:[#allocation3 + $0x40] sm:$0xff] %vm202, %v788
      %805 = vst.msk [vmem:[#allocation3 + $0x48] sm:$0xff] %vm202, %v789
      %806 = vst.msk [vmem:[#allocation3 + $0x50] sm:$0xff] %vm202, %v790
      %807 = vst.msk [vmem:[#allocation3 + $0x58] sm:$0xff] %vm202, %v791
      %808 = vst.msk [vmem:[#allocation3 + $0x60] sm:$0xff] %vm202, %v792
      %809 = vst.msk [vmem:[#allocation3 + $0x68] sm:$0xff] %vm202, %v793
      %810 = vst.msk [vmem:[#allocation3 + $0x70] sm:$0xff] %vm202, %v794
      %811 = vst.msk [vmem:[#allocation3 + $0x78] sm:$0xff] %vm202, %v795
      %v812 = vld [vmem:[#allocation3] sm:$0xff]
      %v813 = vld [vmem:[#allocation3 + $0x8] sm:$0xff]
      %v814 = vld [vmem:[#allocation3 + $0x10] sm:$0xff]
      %v815 = vld [vmem:[#allocation3 + $0x18] sm:$0xff]
      %v816 = vld [vmem:[#allocation3 + $0x20] sm:$0xff]
      %v817 = vld [vmem:[#allocation3 + $0x28] sm:$0xff]
      %v818 = vld [vmem:[#allocation3 + $0x30] sm:$0xff]
      %v819 = vld [vmem:[#allocation3 + $0x38] sm:$0xff]
      %v820 = vld [vmem:[#allocation3 + $0x40] sm:$0xff]
      %v821 = vld [vmem:[#allocation3 + $0x48] sm:$0xff]
      %v822 = vld [vmem:[#allocation3 + $0x50] sm:$0xff]
      %v823 = vld [vmem:[#allocation3 + $0x58] sm:$0xff]
      %v824 = vld [vmem:[#allocation3 + $0x60] sm:$0xff]
      %v825 = vld [vmem:[#allocation3 + $0x68] sm:$0xff]
      %v826 = vld [vmem:[#allocation3 + $0x70] sm:$0xff]
      %v827 = vld [vmem:[#allocation3 + $0x78] sm:$0xff]
      %s828 = scalar_lea.vmem %s1, 8
      %v829 = vld [vmem:[%s828] sm:$0xf]
      %vm831 = vcmask 1046528
      %v832 = vrot.slane %v284, 1
      %v833 = vrot.slane %v285, 1
      %v834 = vsel %vm831, %v832, %v833
      %v835 = vrot.slane %v286, 1
      %v836 = vsel %vm831, %v833, %v835
      %v837 = vrot.slane %v287, 1
      %v838 = vsel %vm831, %v835, %v837
      %v839 = vrot.slane %v288, 1
      %v840 = vsel %vm831, %v837, %v839
      %v841 = vrot.slane %v289, 1
      %v842 = vsel %vm831, %v839, %v841
      %v843 = vrot.slane %v290, 1
      %v844 = vsel %vm831, %v841, %v843
      %v845 = vrot.slane %v291, 1
      %v846 = vsel %vm831, %v843, %v845
      %v847 = vrot.slane %v292, 1
      %v848 = vsel %vm831, %v845, %v847
      %v849 = vrot.slane %v293, 1
      %v850 = vsel %vm831, %v847, %v849
      %v851 = vrot.slane %v294, 1
      %v852 = vsel %vm831, %v849, %v851
      %v853 = vrot.slane %v295, 1
      %v854 = vsel %vm831, %v851, %v853
      %v855 = vrot.slane %v296, 1
      %v856 = vsel %vm831, %v853, %v855
      %v857 = vrot.slane %v297, 1
      %v858 = vsel %vm831, %v855, %v857
      %v859 = vrot.slane %v298, 1
      %v860 = vsel %vm831, %v857, %v859
      %v861 = vrot.slane %v299, 1
      %v862 = vsel %vm831, %v859, %v861
      %v863 = vrot.slane %v300, 1
      %v864 = vsel %vm831, %v861, %v863
      %v865 = vsel %vm202, %v834, 0
      %v867 = vsel %vm202, %v836, 0
      %v869 = vsel %vm202, %v838, 0
      %v871 = vsel %vm202, %v840, 0
      %v873 = vsel %vm202, %v842, 0
      %v875 = vsel %vm202, %v844, 0
      %v877 = vsel %vm202, %v846, 0
      %v879 = vsel %vm202, %v848, 0
      %v881 = vsel %vm202, %v850, 0
      %v883 = vsel %vm202, %v852, 0
      %v885 = vsel %vm202, %v854, 0
      %v887 = vsel %vm202, %v856, 0
      %v889 = vsel %vm202, %v858, 0
      %v891 = vsel %vm202, %v860, 0
      %v893 = vsel %vm202, %v862, 0
      %v895 = vsel %vm202, %v864, 0
      %v898 = vsel %vm401, %v829, 0
      %900 = vmatprep.subr.mxu0 0.0
      %901 = vmatpush1.msra.mxu0 %v898
      %902 = vmatprep.subr.mxu0 0.0
      %903 = vmatpush1.msra.mxu0 0.0
      %904 = vmatprep.subr.mxu0 0.0
      %905 = vmatpush1.msra.mxu0 0.0
      %906 = vmatprep.subr.mxu0 0.0
      %907 = vmatpush1.msra.mxu0 0.0
      %908 = vmatprep.subr.mxu0 0.0
      %909 = vmatpush1.msra.mxu0 0.0
      %910 = vmatprep.subr.mxu0 0.0
      %911 = vmatpush1.msra.mxu0 0.0
      %912 = vmatprep.subr.mxu0 0.0
      %913 = vmatpush1.msra.mxu0 0.0
      %914 = vmatprep.subr.mxu0 0.0
      %915 = vmatpush1.msra.mxu0 0.0
      %916 = vmatprep.subr.mxu0 0.0
      %917 = vmatpush1.msra.mxu0 0.0
      %918 = vmatprep.subr.mxu0 0.0
      %919 = vmatpush1.msra.mxu0 0.0
      %920 = vmatprep.subr.mxu0 0.0
      %921 = vmatpush1.msra.mxu0 0.0
      %922 = vmatprep.subr.mxu0 0.0
      %923 = vmatpush1.msra.mxu0 0.0
      %924 = vmatprep.subr.mxu0 0.0
      %925 = vmatpush1.msra.mxu0 0.0
      %926 = vmatprep.subr.mxu0 0.0
      %927 = vmatpush1.msra.mxu0 0.0
      %928 = vmatprep.subr.mxu0 0.0
      %929 = vmatpush1.msra.mxu0 0.0
      %930 = vmatprep.subr.mxu0 0.0
      %931 = vmatpush1.msra.mxu0 0.0
      %932 = vmatprep.subr.mxu0 0.0
      %933 = vmatpush1.msra.mxu0 0.0
      %934 = vmatprep.subr.mxu0 0.0
      %935 = vmatpush1.msra.mxu0 0.0
      %936 = vmatprep.subr.mxu0 0.0
      %937 = vmatpush1.msra.mxu0 0.0
      %938 = vmatprep.subr.mxu0 0.0
      %939 = vmatpush1.msra.mxu0 0.0
      %940 = vmatprep.subr.mxu0 0.0
      %941 = vmatpush1.msra.mxu0 0.0
      %942 = vmatprep.subr.mxu0 0.0
      %943 = vmatpush1.msra.mxu0 0.0
      %944 = vmatprep.subr.mxu0 0.0
      %945 = vmatpush1.msra.mxu0 0.0
      %946 = vmatprep.subr.mxu0 0.0
      %947 = vmatpush1.msra.mxu0 0.0
      %948 = vmatprep.subr.mxu0 0.0
      %949 = vmatpush1.msra.mxu0 0.0
      %950 = vmatprep.subr.mxu0 0.0
      %951 = vmatpush1.msra.mxu0 0.0
      %952 = vmatprep.subr.mxu0 0.0
      %953 = vmatpush1.msra.mxu0 0.0
      %954 = vmatprep.subr.mxu0 0.0
      %955 = vmatpush1.msra.mxu0 0.0
      %956 = vmatprep.subr.mxu0 0.0
      %957 = vmatpush1.msra.mxu0 0.0
      %958 = vmatprep.subr.mxu0 0.0
      %959 = vmatpush1.msra.mxu0 0.0
      %960 = vmatprep.subr.mxu0 0.0
      %961 = vmatpush1.msra.mxu0 0.0
      %962 = vmatprep.subr.mxu0 0.0
      %963 = vmatpush1.msra.mxu0 0.0
      %964 = vmatprep.mubr.f32.mxu0 0.0
      %965 = vmatmul.mubr.f32.gmra.mrb[0].mxu0 %v865
      %v966 = vpop.f32.mrb[0].mxu0
      %v967 = vadd.f32 0.0, %v966
      %v968 = vpop.f32.mrb[0].mxu0
      %969 = vmatprep.mubr.f32.mxu0 0.0
      %970 = vmatmul.mubr.f32.gmra.mrb[0].mxu0 %v867
      %v971 = vpop.f32.mrb[0].mxu0
      %v972 = vadd.f32 0.0, %v971
      %v973 = vpop.f32.mrb[0].mxu0
      %974 = vmatprep.mubr.f32.mxu0 0.0
      %975 = vmatmul.mubr.f32.gmra.mrb[0].mxu0 %v869
      %v976 = vpop.f32.mrb[0].mxu0
      %v977 = vadd.f32 0.0, %v976
      %v978 = vpop.f32.mrb[0].mxu0
      %979 = vmatprep.mubr.f32.mxu0 0.0
      %980 = vmatmul.mubr.f32.gmra.mrb[0].mxu0 %v871
      %v981 = vpop.f32.mrb[0].mxu0
      %v982 = vadd.f32 0.0, %v981
      %v983 = vpop.f32.mrb[0].mxu0
      %984 = vmatprep.mubr.f32.mxu0 0.0
      %985 = vmatmul.mubr.f32.gmra.mrb[0].mxu0 %v873
      %v986 = vpop.f32.mrb[0].mxu0
      %v987 = vadd.f32 0.0, %v986
      %v988 = vpop.f32.mrb[0].mxu0
      %989 = vmatprep.mubr.f32.mxu0 0.0
      %990 = vmatmul.mubr.f32.gmra.mrb[0].mxu0 %v875
      %v991 = vpop.f32.mrb[0].mxu0
      %v992 = vadd.f32 0.0, %v991
      %v993 = vpop.f32.mrb[0].mxu0
      %994 = vmatprep.mubr.f32.mxu0 0.0
      %995 = vmatmul.mubr.f32.gmra.mrb[0].mxu0 %v877
      %v996 = vpop.f32.mrb[0].mxu0
      %v997 = vadd.f32 0.0, %v996
      %v998 = vpop.f32.mrb[0].mxu0
      %999 = vmatprep.mubr.f32.mxu0 0.0
      %1000 = vmatmul.mubr.f32.gmra.mrb[0].mxu0 %v879
      %v1001 = vpop.f32.mrb[0].mxu0
      %v1002 = vadd.f32 0.0, %v1001
      %v1003 = vpop.f32.mrb[0].mxu0
      %1004 = vmatprep.mubr.f32.mxu0 0.0
      %1005 = vmatmul.mubr.f32.gmra.mrb[0].mxu0 %v881
      %v1006 = vpop.f32.mrb[0].mxu0
      %v1007 = vadd.f32 0.0, %v1006
      %v1008 = vpop.f32.mrb[0].mxu0
      %1009 = vmatprep.mubr.f32.mxu0 0.0
      %1010 = vmatmul.mubr.f32.gmra.mrb[0].mxu0 %v883
      %v1011 = vpop.f32.mrb[0].mxu0
      %v1012 = vadd.f32 0.0, %v1011
      %v1013 = vpop.f32.mrb[0].mxu0
      %1014 = vmatprep.mubr.f32.mxu0 0.0
      %1015 = vmatmul.mubr.f32.gmra.mrb[0].mxu0 %v885
      %v1016 = vpop.f32.mrb[0].mxu0
      %v1017 = vadd.f32 0.0, %v1016
      %v1018 = vpop.f32.mrb[0].mxu0
      %1019 = vmatprep.mubr.f32.mxu0 0.0
      %1020 = vmatmul.mubr.f32.gmra.mrb[0].mxu0 %v887
      %v1021 = vpop.f32.mrb[0].mxu0
      %v1022 = vadd.f32 0.0, %v1021
      %v1023 = vpop.f32.mrb[0].mxu0
      %1024 = vmatprep.mubr.f32.mxu0 0.0
      %1025 = vmatmul.mubr.f32.gmra.mrb[0].mxu0 %v889
      %v1026 = vpop.f32.mrb[0].mxu0
      %v1027 = vadd.f32 0.0, %v1026
      %v1028 = vpop.f32.mrb[0].mxu0
      %1029 = vmatprep.mubr.f32.mxu0 0.0
      %1030 = vmatmul.mubr.f32.gmra.mrb[0].mxu0 %v891
      %v1031 = vpop.f32.mrb[0].mxu0
      %v1032 = vadd.f32 0.0, %v1031
      %v1033 = vpop.f32.mrb[0].mxu0
      %1034 = vmatprep.mubr.f32.mxu0 0.0
      %1035 = vmatmul.mubr.f32.gmra.mrb[0].mxu0 %v893
      %v1036 = vpop.f32.mrb[0].mxu0
      %v1037 = vadd.f32 0.0, %v1036
      %v1038 = vpop.f32.mrb[0].mxu0
      %1039 = vmatprep.mubr.f32.mxu0 0.0
      %1040 = vmatmul.mubr.f32.gmra.mrb[0].mxu0 %v895
      %v1041 = vpop.f32.mrb[0].mxu0
      %v1042 = vadd.f32 0.0, %v1041
      %v1043 = vpop.f32.mrb[0].mxu0
      %1044 = vdwg.mxu0
      %v1045 = vadd.f32 %v812, %v967
      %v1046 = vadd.f32 %v813, %v972
      %v1047 = vadd.f32 %v814, %v977
      %v1048 = vadd.f32 %v815, %v982
      %v1049 = vadd.f32 %v816, %v987
      %v1050 = vadd.f32 %v817, %v992
      %v1051 = vadd.f32 %v818, %v997
      %v1052 = vadd.f32 %v819, %v1002
      %v1053 = vadd.f32 %v820, %v1007
      %v1054 = vadd.f32 %v821, %v1012
      %v1055 = vadd.f32 %v822, %v1017
      %v1056 = vadd.f32 %v823, %v1022
      %v1057 = vadd.f32 %v824, %v1027
      %v1058 = vadd.f32 %v825, %v1032
      %v1059 = vadd.f32 %v826, %v1037
      %v1060 = vadd.f32 %v827, %v1042
      %1061 = vst.msk [vmem:[#allocation3] sm:$0xff] %vm202, %v1045
      %1062 = vst.msk [vmem:[#allocation3 + $0x8] sm:$0xff] %vm202, %v1046
      %1063 = vst.msk [vmem:[#allocation3 + $0x10] sm:$0xff] %vm202, %v1047
      %1064 = vst.msk [vmem:[#allocation3 + $0x18] sm:$0xff] %vm202, %v1048
      %1065 = vst.msk [vmem:[#allocation3 + $0x20] sm:$0xff] %vm202, %v1049
      %1066 = vst.msk [vmem:[#allocation3 + $0x28] sm:$0xff] %vm202, %v1050
      %1067 = vst.msk [vmem:[#allocation3 + $0x30] sm:$0xff] %vm202, %v1051
      %1068 = vst.msk [vmem:[#allocation3 + $0x38] sm:$0xff] %vm202, %v1052
      %1069 = vst.msk [vmem:[#allocation3 + $0x40] sm:$0xff] %vm202, %v1053
      %1070 = vst.msk [vmem:[#allocation3 + $0x48] sm:$0xff] %vm202, %v1054
      %1071 = vst.msk [vmem:[#allocation3 + $0x50] sm:$0xff] %vm202, %v1055
      %1072 = vst.msk [vmem:[#allocation3 + $0x58] sm:$0xff] %vm202, %v1056
      %1073 = vst.msk [vmem:[#allocation3 + $0x60] sm:$0xff] %vm202, %v1057
      %1074 = vst.msk [vmem:[#allocation3 + $0x68] sm:$0xff] %vm202, %v1058
      %1075 = vst.msk [vmem:[#allocation3 + $0x70] sm:$0xff] %vm202, %v1059
      %1076 = vst.msk [vmem:[#allocation3 + $0x78] sm:$0xff] %vm202, %v1060
      %v1077 = vld [vmem:[%s224 + $0x8] sm:$0xff]
      %v1078 = vld [vmem:[%s224 + $0x10] sm:$0xff]
      %v1079 = vld [vmem:[%s224 + $0x18] sm:$0xff]
      %v1080 = vld [vmem:[%s224 + $0x20] sm:$0xff]
      %v1081 = vld [vmem:[%s224 + $0x28] sm:$0xff]
      %v1082 = vld [vmem:[%s224 + $0x30] sm:$0xff]
      %v1083 = vld [vmem:[%s224 + $0x38] sm:$0xff]
      %v1084 = vld [vmem:[%s224 + $0x40] sm:$0xff]
      %v1085 = vld [vmem:[%s224 + $0x48] sm:$0xff]
      %v1086 = vld [vmem:[%s224 + $0x50] sm:$0xff]
      %v1087 = vld [vmem:[%s224 + $0x58] sm:$0xff]
      %v1088 = vld [vmem:[%s224 + $0x60] sm:$0xff]
      %v1089 = vld [vmem:[%s224 + $0x68] sm:$0xff]
      %v1090 = vld [vmem:[%s224 + $0x70] sm:$0xff]
      %v1091 = vld [vmem:[%s224 + $0x78] sm:$0xff]
      %v1092 = vld [vmem:[%s224 + $0x80] sm:$0xff]
      %v1093 = vld [vmem:[%s224 + $0x88] sm:$0xff]
      %v1094 = vld [vmem:[%s224 + $0x90] sm:$0xff]
      %v1095 = vld [vmem:[#allocation3] sm:$0xff]
      %v1096 = vld [vmem:[#allocation3 + $0x8] sm:$0xff]
      %v1097 = vld [vmem:[#allocation3 + $0x10] sm:$0xff]
      %v1098 = vld [vmem:[#allocation3 + $0x18] sm:$0xff]
      %v1099 = vld [vmem:[#allocation3 + $0x20] sm:$0xff]
      %v1100 = vld [vmem:[#allocation3 + $0x28] sm:$0xff]
      %v1101 = vld [vmem:[#allocation3 + $0x30] sm:$0xff]
      %v1102 = vld [vmem:[#allocation3 + $0x38] sm:$0xff]
      %v1103 = vld [vmem:[#allocation3 + $0x40] sm:$0xff]
      %v1104 = vld [vmem:[#allocation3 + $0x48] sm:$0xff]
      %v1105 = vld [vmem:[#allocation3 + $0x50] sm:$0xff]
      %v1106 = vld [vmem:[#allocation3 + $0x58] sm:$0xff]
      %v1107 = vld [vmem:[#allocation3 + $0x60] sm:$0xff]
      %v1108 = vld [vmem:[#allocation3 + $0x68] sm:$0xff]
      %v1109 = vld [vmem:[#allocation3 + $0x70] sm:$0xff]
      %v1110 = vld [vmem:[#allocation3 + $0x78] sm:$0xff]
      %s1111 = scalar_lea.vmem %s1, 12
      %v1112 = vld [vmem:[%s1111] sm:$0xf]
      %v1130 = vrot.slane %v1077, 7
      %v1131 = vrot.slane %v1078, 7
      %v1132 = vsel %vm335, %v1130, %v1131
      %v1133 = vrot.slane %v1079, 7
      %v1134 = vsel %vm335, %v1131, %v1133
      %v1135 = vrot.slane %v1080, 7
      %v1136 = vsel %vm335, %v1133, %v1135
      %v1137 = vrot.slane %v1081, 7
      %v1138 = vsel %vm335, %v1135, %v1137
      %v1139 = vrot.slane %v1082, 7
      %v1140 = vsel %vm335, %v1137, %v1139
      %v1141 = vrot.slane %v1083, 7
      %v1142 = vsel %vm335, %v1139, %v1141
      %v1143 = vrot.slane %v1084, 7
      %v1144 = vsel %vm335, %v1141, %v1143
      %v1145 = vrot.slane %v1085, 7
      %v1146 = vsel %vm335, %v1143, %v1145
      %v1147 = vrot.slane %v1086, 7
      %v1148 = vsel %vm335, %v1145, %v1147
      %v1149 = vrot.slane %v1087, 7
      %v1150 = vsel %vm335, %v1147, %v1149
      %v1151 = vrot.slane %v1088, 7
      %v1152 = vsel %vm335, %v1149, %v1151
      %v1153 = vrot.slane %v1089, 7
      %v1154 = vsel %vm335, %v1151, %v1153
      %v1155 = vrot.slane %v1090, 7
      %v1156 = vsel %vm335, %v1153, %v1155
      %v1157 = vrot.slane %v1091, 7
      %v1158 = vsel %vm335, %v1155, %v1157
      %v1159 = vrot.slane %v1092, 7
      %v1160 = vsel %vm335, %v1157, %v1159
      %v1161 = vrot.slane %v1093, 7
      %v1162 = vsel %vm335, %v1159, %v1161
      %v1163 = vsel %vm202, %v1132, 0
      %v1165 = vsel %vm202, %v1134, 0
      %v1167 = vsel %vm202, %v1136, 0
      %v1169 = vsel %vm202, %v1138, 0
      %v1171 = vsel %vm202, %v1140, 0
      %v1173 = vsel %vm202, %v1142, 0
      %v1175 = vsel %vm202, %v1144, 0
      %v1177 = vsel %vm202, %v1146, 0
      %v1179 = vsel %vm202, %v1148, 0
      %v1181 = vsel %vm202, %v1150, 0
      %v1183 = vsel %vm202, %v1152, 0
      %v1185 = vsel %vm202, %v1154, 0
      %v1187 = vsel %vm202, %v1156, 0
      %v1189 = vsel %vm202, %v1158, 0
      %v1191 = vsel %vm202, %v1160, 0
      %v1193 = vsel %vm202, %v1162, 0
      %v1196 = vsel %vm401, %v1112, 0
      %1198 = vmatprep.subr.mxu0 0.0
      %1199 = vmatpush1.msra.mxu0 %v1196
      %1200 = vmatprep.subr.mxu0 0.0
      %1201 = vmatpush1.msra.mxu0 0.0
      %1202 = vmatprep.subr.mxu0 0.0
      %1203 = vmatpush1.msra.mxu0 0.0
      %1204 = vmatprep.subr.mxu0 0.0
      %1205 = vmatpush1.msra.mxu0 0.0
      %1206 = vmatprep.subr.mxu0 0.0
      %1207 = vmatpush1.msra.mxu0 0.0
      %1208 = vmatprep.subr.mxu0 0.0
      %1209 = vmatpush1.msra.mxu0 0.0
      %1210 = vmatprep.subr.mxu0 0.0
      %1211 = vmatpush1.msra.mxu0 0.0
      %1212 = vmatprep.subr.mxu0 0.0
      %1213 = vmatpush1.msra.mxu0 0.0
      %1214 = vmatprep.subr.mxu0 0.0
      %1215 = vmatpush1.msra.mxu0 0.0
      %1216 = vmatprep.subr.mxu0 0.0
      %1217 = vmatpush1.msra.mxu0 0.0
      %1218 = vmatprep.subr.mxu0 0.0
      %1219 = vmatpush1.msra.mxu0 0.0
      %1220 = vmatprep.subr.mxu0 0.0
      %1221 = vmatpush1.msra.mxu0 0.0
      %1222 = vmatprep.subr.mxu0 0.0
      %1223 = vmatpush1.msra.mxu0 0.0
      %1224 = vmatprep.subr.mxu0 0.0
      %1225 = vmatpush1.msra.mxu0 0.0
      %1226 = vmatprep.subr.mxu0 0.0
      %1227 = vmatpush1.msra.mxu0 0.0
      %1228 = vmatprep.subr.mxu0 0.0
      %1229 = vmatpush1.msra.mxu0 0.0
      %1230 = vmatprep.subr.mxu0 0.0
      %1231 = vmatpush1.msra.mxu0 0.0
      %1232 = vmatprep.subr.mxu0 0.0
      %1233 = vmatpush1.msra.mxu0 0.0
      %1234 = vmatprep.subr.mxu0 0.0
      %1235 = vmatpush1.msra.mxu0 0.0
      %1236 = vmatprep.subr.mxu0 0.0
      %1237 = vmatpush1.msra.mxu0 0.0
      %1238 = vmatprep.subr.mxu0 0.0
      %1239 = vmatpush1.msra.mxu0 0.0
      %1240 = vmatprep.subr.mxu0 0.0
      %1241 = vmatpush1.msra.mxu0 0.0
      %1242 = vmatprep.subr.mxu0 0.0
      %1243 = vmatpush1.msra.mxu0 0.0
      %1244 = vmatprep.subr.mxu0 0.0
      %1245 = vmatpush1.msra.mxu0 0.0
      %1246 = vmatprep.subr.mxu0 0.0
      %1247 = vmatpush1.msra.mxu0 0.0
      %1248 = vmatprep.subr.mxu0 0.0
      %1249 = vmatpush1.msra.mxu0 0.0
      %1250 = vmatprep.subr.mxu0 0.0
      %1251 = vmatpush1.msra.mxu0 0.0
      %1252 = vmatprep.subr.mxu0 0.0
      %1253 = vmatpush1.msra.mxu0 0.0
      %1254 = vmatprep.subr.mxu0 0.0
      %1255 = vmatpush1.msra.mxu0 0.0
      %1256 = vmatprep.subr.mxu0 0.0
      %1257 = vmatpush1.msra.mxu0 0.0
      %1258 = vmatprep.subr.mxu0 0.0
      %1259 = vmatpush1.msra.mxu0 0.0
      %1260 = vmatprep.subr.mxu0 0.0
      %1261 = vmatpush1.msra.mxu0 0.0
      %1262 = vmatprep.mubr.f32.mxu0 0.0
      %1263 = vmatmul.mubr.f32.gmra.mrb[0].mxu0 %v1163
      %v1264 = vpop.f32.mrb[0].mxu0
      %v1265 = vadd.f32 0.0, %v1264
      %v1266 = vpop.f32.mrb[0].mxu0
      %1267 = vmatprep.mubr.f32.mxu0 0.0
      %1268 = vmatmul.mubr.f32.gmra.mrb[0].mxu0 %v1165
      %v1269 = vpop.f32.mrb[0].mxu0
      %v1270 = vadd.f32 0.0, %v1269
      %v1271 = vpop.f32.mrb[0].mxu0
      %1272 = vmatprep.mubr.f32.mxu0 0.0
      %1273 = vmatmul.mubr.f32.gmra.mrb[0].mxu0 %v1167
      %v1274 = vpop.f32.mrb[0].mxu0
      %v1275 = vadd.f32 0.0, %v1274
      %v1276 = vpop.f32.mrb[0].mxu0
      %1277 = vmatprep.mubr.f32.mxu0 0.0
      %1278 = vmatmul.mubr.f32.gmra.mrb[0].mxu0 %v1169
      %v1279 = vpop.f32.mrb[0].mxu0
      %v1280 = vadd.f32 0.0, %v1279
      %v1281 = vpop.f32.mrb[0].mxu0
      %1282 = vmatprep.mubr.f32.mxu0 0.0
      %1283 = vmatmul.mubr.f32.gmra.mrb[0].mxu0 %v1171
      %v1284 = vpop.f32.mrb[0].mxu0
      %v1285 = vadd.f32 0.0, %v1284
      %v1286 = vpop.f32.mrb[0].mxu0
      %1287 = vmatprep.mubr.f32.mxu0 0.0
      %1288 = vmatmul.mubr.f32.gmra.mrb[0].mxu0 %v1173
      %v1289 = vpop.f32.mrb[0].mxu0
      %v1290 = vadd.f32 0.0, %v1289
      %v1291 = vpop.f32.mrb[0].mxu0
      %1292 = vmatprep.mubr.f32.mxu0 0.0
      %1293 = vmatmul.mubr.f32.gmra.mrb[0].mxu0 %v1175
      %v1294 = vpop.f32.mrb[0].mxu0
      %v1295 = vadd.f32 0.0, %v1294
      %v1296 = vpop.f32.mrb[0].mxu0
      %1297 = vmatprep.mubr.f32.mxu0 0.0
      %1298 = vmatmul.mubr.f32.gmra.mrb[0].mxu0 %v1177
      %v1299 = vpop.f32.mrb[0].mxu0
      %v1300 = vadd.f32 0.0, %v1299
      %v1301 = vpop.f32.mrb[0].mxu0
      %1302 = vmatprep.mubr.f32.mxu0 0.0
      %1303 = vmatmul.mubr.f32.gmra.mrb[0].mxu0 %v1179
      %v1304 = vpop.f32.mrb[0].mxu0
      %v1305 = vadd.f32 0.0, %v1304
      %v1306 = vpop.f32.mrb[0].mxu0
      %1307 = vmatprep.mubr.f32.mxu0 0.0
      %1308 = vmatmul.mubr.f32.gmra.mrb[0].mxu0 %v1181
      %v1309 = vpop.f32.mrb[0].mxu0
      %v1310 = vadd.f32 0.0, %v1309
      %v1311 = vpop.f32.mrb[0].mxu0
      %1312 = vmatprep.mubr.f32.mxu0 0.0
      %1313 = vmatmul.mubr.f32.gmra.mrb[0].mxu0 %v1183
      %v1314 = vpop.f32.mrb[0].mxu0
      %v1315 = vadd.f32 0.0, %v1314
      %v1316 = vpop.f32.mrb[0].mxu0
      %1317 = vmatprep.mubr.f32.mxu0 0.0
      %1318 = vmatmul.mubr.f32.gmra.mrb[0].mxu0 %v1185
      %v1319 = vpop.f32.mrb[0].mxu0
      %v1320 = vadd.f32 0.0, %v1319
      %v1321 = vpop.f32.mrb[0].mxu0
      %1322 = vmatprep.mubr.f32.mxu0 0.0
      %1323 = vmatmul.mubr.f32.gmra.mrb[0].mxu0 %v1187
      %v1324 = vpop.f32.mrb[0].mxu0
      %v1325 = vadd.f32 0.0, %v1324
      %v1326 = vpop.f32.mrb[0].mxu0
      %1327 = vmatprep.mubr.f32.mxu0 0.0
      %1328 = vmatmul.mubr.f32.gmra.mrb[0].mxu0 %v1189
      %v1329 = vpop.f32.mrb[0].mxu0
      %v1330 = vadd.f32 0.0, %v1329
      %v1331 = vpop.f32.mrb[0].mxu0
      %1332 = vmatprep.mubr.f32.mxu0 0.0
      %1333 = vmatmul.mubr.f32.gmra.mrb[0].mxu0 %v1191
      %v1334 = vpop.f32.mrb[0].mxu0
      %v1335 = vadd.f32 0.0, %v1334
      %v1336 = vpop.f32.mrb[0].mxu0
      %1337 = vmatprep.mubr.f32.mxu0 0.0
      %1338 = vmatmul.mubr.f32.gmra.mrb[0].mxu0 %v1193
      %v1339 = vpop.f32.mrb[0].mxu0
      %v1340 = vadd.f32 0.0, %v1339
      %v1341 = vpop.f32.mrb[0].mxu0
      %1342 = vdwg.mxu0
      %v1343 = vadd.f32 %v1095, %v1265
      %v1344 = vadd.f32 %v1096, %v1270
      %v1345 = vadd.f32 %v1097, %v1275
      %v1346 = vadd.f32 %v1098, %v1280
      %v1347 = vadd.f32 %v1099, %v1285
      %v1348 = vadd.f32 %v1100, %v1290
      %v1349 = vadd.f32 %v1101, %v1295
      %v1350 = vadd.f32 %v1102, %v1300
      %v1351 = vadd.f32 %v1103, %v1305
      %v1352 = vadd.f32 %v1104, %v1310
      %v1353 = vadd.f32 %v1105, %v1315
      %v1354 = vadd.f32 %v1106, %v1320
      %v1355 = vadd.f32 %v1107, %v1325
      %v1356 = vadd.f32 %v1108, %v1330
      %v1357 = vadd.f32 %v1109, %v1335
      %v1358 = vadd.f32 %v1110, %v1340
      %1359 = vst.msk [vmem:[#allocation3] sm:$0xff] %vm202, %v1343
      %1360 = vst.msk [vmem:[#allocation3 + $0x8] sm:$0xff] %vm202, %v1344
      %1361 = vst.msk [vmem:[#allocation3 + $0x10] sm:$0xff] %vm202, %v1345
      %1362 = vst.msk [vmem:[#allocation3 + $0x18] sm:$0xff] %vm202, %v1346
      %1363 = vst.msk [vmem:[#allocation3 + $0x20] sm:$0xff] %vm202, %v1347
      %1364 = vst.msk [vmem:[#allocation3 + $0x28] sm:$0xff] %vm202, %v1348
      %1365 = vst.msk [vmem:[#allocation3 + $0x30] sm:$0xff] %vm202, %v1349
      %1366 = vst.msk [vmem:[#allocation3 + $0x38] sm:$0xff] %vm202, %v1350
      %1367 = vst.msk [vmem:[#allocation3 + $0x40] sm:$0xff] %vm202, %v1351
      %1368 = vst.msk [vmem:[#allocation3 + $0x48] sm:$0xff] %vm202, %v1352
      %1369 = vst.msk [vmem:[#allocation3 + $0x50] sm:$0xff] %vm202, %v1353
      %1370 = vst.msk [vmem:[#allocation3 + $0x58] sm:$0xff] %vm202, %v1354
      %1371 = vst.msk [vmem:[#allocation3 + $0x60] sm:$0xff] %vm202, %v1355
      %1372 = vst.msk [vmem:[#allocation3 + $0x68] sm:$0xff] %vm202, %v1356
      %1373 = vst.msk [vmem:[#allocation3 + $0x70] sm:$0xff] %vm202, %v1357
      %1374 = vst.msk [vmem:[#allocation3 + $0x78] sm:$0xff] %vm202, %v1358
      %v1375 = vld [vmem:[#allocation3] sm:$0xff]
      %v1376 = vld [vmem:[#allocation3 + $0x8] sm:$0xff]
      %v1377 = vld [vmem:[#allocation3 + $0x10] sm:$0xff]
      %v1378 = vld [vmem:[#allocation3 + $0x18] sm:$0xff]
      %v1379 = vld [vmem:[#allocation3 + $0x20] sm:$0xff]
      %v1380 = vld [vmem:[#allocation3 + $0x28] sm:$0xff]
      %v1381 = vld [vmem:[#allocation3 + $0x30] sm:$0xff]
      %v1382 = vld [vmem:[#allocation3 + $0x38] sm:$0xff]
      %v1383 = vld [vmem:[#allocation3 + $0x40] sm:$0xff]
      %v1384 = vld [vmem:[#allocation3 + $0x48] sm:$0xff]
      %v1385 = vld [vmem:[#allocation3 + $0x50] sm:$0xff]
      %v1386 = vld [vmem:[#allocation3 + $0x58] sm:$0xff]
      %v1387 = vld [vmem:[#allocation3 + $0x60] sm:$0xff]
      %v1388 = vld [vmem:[#allocation3 + $0x68] sm:$0xff]
      %v1389 = vld [vmem:[#allocation3 + $0x70] sm:$0xff]
      %v1390 = vld [vmem:[#allocation3 + $0x78] sm:$0xff]
      %s1391 = scalar_lea.vmem %s1, 16
      %v1392 = vld [vmem:[%s1391] sm:$0xf]
      %v1393 = vsel %vm202, %v1078, 0
      %v1395 = vsel %vm202, %v1079, 0
      %v1397 = vsel %vm202, %v1080, 0
      %v1399 = vsel %vm202, %v1081, 0
      %v1401 = vsel %vm202, %v1082, 0
      %v1403 = vsel %vm202, %v1083, 0
      %v1405 = vsel %vm202, %v1084, 0
      %v1407 = vsel %vm202, %v1085, 0
      %v1409 = vsel %vm202, %v1086, 0
      %v1411 = vsel %vm202, %v1087, 0
      %v1413 = vsel %vm202, %v1088, 0
      %v1415 = vsel %vm202, %v1089, 0
      %v1417 = vsel %vm202, %v1090, 0
      %v1419 = vsel %vm202, %v1091, 0
      %v1421 = vsel %vm202, %v1092, 0
      %v1423 = vsel %vm202, %v1093, 0
      %v1426 = vsel %vm401, %v1392, 0
      %1428 = vmatprep.subr.mxu0 0.0
      %1429 = vmatpush1.msra.mxu0 %v1426
      %1430 = vmatprep.subr.mxu0 0.0
      %1431 = vmatpush1.msra.mxu0 0.0
      %1432 = vmatprep.subr.mxu0 0.0
      %1433 = vmatpush1.msra.mxu0 0.0
      %1434 = vmatprep.subr.mxu0 0.0
      %1435 = vmatpush1.msra.mxu0 0.0
      %1436 = vmatprep.subr.mxu0 0.0
      %1437 = vmatpush1.msra.mxu0 0.0
      %1438 = vmatprep.subr.mxu0 0.0
      %1439 = vmatpush1.msra.mxu0 0.0
      %1440 = vmatprep.subr.mxu0 0.0
      %1441 = vmatpush1.msra.mxu0 0.0
      %1442 = vmatprep.subr.mxu0 0.0
      %1443 = vmatpush1.msra.mxu0 0.0
      %1444 = vmatprep.subr.mxu0 0.0
      %1445 = vmatpush1.msra.mxu0 0.0
      %1446 = vmatprep.subr.mxu0 0.0
      %1447 = vmatpush1.msra.mxu0 0.0
      %1448 = vmatprep.subr.mxu0 0.0
      %1449 = vmatpush1.msra.mxu0 0.0
      %1450 = vmatprep.subr.mxu0 0.0
      %1451 = vmatpush1.msra.mxu0 0.0
      %1452 = vmatprep.subr.mxu0 0.0
      %1453 = vmatpush1.msra.mxu0 0.0
      %1454 = vmatprep.subr.mxu0 0.0
      %1455 = vmatpush1.msra.mxu0 0.0
      %1456 = vmatprep.subr.mxu0 0.0
      %1457 = vmatpush1.msra.mxu0 0.0
      %1458 = vmatprep.subr.mxu0 0.0
      %1459 = vmatpush1.msra.mxu0 0.0
      %1460 = vmatprep.subr.mxu0 0.0
      %1461 = vmatpush1.msra.mxu0 0.0
      %1462 = vmatprep.subr.mxu0 0.0
      %1463 = vmatpush1.msra.mxu0 0.0
      %1464 = vmatprep.subr.mxu0 0.0
      %1465 = vmatpush1.msra.mxu0 0.0
      %1466 = vmatprep.subr.mxu0 0.0
      %1467 = vmatpush1.msra.mxu0 0.0
      %1468 = vmatprep.subr.mxu0 0.0
      %1469 = vmatpush1.msra.mxu0 0.0
      %1470 = vmatprep.subr.mxu0 0.0
      %1471 = vmatpush1.msra.mxu0 0.0
      %1472 = vmatprep.subr.mxu0 0.0
      %1473 = vmatpush1.msra.mxu0 0.0
      %1474 = vmatprep.subr.mxu0 0.0
      %1475 = vmatpush1.msra.mxu0 0.0
      %1476 = vmatprep.subr.mxu0 0.0
      %1477 = vmatpush1.msra.mxu0 0.0
      %1478 = vmatprep.subr.mxu0 0.0
      %1479 = vmatpush1.msra.mxu0 0.0
      %1480 = vmatprep.subr.mxu0 0.0
      %1481 = vmatpush1.msra.mxu0 0.0
      %1482 = vmatprep.subr.mxu0 0.0
      %1483 = vmatpush1.msra.mxu0 0.0
      %1484 = vmatprep.subr.mxu0 0.0
      %1485 = vmatpush1.msra.mxu0 0.0
      %1486 = vmatprep.subr.mxu0 0.0
      %1487 = vmatpush1.msra.mxu0 0.0
      %1488 = vmatprep.subr.mxu0 0.0
      %1489 = vmatpush1.msra.mxu0 0.0
      %1490 = vmatprep.subr.mxu0 0.0
      %1491 = vmatpush1.msra.mxu0 0.0
      %1492 = vmatprep.mubr.f32.mxu0 0.0
      %1493 = vmatmul.mubr.f32.gmra.mrb[0].mxu0 %v1393
      %v1494 = vpop.f32.mrb[0].mxu0
      %v1495 = vadd.f32 0.0, %v1494
      %v1496 = vpop.f32.mrb[0].mxu0
      %1497 = vmatprep.mubr.f32.mxu0 0.0
      %1498 = vmatmul.mubr.f32.gmra.mrb[0].mxu0 %v1395
      %v1499 = vpop.f32.mrb[0].mxu0
      %v1500 = vadd.f32 0.0, %v1499
      %v1501 = vpop.f32.mrb[0].mxu0
      %1502 = vmatprep.mubr.f32.mxu0 0.0
      %1503 = vmatmul.mubr.f32.gmra.mrb[0].mxu0 %v1397
      %v1504 = vpop.f32.mrb[0].mxu0
      %v1505 = vadd.f32 0.0, %v1504
      %v1506 = vpop.f32.mrb[0].mxu0
      %1507 = vmatprep.mubr.f32.mxu0 0.0
      %1508 = vmatmul.mubr.f32.gmra.mrb[0].mxu0 %v1399
      %v1509 = vpop.f32.mrb[0].mxu0
      %v1510 = vadd.f32 0.0, %v1509
      %v1511 = vpop.f32.mrb[0].mxu0
      %1512 = vmatprep.mubr.f32.mxu0 0.0
      %1513 = vmatmul.mubr.f32.gmra.mrb[0].mxu0 %v1401
      %v1514 = vpop.f32.mrb[0].mxu0
      %v1515 = vadd.f32 0.0, %v1514
      %v1516 = vpop.f32.mrb[0].mxu0
      %1517 = vmatprep.mubr.f32.mxu0 0.0
      %1518 = vmatmul.mubr.f32.gmra.mrb[0].mxu0 %v1403
      %v1519 = vpop.f32.mrb[0].mxu0
      %v1520 = vadd.f32 0.0, %v1519
      %v1521 = vpop.f32.mrb[0].mxu0
      %1522 = vmatprep.mubr.f32.mxu0 0.0
      %1523 = vmatmul.mubr.f32.gmra.mrb[0].mxu0 %v1405
      %v1524 = vpop.f32.mrb[0].mxu0
      %v1525 = vadd.f32 0.0, %v1524
      %v1526 = vpop.f32.mrb[0].mxu0
      %1527 = vmatprep.mubr.f32.mxu0 0.0
      %1528 = vmatmul.mubr.f32.gmra.mrb[0].mxu0 %v1407
      %v1529 = vpop.f32.mrb[0].mxu0
      %v1530 = vadd.f32 0.0, %v1529
      %v1531 = vpop.f32.mrb[0].mxu0
      %1532 = vmatprep.mubr.f32.mxu0 0.0
      %1533 = vmatmul.mubr.f32.gmra.mrb[0].mxu0 %v1409
      %v1534 = vpop.f32.mrb[0].mxu0
      %v1535 = vadd.f32 0.0, %v1534
      %v1536 = vpop.f32.mrb[0].mxu0
      %1537 = vmatprep.mubr.f32.mxu0 0.0
      %1538 = vmatmul.mubr.f32.gmra.mrb[0].mxu0 %v1411
      %v1539 = vpop.f32.mrb[0].mxu0
      %v1540 = vadd.f32 0.0, %v1539
      %v1541 = vpop.f32.mrb[0].mxu0
      %1542 = vmatprep.mubr.f32.mxu0 0.0
      %1543 = vmatmul.mubr.f32.gmra.mrb[0].mxu0 %v1413
      %v1544 = vpop.f32.mrb[0].mxu0
      %v1545 = vadd.f32 0.0, %v1544
      %v1546 = vpop.f32.mrb[0].mxu0
      %1547 = vmatprep.mubr.f32.mxu0 0.0
      %1548 = vmatmul.mubr.f32.gmra.mrb[0].mxu0 %v1415
      %v1549 = vpop.f32.mrb[0].mxu0
      %v1550 = vadd.f32 0.0, %v1549
      %v1551 = vpop.f32.mrb[0].mxu0
      %1552 = vmatprep.mubr.f32.mxu0 0.0
      %1553 = vmatmul.mubr.f32.gmra.mrb[0].mxu0 %v1417
      %v1554 = vpop.f32.mrb[0].mxu0
      %v1555 = vadd.f32 0.0, %v1554
      %v1556 = vpop.f32.mrb[0].mxu0
      %1557 = vmatprep.mubr.f32.mxu0 0.0
      %1558 = vmatmul.mubr.f32.gmra.mrb[0].mxu0 %v1419
      %v1559 = vpop.f32.mrb[0].mxu0
      %v1560 = vadd.f32 0.0, %v1559
      %v1561 = vpop.f32.mrb[0].mxu0
      %1562 = vmatprep.mubr.f32.mxu0 0.0
      %1563 = vmatmul.mubr.f32.gmra.mrb[0].mxu0 %v1421
      %v1564 = vpop.f32.mrb[0].mxu0
      %v1565 = vadd.f32 0.0, %v1564
      %v1566 = vpop.f32.mrb[0].mxu0
      %1567 = vmatprep.mubr.f32.mxu0 0.0
      %1568 = vmatmul.mubr.f32.gmra.mrb[0].mxu0 %v1423
      %v1569 = vpop.f32.mrb[0].mxu0
      %v1570 = vadd.f32 0.0, %v1569
      %v1571 = vpop.f32.mrb[0].mxu0
      %1572 = vdwg.mxu0
      %v1573 = vadd.f32 %v1375, %v1495
      %v1574 = vadd.f32 %v1376, %v1500
      %v1575 = vadd.f32 %v1377, %v1505
      %v1576 = vadd.f32 %v1378, %v1510
      %v1577 = vadd.f32 %v1379, %v1515
      %v1578 = vadd.f32 %v1380, %v1520
      %v1579 = vadd.f32 %v1381, %v1525
      %v1580 = vadd.f32 %v1382, %v1530
      %v1581 = vadd.f32 %v1383, %v1535
      %v1582 = vadd.f32 %v1384, %v1540
      %v1583 = vadd.f32 %v1385, %v1545
      %v1584 = vadd.f32 %v1386, %v1550
      %v1585 = vadd.f32 %v1387, %v1555
      %v1586 = vadd.f32 %v1388, %v1560
      %v1587 = vadd.f32 %v1389, %v1565
      %v1588 = vadd.f32 %v1390, %v1570
      %1589 = vst.msk [vmem:[#allocation3] sm:$0xff] %vm202, %v1573
      %1590 = vst.msk [vmem:[#allocation3 + $0x8] sm:$0xff] %vm202, %v1574
      %1591 = vst.msk [vmem:[#allocation3 + $0x10] sm:$0xff] %vm202, %v1575
      %1592 = vst.msk [vmem:[#allocation3 + $0x18] sm:$0xff] %vm202, %v1576
      %1593 = vst.msk [vmem:[#allocation3 + $0x20] sm:$0xff] %vm202, %v1577
      %1594 = vst.msk [vmem:[#allocation3 + $0x28] sm:$0xff] %vm202, %v1578
      %1595 = vst.msk [vmem:[#allocation3 + $0x30] sm:$0xff] %vm202, %v1579
      %1596 = vst.msk [vmem:[#allocation3 + $0x38] sm:$0xff] %vm202, %v1580
      %1597 = vst.msk [vmem:[#allocation3 + $0x40] sm:$0xff] %vm202, %v1581
      %1598 = vst.msk [vmem:[#allocation3 + $0x48] sm:$0xff] %vm202, %v1582
      %1599 = vst.msk [vmem:[#allocation3 + $0x50] sm:$0xff] %vm202, %v1583
      %1600 = vst.msk [vmem:[#allocation3 + $0x58] sm:$0xff] %vm202, %v1584
      %1601 = vst.msk [vmem:[#allocation3 + $0x60] sm:$0xff] %vm202, %v1585
      %1602 = vst.msk [vmem:[#allocation3 + $0x68] sm:$0xff] %vm202, %v1586
      %1603 = vst.msk [vmem:[#allocation3 + $0x70] sm:$0xff] %vm202, %v1587
      %1604 = vst.msk [vmem:[#allocation3 + $0x78] sm:$0xff] %vm202, %v1588
      %v1605 = vld [vmem:[#allocation3] sm:$0xff]
      %v1606 = vld [vmem:[#allocation3 + $0x8] sm:$0xff]
      %v1607 = vld [vmem:[#allocation3 + $0x10] sm:$0xff]
      %v1608 = vld [vmem:[#allocation3 + $0x18] sm:$0xff]
      %v1609 = vld [vmem:[#allocation3 + $0x20] sm:$0xff]
      %v1610 = vld [vmem:[#allocation3 + $0x28] sm:$0xff]
      %v1611 = vld [vmem:[#allocation3 + $0x30] sm:$0xff]
      %v1612 = vld [vmem:[#allocation3 + $0x38] sm:$0xff]
      %v1613 = vld [vmem:[#allocation3 + $0x40] sm:$0xff]
      %v1614 = vld [vmem:[#allocation3 + $0x48] sm:$0xff]
      %v1615 = vld [vmem:[#allocation3 + $0x50] sm:$0xff]
      %v1616 = vld [vmem:[#allocation3 + $0x58] sm:$0xff]
      %v1617 = vld [vmem:[#allocation3 + $0x60] sm:$0xff]
      %v1618 = vld [vmem:[#allocation3 + $0x68] sm:$0xff]
      %v1619 = vld [vmem:[#allocation3 + $0x70] sm:$0xff]
      %v1620 = vld [vmem:[#allocation3 + $0x78] sm:$0xff]
      %s1621 = scalar_lea.vmem %s1, 20
      %v1622 = vld [vmem:[%s1621] sm:$0xf]
      %v1624 = vrot.slane %v1078, 1
      %v1625 = vrot.slane %v1079, 1
      %v1626 = vsel %vm831, %v1624, %v1625
      %v1627 = vrot.slane %v1080, 1
      %v1628 = vsel %vm831, %v1625, %v1627
      %v1629 = vrot.slane %v1081, 1
      %v1630 = vsel %vm831, %v1627, %v1629
      %v1631 = vrot.slane %v1082, 1
      %v1632 = vsel %vm831, %v1629, %v1631
      %v1633 = vrot.slane %v1083, 1
      %v1634 = vsel %vm831, %v1631, %v1633
      %v1635 = vrot.slane %v1084, 1
      %v1636 = vsel %vm831, %v1633, %v1635
      %v1637 = vrot.slane %v1085, 1
      %v1638 = vsel %vm831, %v1635, %v1637
      %v1639 = vrot.slane %v1086, 1
      %v1640 = vsel %vm831, %v1637, %v1639
      %v1641 = vrot.slane %v1087, 1
      %v1642 = vsel %vm831, %v1639, %v1641
      %v1643 = vrot.slane %v1088, 1
      %v1644 = vsel %vm831, %v1641, %v1643
      %v1645 = vrot.slane %v1089, 1
      %v1646 = vsel %vm831, %v1643, %v1645
      %v1647 = vrot.slane %v1090, 1
      %v1648 = vsel %vm831, %v1645, %v1647
      %v1649 = vrot.slane %v1091, 1
      %v1650 = vsel %vm831, %v1647, %v1649
      %v1651 = vrot.slane %v1092, 1
      %v1652 = vsel %vm831, %v1649, %v1651
      %v1653 = vrot.slane %v1093, 1
      %v1654 = vsel %vm831, %v1651, %v1653
      %v1655 = vrot.slane %v1094, 1
      %v1656 = vsel %vm831, %v1653, %v1655
      %v1657 = vsel %vm202, %v1626, 0
      %v1659 = vsel %vm202, %v1628, 0
      %v1661 = vsel %vm202, %v1630, 0
      %v1663 = vsel %vm202, %v1632, 0
      %v1665 = vsel %vm202, %v1634, 0
      %v1667 = vsel %vm202, %v1636, 0
      %v1669 = vsel %vm202, %v1638, 0
      %v1671 = vsel %vm202, %v1640, 0
      %v1673 = vsel %vm202, %v1642, 0
      %v1675 = vsel %vm202, %v1644, 0
      %v1677 = vsel %vm202, %v1646, 0
      %v1679 = vsel %vm202, %v1648, 0
      %v1681 = vsel %vm202, %v1650, 0
      %v1683 = vsel %vm202, %v1652, 0
      %v1685 = vsel %vm202, %v1654, 0
      %v1687 = vsel %vm202, %v1656, 0
      %v1690 = vsel %vm401, %v1622, 0
      %1692 = vmatprep.subr.mxu0 0.0
      %1693 = vmatpush1.msra.mxu0 %v1690
      %1694 = vmatprep.subr.mxu0 0.0
      %1695 = vmatpush1.msra.mxu0 0.0
      %1696 = vmatprep.subr.mxu0 0.0
      %1697 = vmatpush1.msra.mxu0 0.0
      %1698 = vmatprep.subr.mxu0 0.0
      %1699 = vmatpush1.msra.mxu0 0.0
      %1700 = vmatprep.subr.mxu0 0.0
      %1701 = vmatpush1.msra.mxu0 0.0
      %1702 = vmatprep.subr.mxu0 0.0
      %1703 = vmatpush1.msra.mxu0 0.0
      %1704 = vmatprep.subr.mxu0 0.0
      %1705 = vmatpush1.msra.mxu0 0.0
      %1706 = vmatprep.subr.mxu0 0.0
      %1707 = vmatpush1.msra.mxu0 0.0
      %1708 = vmatprep.subr.mxu0 0.0
      %1709 = vmatpush1.msra.mxu0 0.0
      %1710 = vmatprep.subr.mxu0 0.0
      %1711 = vmatpush1.msra.mxu0 0.0
      %1712 = vmatprep.subr.mxu0 0.0
      %1713 = vmatpush1.msra.mxu0 0.0
      %1714 = vmatprep.subr.mxu0 0.0
      %1715 = vmatpush1.msra.mxu0 0.0
      %1716 = vmatprep.subr.mxu0 0.0
      %1717 = vmatpush1.msra.mxu0 0.0
      %1718 = vmatprep.subr.mxu0 0.0
      %1719 = vmatpush1.msra.mxu0 0.0
      %1720 = vmatprep.subr.mxu0 0.0
      %1721 = vmatpush1.msra.mxu0 0.0
      %1722 = vmatprep.subr.mxu0 0.0
      %1723 = vmatpush1.msra.mxu0 0.0
      %1724 = vmatprep.subr.mxu0 0.0
      %1725 = vmatpush1.msra.mxu0 0.0
      %1726 = vmatprep.subr.mxu0 0.0
      %1727 = vmatpush1.msra.mxu0 0.0
      %1728 = vmatprep.subr.mxu0 0.0
      %1729 = vmatpush1.msra.mxu0 0.0
      %1730 = vmatprep.subr.mxu0 0.0
      %1731 = vmatpush1.msra.mxu0 0.0
      %1732 = vmatprep.subr.mxu0 0.0
      %1733 = vmatpush1.msra.mxu0 0.0
      %1734 = vmatprep.subr.mxu0 0.0
      %1735 = vmatpush1.msra.mxu0 0.0
      %1736 = vmatprep.subr.mxu0 0.0
      %1737 = vmatpush1.msra.mxu0 0.0
      %1738 = vmatprep.subr.mxu0 0.0
      %1739 = vmatpush1.msra.mxu0 0.0
      %1740 = vmatprep.subr.mxu0 0.0
      %1741 = vmatpush1.msra.mxu0 0.0
      %1742 = vmatprep.subr.mxu0 0.0
      %1743 = vmatpush1.msra.mxu0 0.0
      %1744 = vmatprep.subr.mxu0 0.0
      %1745 = vmatpush1.msra.mxu0 0.0
      %1746 = vmatprep.subr.mxu0 0.0
      %1747 = vmatpush1.msra.mxu0 0.0
      %1748 = vmatprep.subr.mxu0 0.0
      %1749 = vmatpush1.msra.mxu0 0.0
      %1750 = vmatprep.subr.mxu0 0.0
      %1751 = vmatpush1.msra.mxu0 0.0
      %1752 = vmatprep.subr.mxu0 0.0
      %1753 = vmatpush1.msra.mxu0 0.0
      %1754 = vmatprep.subr.mxu0 0.0
      %1755 = vmatpush1.msra.mxu0 0.0
      %1756 = vmatprep.mubr.f32.mxu0 0.0
      %1757 = vmatmul.mubr.f32.gmra.mrb[0].mxu0 %v1657
      %v1758 = vpop.f32.mrb[0].mxu0
      %v1759 = vadd.f32 0.0, %v1758
      %v1760 = vpop.f32.mrb[0].mxu0
      %1761 = vmatprep.mubr.f32.mxu0 0.0
      %1762 = vmatmul.mubr.f32.gmra.mrb[0].mxu0 %v1659
      %v1763 = vpop.f32.mrb[0].mxu0
      %v1764 = vadd.f32 0.0, %v1763
      %v1765 = vpop.f32.mrb[0].mxu0
      %1766 = vmatprep.mubr.f32.mxu0 0.0
      %1767 = vmatmul.mubr.f32.gmra.mrb[0].mxu0 %v1661
      %v1768 = vpop.f32.mrb[0].mxu0
      %v1769 = vadd.f32 0.0, %v1768
      %v1770 = vpop.f32.mrb[0].mxu0
      %1771 = vmatprep.mubr.f32.mxu0 0.0
      %1772 = vmatmul.mubr.f32.gmra.mrb[0].mxu0 %v1663
      %v1773 = vpop.f32.mrb[0].mxu0
      %v1774 = vadd.f32 0.0, %v1773
      %v1775 = vpop.f32.mrb[0].mxu0
      %1776 = vmatprep.mubr.f32.mxu0 0.0
      %1777 = vmatmul.mubr.f32.gmra.mrb[0].mxu0 %v1665
      %v1778 = vpop.f32.mrb[0].mxu0
      %v1779 = vadd.f32 0.0, %v1778
      %v1780 = vpop.f32.mrb[0].mxu0
      %1781 = vmatprep.mubr.f32.mxu0 0.0
      %1782 = vmatmul.mubr.f32.gmra.mrb[0].mxu0 %v1667
      %v1783 = vpop.f32.mrb[0].mxu0
      %v1784 = vadd.f32 0.0, %v1783
      %v1785 = vpop.f32.mrb[0].mxu0
      %1786 = vmatprep.mubr.f32.mxu0 0.0
      %1787 = vmatmul.mubr.f32.gmra.mrb[0].mxu0 %v1669
      %v1788 = vpop.f32.mrb[0].mxu0
      %v1789 = vadd.f32 0.0, %v1788
      %v1790 = vpop.f32.mrb[0].mxu0
      %1791 = vmatprep.mubr.f32.mxu0 0.0
      %1792 = vmatmul.mubr.f32.gmra.mrb[0].mxu0 %v1671
      %v1793 = vpop.f32.mrb[0].mxu0
      %v1794 = vadd.f32 0.0, %v1793
      %v1795 = vpop.f32.mrb[0].mxu0
      %1796 = vmatprep.mubr.f32.mxu0 0.0
      %1797 = vmatmul.mubr.f32.gmra.mrb[0].mxu0 %v1673
      %v1798 = vpop.f32.mrb[0].mxu0
      %v1799 = vadd.f32 0.0, %v1798
      %v1800 = vpop.f32.mrb[0].mxu0
      %1801 = vmatprep.mubr.f32.mxu0 0.0
      %1802 = vmatmul.mubr.f32.gmra.mrb[0].mxu0 %v1675
      %v1803 = vpop.f32.mrb[0].mxu0
      %v1804 = vadd.f32 0.0, %v1803
      %v1805 = vpop.f32.mrb[0].mxu0
      %1806 = vmatprep.mubr.f32.mxu0 0.0
      %1807 = vmatmul.mubr.f32.gmra.mrb[0].mxu0 %v1677
      %v1808 = vpop.f32.mrb[0].mxu0
      %v1809 = vadd.f32 0.0, %v1808
      %v1810 = vpop.f32.mrb[0].mxu0
      %1811 = vmatprep.mubr.f32.mxu0 0.0
      %1812 = vmatmul.mubr.f32.gmra.mrb[0].mxu0 %v1679
      %v1813 = vpop.f32.mrb[0].mxu0
      %v1814 = vadd.f32 0.0, %v1813
      %v1815 = vpop.f32.mrb[0].mxu0
      %1816 = vmatprep.mubr.f32.mxu0 0.0
      %1817 = vmatmul.mubr.f32.gmra.mrb[0].mxu0 %v1681
      %v1818 = vpop.f32.mrb[0].mxu0
      %v1819 = vadd.f32 0.0, %v1818
      %v1820 = vpop.f32.mrb[0].mxu0
      %1821 = vmatprep.mubr.f32.mxu0 0.0
      %1822 = vmatmul.mubr.f32.gmra.mrb[0].mxu0 %v1683
      %v1823 = vpop.f32.mrb[0].mxu0
      %v1824 = vadd.f32 0.0, %v1823
      %v1825 = vpop.f32.mrb[0].mxu0
      %1826 = vmatprep.mubr.f32.mxu0 0.0
      %1827 = vmatmul.mubr.f32.gmra.mrb[0].mxu0 %v1685
      %v1828 = vpop.f32.mrb[0].mxu0
      %v1829 = vadd.f32 0.0, %v1828
      %v1830 = vpop.f32.mrb[0].mxu0
      %1831 = vmatprep.mubr.f32.mxu0 0.0
      %1832 = vmatmul.mubr.f32.gmra.mrb[0].mxu0 %v1687
      %v1833 = vpop.f32.mrb[0].mxu0
      %v1834 = vadd.f32 0.0, %v1833
      %v1835 = vpop.f32.mrb[0].mxu0
      %1836 = vdwg.mxu0
      %v1837 = vadd.f32 %v1605, %v1759
      %v1838 = vadd.f32 %v1606, %v1764
      %v1839 = vadd.f32 %v1607, %v1769
      %v1840 = vadd.f32 %v1608, %v1774
      %v1841 = vadd.f32 %v1609, %v1779
      %v1842 = vadd.f32 %v1610, %v1784
      %v1843 = vadd.f32 %v1611, %v1789
      %v1844 = vadd.f32 %v1612, %v1794
      %v1845 = vadd.f32 %v1613, %v1799
      %v1846 = vadd.f32 %v1614, %v1804
      %v1847 = vadd.f32 %v1615, %v1809
      %v1848 = vadd.f32 %v1616, %v1814
      %v1849 = vadd.f32 %v1617, %v1819
      %v1850 = vadd.f32 %v1618, %v1824
      %v1851 = vadd.f32 %v1619, %v1829
      %v1852 = vadd.f32 %v1620, %v1834
      %1853 = vst.msk [vmem:[#allocation3] sm:$0xff] %vm202, %v1837
      %1854 = vst.msk [vmem:[#allocation3 + $0x8] sm:$0xff] %vm202, %v1838
      %1855 = vst.msk [vmem:[#allocation3 + $0x10] sm:$0xff] %vm202, %v1839
      %1856 = vst.msk [vmem:[#allocation3 + $0x18] sm:$0xff] %vm202, %v1840
      %1857 = vst.msk [vmem:[#allocation3 + $0x20] sm:$0xff] %vm202, %v1841
      %1858 = vst.msk [vmem:[#allocation3 + $0x28] sm:$0xff] %vm202, %v1842
      %1859 = vst.msk [vmem:[#allocation3 + $0x30] sm:$0xff] %vm202, %v1843
      %1860 = vst.msk [vmem:[#allocation3 + $0x38] sm:$0xff] %vm202, %v1844
      %1861 = vst.msk [vmem:[#allocation3 + $0x40] sm:$0xff] %vm202, %v1845
      %1862 = vst.msk [vmem:[#allocation3 + $0x48] sm:$0xff] %vm202, %v1846
      %1863 = vst.msk [vmem:[#allocation3 + $0x50] sm:$0xff] %vm202, %v1847
      %1864 = vst.msk [vmem:[#allocation3 + $0x58] sm:$0xff] %vm202, %v1848
      %1865 = vst.msk [vmem:[#allocation3 + $0x60] sm:$0xff] %vm202, %v1849
      %1866 = vst.msk [vmem:[#allocation3 + $0x68] sm:$0xff] %vm202, %v1850
      %1867 = vst.msk [vmem:[#allocation3 + $0x70] sm:$0xff] %vm202, %v1851
      %1868 = vst.msk [vmem:[#allocation3 + $0x78] sm:$0xff] %vm202, %v1852
      %v1869 = vld [vmem:[%s245 + $0x8] sm:$0xff]
      %v1870 = vld [vmem:[%s245 + $0x10] sm:$0xff]
      %v1871 = vld [vmem:[%s245 + $0x18] sm:$0xff]
      %v1872 = vld [vmem:[%s245 + $0x20] sm:$0xff]
      %v1873 = vld [vmem:[%s245 + $0x28] sm:$0xff]
      %v1874 = vld [vmem:[%s245 + $0x30] sm:$0xff]
      %v1875 = vld [vmem:[%s245 + $0x38] sm:$0xff]
      %v1876 = vld [vmem:[%s245 + $0x40] sm:$0xff]
      %v1877 = vld [vmem:[%s245 + $0x48] sm:$0xff]
      %v1878 = vld [vmem:[%s245 + $0x50] sm:$0xff]
      %v1879 = vld [vmem:[%s245 + $0x58] sm:$0xff]
      %v1880 = vld [vmem:[%s245 + $0x60] sm:$0xff]
      %v1881 = vld [vmem:[%s245 + $0x68] sm:$0xff]
      %v1882 = vld [vmem:[%s245 + $0x70] sm:$0xff]
      %v1883 = vld [vmem:[%s245 + $0x78] sm:$0xff]
      %v1884 = vld [vmem:[%s245 + $0x80] sm:$0xff]
      %v1885 = vld [vmem:[%s245 + $0x88] sm:$0xff]
      %v1886 = vld [vmem:[%s245 + $0x90] sm:$0xff]
      %v1887 = vld [vmem:[#allocation3] sm:$0xff]
      %v1888 = vld [vmem:[#allocation3 + $0x8] sm:$0xff]
      %v1889 = vld [vmem:[#allocation3 + $0x10] sm:$0xff]
      %v1890 = vld [vmem:[#allocation3 + $0x18] sm:$0xff]
      %v1891 = vld [vmem:[#allocation3 + $0x20] sm:$0xff]
      %v1892 = vld [vmem:[#allocation3 + $0x28] sm:$0xff]
      %v1893 = vld [vmem:[#allocation3 + $0x30] sm:$0xff]
      %v1894 = vld [vmem:[#allocation3 + $0x38] sm:$0xff]
      %v1895 = vld [vmem:[#allocation3 + $0x40] sm:$0xff]
      %v1896 = vld [vmem:[#allocation3 + $0x48] sm:$0xff]
      %v1897 = vld [vmem:[#allocation3 + $0x50] sm:$0xff]
      %v1898 = vld [vmem:[#allocation3 + $0x58] sm:$0xff]
      %v1899 = vld [vmem:[#allocation3 + $0x60] sm:$0xff]
      %v1900 = vld [vmem:[#allocation3 + $0x68] sm:$0xff]
      %v1901 = vld [vmem:[#allocation3 + $0x70] sm:$0xff]
      %v1902 = vld [vmem:[#allocation3 + $0x78] sm:$0xff]
      %s1903 = scalar_lea.vmem %s1, 24
      %v1904 = vld [vmem:[%s1903] sm:$0xf]
      %v1922 = vrot.slane %v1869, 7
      %v1923 = vrot.slane %v1870, 7
      %v1924 = vsel %vm335, %v1922, %v1923
      %v1925 = vrot.slane %v1871, 7
      %v1926 = vsel %vm335, %v1923, %v1925
      %v1927 = vrot.slane %v1872, 7
      %v1928 = vsel %vm335, %v1925, %v1927
      %v1929 = vrot.slane %v1873, 7
      %v1930 = vsel %vm335, %v1927, %v1929
      %v1931 = vrot.slane %v1874, 7
      %v1932 = vsel %vm335, %v1929, %v1931
      %v1933 = vrot.slane %v1875, 7
      %v1934 = vsel %vm335, %v1931, %v1933
      %v1935 = vrot.slane %v1876, 7
      %v1936 = vsel %vm335, %v1933, %v1935
      %v1937 = vrot.slane %v1877, 7
      %v1938 = vsel %vm335, %v1935, %v1937
      %v1939 = vrot.slane %v1878, 7
      %v1940 = vsel %vm335, %v1937, %v1939
      %v1941 = vrot.slane %v1879, 7
      %v1942 = vsel %vm335, %v1939, %v1941
      %v1943 = vrot.slane %v1880, 7
      %v1944 = vsel %vm335, %v1941, %v1943
      %v1945 = vrot.slane %v1881, 7
      %v1946 = vsel %vm335, %v1943, %v1945
      %v1947 = vrot.slane %v1882, 7
      %v1948 = vsel %vm335, %v1945, %v1947
      %v1949 = vrot.slane %v1883, 7
      %v1950 = vsel %vm335, %v1947, %v1949
      %v1951 = vrot.slane %v1884, 7
      %v1952 = vsel %vm335, %v1949, %v1951
      %v1953 = vrot.slane %v1885, 7
      %v1954 = vsel %vm335, %v1951, %v1953
      %v1955 = vsel %vm202, %v1924, 0
      %v1957 = vsel %vm202, %v1926, 0
      %v1959 = vsel %vm202, %v1928, 0
      %v1961 = vsel %vm202, %v1930, 0
      %v1963 = vsel %vm202, %v1932, 0
      %v1965 = vsel %vm202, %v1934, 0
      %v1967 = vsel %vm202, %v1936, 0
      %v1969 = vsel %vm202, %v1938, 0
      %v1971 = vsel %vm202, %v1940, 0
      %v1973 = vsel %vm202, %v1942, 0
      %v1975 = vsel %vm202, %v1944, 0
      %v1977 = vsel %vm202, %v1946, 0
      %v1979 = vsel %vm202, %v1948, 0
      %v1981 = vsel %vm202, %v1950, 0
      %v1983 = vsel %vm202, %v1952, 0
      %v1985 = vsel %vm202, %v1954, 0
      %v1988 = vsel %vm401, %v1904, 0
      %1990 = vmatprep.subr.mxu0 0.0
      %1991 = vmatpush1.msra.mxu0 %v1988
      %1992 = vmatprep.subr.mxu0 0.0
      %1993 = vmatpush1.msra.mxu0 0.0
      %1994 = vmatprep.subr.mxu0 0.0
      %1995 = vmatpush1.msra.mxu0 0.0
      %1996 = vmatprep.subr.mxu0 0.0
      %1997 = vmatpush1.msra.mxu0 0.0
      %1998 = vmatprep.subr.mxu0 0.0
      %1999 = vmatpush1.msra.mxu0 0.0
      %2000 = vmatprep.subr.mxu0 0.0
      %2001 = vmatpush1.msra.mxu0 0.0
      %2002 = vmatprep.subr.mxu0 0.0
      %2003 = vmatpush1.msra.mxu0 0.0
      %2004 = vmatprep.subr.mxu0 0.0
      %2005 = vmatpush1.msra.mxu0 0.0
      %2006 = vmatprep.subr.mxu0 0.0
      %2007 = vmatpush1.msra.mxu0 0.0
      %2008 = vmatprep.subr.mxu0 0.0
      %2009 = vmatpush1.msra.mxu0 0.0
      %2010 = vmatprep.subr.mxu0 0.0
      %2011 = vmatpush1.msra.mxu0 0.0
      %2012 = vmatprep.subr.mxu0 0.0
      %2013 = vmatpush1.msra.mxu0 0.0
      %2014 = vmatprep.subr.mxu0 0.0
      %2015 = vmatpush1.msra.mxu0 0.0
      %2016 = vmatprep.subr.mxu0 0.0
      %2017 = vmatpush1.msra.mxu0 0.0
      %2018 = vmatprep.subr.mxu0 0.0
      %2019 = vmatpush1.msra.mxu0 0.0
      %2020 = vmatprep.subr.mxu0 0.0
      %2021 = vmatpush1.msra.mxu0 0.0
      %2022 = vmatprep.subr.mxu0 0.0
      %2023 = vmatpush1.msra.mxu0 0.0
      %2024 = vmatprep.subr.mxu0 0.0
      %2025 = vmatpush1.msra.mxu0 0.0
      %2026 = vmatprep.subr.mxu0 0.0
      %2027 = vmatpush1.msra.mxu0 0.0
      %2028 = vmatprep.subr.mxu0 0.0
      %2029 = vmatpush1.msra.mxu0 0.0
      %2030 = vmatprep.subr.mxu0 0.0
      %2031 = vmatpush1.msra.mxu0 0.0
      %2032 = vmatprep.subr.mxu0 0.0
      %2033 = vmatpush1.msra.mxu0 0.0
      %2034 = vmatprep.subr.mxu0 0.0
      %2035 = vmatpush1.msra.mxu0 0.0
      %2036 = vmatprep.subr.mxu0 0.0
      %2037 = vmatpush1.msra.mxu0 0.0
      %2038 = vmatprep.subr.mxu0 0.0
      %2039 = vmatpush1.msra.mxu0 0.0
      %2040 = vmatprep.subr.mxu0 0.0
      %2041 = vmatpush1.msra.mxu0 0.0
      %2042 = vmatprep.subr.mxu0 0.0
      %2043 = vmatpush1.msra.mxu0 0.0
      %2044 = vmatprep.subr.mxu0 0.0
      %2045 = vmatpush1.msra.mxu0 0.0
      %2046 = vmatprep.subr.mxu0 0.0
      %2047 = vmatpush1.msra.mxu0 0.0
      %2048 = vmatprep.subr.mxu0 0.0
      %2049 = vmatpush1.msra.mxu0 0.0
      %2050 = vmatprep.subr.mxu0 0.0
      %2051 = vmatpush1.msra.mxu0 0.0
      %2052 = vmatprep.subr.mxu0 0.0
      %2053 = vmatpush1.msra.mxu0 0.0
      %2054 = vmatprep.mubr.f32.mxu0 0.0
      %2055 = vmatmul.mubr.f32.gmra.mrb[0].mxu0 %v1955
      %v2056 = vpop.f32.mrb[0].mxu0
      %v2057 = vadd.f32 0.0, %v2056
      %v2058 = vpop.f32.mrb[0].mxu0
      %2059 = vmatprep.mubr.f32.mxu0 0.0
      %2060 = vmatmul.mubr.f32.gmra.mrb[0].mxu0 %v1957
      %v2061 = vpop.f32.mrb[0].mxu0
      %v2062 = vadd.f32 0.0, %v2061
      %v2063 = vpop.f32.mrb[0].mxu0
      %2064 = vmatprep.mubr.f32.mxu0 0.0
      %2065 = vmatmul.mubr.f32.gmra.mrb[0].mxu0 %v1959
      %v2066 = vpop.f32.mrb[0].mxu0
      %v2067 = vadd.f32 0.0, %v2066
      %v2068 = vpop.f32.mrb[0].mxu0
      %2069 = vmatprep.mubr.f32.mxu0 0.0
      %2070 = vmatmul.mubr.f32.gmra.mrb[0].mxu0 %v1961
      %v2071 = vpop.f32.mrb[0].mxu0
      %v2072 = vadd.f32 0.0, %v2071
      %v2073 = vpop.f32.mrb[0].mxu0
      %2074 = vmatprep.mubr.f32.mxu0 0.0
      %2075 = vmatmul.mubr.f32.gmra.mrb[0].mxu0 %v1963
      %v2076 = vpop.f32.mrb[0].mxu0
      %v2077 = vadd.f32 0.0, %v2076
      %v2078 = vpop.f32.mrb[0].mxu0
      %2079 = vmatprep.mubr.f32.mxu0 0.0
      %2080 = vmatmul.mubr.f32.gmra.mrb[0].mxu0 %v1965
      %v2081 = vpop.f32.mrb[0].mxu0
      %v2082 = vadd.f32 0.0, %v2081
      %v2083 = vpop.f32.mrb[0].mxu0
      %2084 = vmatprep.mubr.f32.mxu0 0.0
      %2085 = vmatmul.mubr.f32.gmra.mrb[0].mxu0 %v1967
      %v2086 = vpop.f32.mrb[0].mxu0
      %v2087 = vadd.f32 0.0, %v2086
      %v2088 = vpop.f32.mrb[0].mxu0
      %2089 = vmatprep.mubr.f32.mxu0 0.0
      %2090 = vmatmul.mubr.f32.gmra.mrb[0].mxu0 %v1969
      %v2091 = vpop.f32.mrb[0].mxu0
      %v2092 = vadd.f32 0.0, %v2091
      %v2093 = vpop.f32.mrb[0].mxu0
      %2094 = vmatprep.mubr.f32.mxu0 0.0
      %2095 = vmatmul.mubr.f32.gmra.mrb[0].mxu0 %v1971
      %v2096 = vpop.f32.mrb[0].mxu0
      %v2097 = vadd.f32 0.0, %v2096
      %v2098 = vpop.f32.mrb[0].mxu0
      %2099 = vmatprep.mubr.f32.mxu0 0.0
      %2100 = vmatmul.mubr.f32.gmra.mrb[0].mxu0 %v1973
      %v2101 = vpop.f32.mrb[0].mxu0
      %v2102 = vadd.f32 0.0, %v2101
      %v2103 = vpop.f32.mrb[0].mxu0
      %2104 = vmatprep.mubr.f32.mxu0 0.0
      %2105 = vmatmul.mubr.f32.gmra.mrb[0].mxu0 %v1975
      %v2106 = vpop.f32.mrb[0].mxu0
      %v2107 = vadd.f32 0.0, %v2106
      %v2108 = vpop.f32.mrb[0].mxu0
      %2109 = vmatprep.mubr.f32.mxu0 0.0
      %2110 = vmatmul.mubr.f32.gmra.mrb[0].mxu0 %v1977
      %v2111 = vpop.f32.mrb[0].mxu0
      %v2112 = vadd.f32 0.0, %v2111
      %v2113 = vpop.f32.mrb[0].mxu0
      %2114 = vmatprep.mubr.f32.mxu0 0.0
      %2115 = vmatmul.mubr.f32.gmra.mrb[0].mxu0 %v1979
      %v2116 = vpop.f32.mrb[0].mxu0
      %v2117 = vadd.f32 0.0, %v2116
      %v2118 = vpop.f32.mrb[0].mxu0
      %2119 = vmatprep.mubr.f32.mxu0 0.0
      %2120 = vmatmul.mubr.f32.gmra.mrb[0].mxu0 %v1981
      %v2121 = vpop.f32.mrb[0].mxu0
      %v2122 = vadd.f32 0.0, %v2121
      %v2123 = vpop.f32.mrb[0].mxu0
      %2124 = vmatprep.mubr.f32.mxu0 0.0
      %2125 = vmatmul.mubr.f32.gmra.mrb[0].mxu0 %v1983
      %v2126 = vpop.f32.mrb[0].mxu0
      %v2127 = vadd.f32 0.0, %v2126
      %v2128 = vpop.f32.mrb[0].mxu0
      %2129 = vmatprep.mubr.f32.mxu0 0.0
      %2130 = vmatmul.mubr.f32.gmra.mrb[0].mxu0 %v1985
      %v2131 = vpop.f32.mrb[0].mxu0
      %v2132 = vadd.f32 0.0, %v2131
      %v2133 = vpop.f32.mrb[0].mxu0
      %2134 = vdwg.mxu0
      %v2135 = vadd.f32 %v1887, %v2057
      %v2136 = vadd.f32 %v1888, %v2062
      %v2137 = vadd.f32 %v1889, %v2067
      %v2138 = vadd.f32 %v1890, %v2072
      %v2139 = vadd.f32 %v1891, %v2077
      %v2140 = vadd.f32 %v1892, %v2082
      %v2141 = vadd.f32 %v1893, %v2087
      %v2142 = vadd.f32 %v1894, %v2092
      %v2143 = vadd.f32 %v1895, %v2097
      %v2144 = vadd.f32 %v1896, %v2102
      %v2145 = vadd.f32 %v1897, %v2107
      %v2146 = vadd.f32 %v1898, %v2112
      %v2147 = vadd.f32 %v1899, %v2117
      %v2148 = vadd.f32 %v1900, %v2122
      %v2149 = vadd.f32 %v1901, %v2127
      %v2150 = vadd.f32 %v1902, %v2132
      %2151 = vst.msk [vmem:[#allocation3] sm:$0xff] %vm202, %v2135
      %2152 = vst.msk [vmem:[#allocation3 + $0x8] sm:$0xff] %vm202, %v2136
      %2153 = vst.msk [vmem:[#allocation3 + $0x10] sm:$0xff] %vm202, %v2137
      %2154 = vst.msk [vmem:[#allocation3 + $0x18] sm:$0xff] %vm202, %v2138
      %2155 = vst.msk [vmem:[#allocation3 + $0x20] sm:$0xff] %vm202, %v2139
      %2156 = vst.msk [vmem:[#allocation3 + $0x28] sm:$0xff] %vm202, %v2140
      %2157 = vst.msk [vmem:[#allocation3 + $0x30] sm:$0xff] %vm202, %v2141
      %2158 = vst.msk [vmem:[#allocation3 + $0x38] sm:$0xff] %vm202, %v2142
      %2159 = vst.msk [vmem:[#allocation3 + $0x40] sm:$0xff] %vm202, %v2143
      %2160 = vst.msk [vmem:[#allocation3 + $0x48] sm:$0xff] %vm202, %v2144
      %2161 = vst.msk [vmem:[#allocation3 + $0x50] sm:$0xff] %vm202, %v2145
      %2162 = vst.msk [vmem:[#allocation3 + $0x58] sm:$0xff] %vm202, %v2146
      %2163 = vst.msk [vmem:[#allocation3 + $0x60] sm:$0xff] %vm202, %v2147
      %2164 = vst.msk [vmem:[#allocation3 + $0x68] sm:$0xff] %vm202, %v2148
      %2165 = vst.msk [vmem:[#allocation3 + $0x70] sm:$0xff] %vm202, %v2149
      %2166 = vst.msk [vmem:[#allocation3 + $0x78] sm:$0xff] %vm202, %v2150
      %v2167 = vld [vmem:[#allocation3] sm:$0xff]
      %v2168 = vld [vmem:[#allocation3 + $0x8] sm:$0xff]
      %v2169 = vld [vmem:[#allocation3 + $0x10] sm:$0xff]
      %v2170 = vld [vmem:[#allocation3 + $0x18] sm:$0xff]
      %v2171 = vld [vmem:[#allocation3 + $0x20] sm:$0xff]
      %v2172 = vld [vmem:[#allocation3 + $0x28] sm:$0xff]
      %v2173 = vld [vmem:[#allocation3 + $0x30] sm:$0xff]
      %v2174 = vld [vmem:[#allocation3 + $0x38] sm:$0xff]
      %v2175 = vld [vmem:[#allocation3 + $0x40] sm:$0xff]
      %v2176 = vld [vmem:[#allocation3 + $0x48] sm:$0xff]
      %v2177 = vld [vmem:[#allocation3 + $0x50] sm:$0xff]
      %v2178 = vld [vmem:[#allocation3 + $0x58] sm:$0xff]
      %v2179 = vld [vmem:[#allocation3 + $0x60] sm:$0xff]
      %v2180 = vld [vmem:[#allocation3 + $0x68] sm:$0xff]
      %v2181 = vld [vmem:[#allocation3 + $0x70] sm:$0xff]
      %v2182 = vld [vmem:[#allocation3 + $0x78] sm:$0xff]
      %s2183 = scalar_lea.vmem %s1, 28
      %v2184 = vld [vmem:[%s2183] sm:$0xf]
      %v2185 = vsel %vm202, %v1870, 0
      %v2187 = vsel %vm202, %v1871, 0
      %v2189 = vsel %vm202, %v1872, 0
      %v2191 = vsel %vm202, %v1873, 0
      %v2193 = vsel %vm202, %v1874, 0
      %v2195 = vsel %vm202, %v1875, 0
      %v2197 = vsel %vm202, %v1876, 0
      %v2199 = vsel %vm202, %v1877, 0
      %v2201 = vsel %vm202, %v1878, 0
      %v2203 = vsel %vm202, %v1879, 0
      %v2205 = vsel %vm202, %v1880, 0
      %v2207 = vsel %vm202, %v1881, 0
      %v2209 = vsel %vm202, %v1882, 0
      %v2211 = vsel %vm202, %v1883, 0
      %v2213 = vsel %vm202, %v1884, 0
      %v2215 = vsel %vm202, %v1885, 0
      %v2218 = vsel %vm401, %v2184, 0
      %2220 = vmatprep.subr.mxu0 0.0
      %2221 = vmatpush1.msra.mxu0 %v2218
      %2222 = vmatprep.subr.mxu0 0.0
      %2223 = vmatpush1.msra.mxu0 0.0
      %2224 = vmatprep.subr.mxu0 0.0
      %2225 = vmatpush1.msra.mxu0 0.0
      %2226 = vmatprep.subr.mxu0 0.0
      %2227 = vmatpush1.msra.mxu0 0.0
      %2228 = vmatprep.subr.mxu0 0.0
      %2229 = vmatpush1.msra.mxu0 0.0
      %2230 = vmatprep.subr.mxu0 0.0
      %2231 = vmatpush1.msra.mxu0 0.0
      %2232 = vmatprep.subr.mxu0 0.0
      %2233 = vmatpush1.msra.mxu0 0.0
      %2234 = vmatprep.subr.mxu0 0.0
      %2235 = vmatpush1.msra.mxu0 0.0
      %2236 = vmatprep.subr.mxu0 0.0
      %2237 = vmatpush1.msra.mxu0 0.0
      %2238 = vmatprep.subr.mxu0 0.0
      %2239 = vmatpush1.msra.mxu0 0.0
      %2240 = vmatprep.subr.mxu0 0.0
      %2241 = vmatpush1.msra.mxu0 0.0
      %2242 = vmatprep.subr.mxu0 0.0
      %2243 = vmatpush1.msra.mxu0 0.0
      %2244 = vmatprep.subr.mxu0 0.0
      %2245 = vmatpush1.msra.mxu0 0.0
      %2246 = vmatprep.subr.mxu0 0.0
      %2247 = vmatpush1.msra.mxu0 0.0
      %2248 = vmatprep.subr.mxu0 0.0
      %2249 = vmatpush1.msra.mxu0 0.0
      %2250 = vmatprep.subr.mxu0 0.0
      %2251 = vmatpush1.msra.mxu0 0.0
      %2252 = vmatprep.subr.mxu0 0.0
      %2253 = vmatpush1.msra.mxu0 0.0
      %2254 = vmatprep.subr.mxu0 0.0
      %2255 = vmatpush1.msra.mxu0 0.0
      %2256 = vmatprep.subr.mxu0 0.0
      %2257 = vmatpush1.msra.mxu0 0.0
      %2258 = vmatprep.subr.mxu0 0.0
      %2259 = vmatpush1.msra.mxu0 0.0
      %2260 = vmatprep.subr.mxu0 0.0
      %2261 = vmatpush1.msra.mxu0 0.0
      %2262 = vmatprep.subr.mxu0 0.0
      %2263 = vmatpush1.msra.mxu0 0.0
      %2264 = vmatprep.subr.mxu0 0.0
      %2265 = vmatpush1.msra.mxu0 0.0
      %2266 = vmatprep.subr.mxu0 0.0
      %2267 = vmatpush1.msra.mxu0 0.0
      %2268 = vmatprep.subr.mxu0 0.0
      %2269 = vmatpush1.msra.mxu0 0.0
      %2270 = vmatprep.subr.mxu0 0.0
      %2271 = vmatpush1.msra.mxu0 0.0
      %2272 = vmatprep.subr.mxu0 0.0
      %2273 = vmatpush1.msra.mxu0 0.0
      %2274 = vmatprep.subr.mxu0 0.0
      %2275 = vmatpush1.msra.mxu0 0.0
      %2276 = vmatprep.subr.mxu0 0.0
      %2277 = vmatpush1.msra.mxu0 0.0
      %2278 = vmatprep.subr.mxu0 0.0
      %2279 = vmatpush1.msra.mxu0 0.0
      %2280 = vmatprep.subr.mxu0 0.0
      %2281 = vmatpush1.msra.mxu0 0.0
      %2282 = vmatprep.subr.mxu0 0.0
      %2283 = vmatpush1.msra.mxu0 0.0
      %2284 = vmatprep.mubr.f32.mxu0 0.0
      %2285 = vmatmul.mubr.f32.gmra.mrb[0].mxu0 %v2185
      %v2286 = vpop.f32.mrb[0].mxu0
      %v2287 = vadd.f32 0.0, %v2286
      %v2288 = vpop.f32.mrb[0].mxu0
      %2289 = vmatprep.mubr.f32.mxu0 0.0
      %2290 = vmatmul.mubr.f32.gmra.mrb[0].mxu0 %v2187
      %v2291 = vpop.f32.mrb[0].mxu0
      %v2292 = vadd.f32 0.0, %v2291
      %v2293 = vpop.f32.mrb[0].mxu0
      %2294 = vmatprep.mubr.f32.mxu0 0.0
      %2295 = vmatmul.mubr.f32.gmra.mrb[0].mxu0 %v2189
      %v2296 = vpop.f32.mrb[0].mxu0
      %v2297 = vadd.f32 0.0, %v2296
      %v2298 = vpop.f32.mrb[0].mxu0
      %2299 = vmatprep.mubr.f32.mxu0 0.0
      %2300 = vmatmul.mubr.f32.gmra.mrb[0].mxu0 %v2191
      %v2301 = vpop.f32.mrb[0].mxu0
      %v2302 = vadd.f32 0.0, %v2301
      %v2303 = vpop.f32.mrb[0].mxu0
      %2304 = vmatprep.mubr.f32.mxu0 0.0
      %2305 = vmatmul.mubr.f32.gmra.mrb[0].mxu0 %v2193
      %v2306 = vpop.f32.mrb[0].mxu0
      %v2307 = vadd.f32 0.0, %v2306
      %v2308 = vpop.f32.mrb[0].mxu0
      %2309 = vmatprep.mubr.f32.mxu0 0.0
      %2310 = vmatmul.mubr.f32.gmra.mrb[0].mxu0 %v2195
      %v2311 = vpop.f32.mrb[0].mxu0
      %v2312 = vadd.f32 0.0, %v2311
      %v2313 = vpop.f32.mrb[0].mxu0
      %2314 = vmatprep.mubr.f32.mxu0 0.0
      %2315 = vmatmul.mubr.f32.gmra.mrb[0].mxu0 %v2197
      %v2316 = vpop.f32.mrb[0].mxu0
      %v2317 = vadd.f32 0.0, %v2316
      %v2318 = vpop.f32.mrb[0].mxu0
      %2319 = vmatprep.mubr.f32.mxu0 0.0
      %2320 = vmatmul.mubr.f32.gmra.mrb[0].mxu0 %v2199
      %v2321 = vpop.f32.mrb[0].mxu0
      %v2322 = vadd.f32 0.0, %v2321
      %v2323 = vpop.f32.mrb[0].mxu0
      %2324 = vmatprep.mubr.f32.mxu0 0.0
      %2325 = vmatmul.mubr.f32.gmra.mrb[0].mxu0 %v2201
      %v2326 = vpop.f32.mrb[0].mxu0
      %v2327 = vadd.f32 0.0, %v2326
      %v2328 = vpop.f32.mrb[0].mxu0
      %2329 = vmatprep.mubr.f32.mxu0 0.0
      %2330 = vmatmul.mubr.f32.gmra.mrb[0].mxu0 %v2203
      %v2331 = vpop.f32.mrb[0].mxu0
      %v2332 = vadd.f32 0.0, %v2331
      %v2333 = vpop.f32.mrb[0].mxu0
      %2334 = vmatprep.mubr.f32.mxu0 0.0
      %2335 = vmatmul.mubr.f32.gmra.mrb[0].mxu0 %v2205
      %v2336 = vpop.f32.mrb[0].mxu0
      %v2337 = vadd.f32 0.0, %v2336
      %v2338 = vpop.f32.mrb[0].mxu0
      %2339 = vmatprep.mubr.f32.mxu0 0.0
      %2340 = vmatmul.mubr.f32.gmra.mrb[0].mxu0 %v2207
      %v2341 = vpop.f32.mrb[0].mxu0
      %v2342 = vadd.f32 0.0, %v2341
      %v2343 = vpop.f32.mrb[0].mxu0
      %2344 = vmatprep.mubr.f32.mxu0 0.0
      %2345 = vmatmul.mubr.f32.gmra.mrb[0].mxu0 %v2209
      %v2346 = vpop.f32.mrb[0].mxu0
      %v2347 = vadd.f32 0.0, %v2346
      %v2348 = vpop.f32.mrb[0].mxu0
      %2349 = vmatprep.mubr.f32.mxu0 0.0
      %2350 = vmatmul.mubr.f32.gmra.mrb[0].mxu0 %v2211
      %v2351 = vpop.f32.mrb[0].mxu0
      %v2352 = vadd.f32 0.0, %v2351
      %v2353 = vpop.f32.mrb[0].mxu0
      %2354 = vmatprep.mubr.f32.mxu0 0.0
      %2355 = vmatmul.mubr.f32.gmra.mrb[0].mxu0 %v2213
      %v2356 = vpop.f32.mrb[0].mxu0
      %v2357 = vadd.f32 0.0, %v2356
      %v2358 = vpop.f32.mrb[0].mxu0
      %2359 = vmatprep.mubr.f32.mxu0 0.0
      %2360 = vmatmul.mubr.f32.gmra.mrb[0].mxu0 %v2215
      %v2361 = vpop.f32.mrb[0].mxu0
      %v2362 = vadd.f32 0.0, %v2361
      %v2363 = vpop.f32.mrb[0].mxu0
      %2364 = vdwg.mxu0
      %v2365 = vadd.f32 %v2167, %v2287
      %v2366 = vadd.f32 %v2168, %v2292
      %v2367 = vadd.f32 %v2169, %v2297
      %v2368 = vadd.f32 %v2170, %v2302
      %v2369 = vadd.f32 %v2171, %v2307
      %v2370 = vadd.f32 %v2172, %v2312
      %v2371 = vadd.f32 %v2173, %v2317
      %v2372 = vadd.f32 %v2174, %v2322
      %v2373 = vadd.f32 %v2175, %v2327
      %v2374 = vadd.f32 %v2176, %v2332
      %v2375 = vadd.f32 %v2177, %v2337
      %v2376 = vadd.f32 %v2178, %v2342
      %v2377 = vadd.f32 %v2179, %v2347
      %v2378 = vadd.f32 %v2180, %v2352
      %v2379 = vadd.f32 %v2181, %v2357
      %v2380 = vadd.f32 %v2182, %v2362
      %2381 = vst.msk [vmem:[#allocation3] sm:$0xff] %vm202, %v2365
      %2382 = vst.msk [vmem:[#allocation3 + $0x8] sm:$0xff] %vm202, %v2366
      %2383 = vst.msk [vmem:[#allocation3 + $0x10] sm:$0xff] %vm202, %v2367
      %2384 = vst.msk [vmem:[#allocation3 + $0x18] sm:$0xff] %vm202, %v2368
      %2385 = vst.msk [vmem:[#allocation3 + $0x20] sm:$0xff] %vm202, %v2369
      %2386 = vst.msk [vmem:[#allocation3 + $0x28] sm:$0xff] %vm202, %v2370
      %2387 = vst.msk [vmem:[#allocation3 + $0x30] sm:$0xff] %vm202, %v2371
      %2388 = vst.msk [vmem:[#allocation3 + $0x38] sm:$0xff] %vm202, %v2372
      %2389 = vst.msk [vmem:[#allocation3 + $0x40] sm:$0xff] %vm202, %v2373
      %2390 = vst.msk [vmem:[#allocation3 + $0x48] sm:$0xff] %vm202, %v2374
      %2391 = vst.msk [vmem:[#allocation3 + $0x50] sm:$0xff] %vm202, %v2375
      %2392 = vst.msk [vmem:[#allocation3 + $0x58] sm:$0xff] %vm202, %v2376
      %2393 = vst.msk [vmem:[#allocation3 + $0x60] sm:$0xff] %vm202, %v2377
      %2394 = vst.msk [vmem:[#allocation3 + $0x68] sm:$0xff] %vm202, %v2378
      %2395 = vst.msk [vmem:[#allocation3 + $0x70] sm:$0xff] %vm202, %v2379
      %2396 = vst.msk [vmem:[#allocation3 + $0x78] sm:$0xff] %vm202, %v2380
      %v2397 = vld [vmem:[#allocation3] sm:$0xff]
      %v2398 = vld [vmem:[#allocation3 + $0x8] sm:$0xff]
      %v2399 = vld [vmem:[#allocation3 + $0x10] sm:$0xff]
      %v2400 = vld [vmem:[#allocation3 + $0x18] sm:$0xff]
      %v2401 = vld [vmem:[#allocation3 + $0x20] sm:$0xff]
      %v2402 = vld [vmem:[#allocation3 + $0x28] sm:$0xff]
      %v2403 = vld [vmem:[#allocation3 + $0x30] sm:$0xff]
      %v2404 = vld [vmem:[#allocation3 + $0x38] sm:$0xff]
      %v2405 = vld [vmem:[#allocation3 + $0x40] sm:$0xff]
      %v2406 = vld [vmem:[#allocation3 + $0x48] sm:$0xff]
      %v2407 = vld [vmem:[#allocation3 + $0x50] sm:$0xff]
      %v2408 = vld [vmem:[#allocation3 + $0x58] sm:$0xff]
      %v2409 = vld [vmem:[#allocation3 + $0x60] sm:$0xff]
      %v2410 = vld [vmem:[#allocation3 + $0x68] sm:$0xff]
      %v2411 = vld [vmem:[#allocation3 + $0x70] sm:$0xff]
      %v2412 = vld [vmem:[#allocation3 + $0x78] sm:$0xff]
      %s2413 = scalar_lea.vmem %s1, 32
      %v2414 = vld [vmem:[%s2413] sm:$0xf]
      %v2416 = vrot.slane %v1870, 1
      %v2417 = vrot.slane %v1871, 1
      %v2418 = vsel %vm831, %v2416, %v2417
      %v2419 = vrot.slane %v1872, 1
      %v2420 = vsel %vm831, %v2417, %v2419
      %v2421 = vrot.slane %v1873, 1
      %v2422 = vsel %vm831, %v2419, %v2421
      %v2423 = vrot.slane %v1874, 1
      %v2424 = vsel %vm831, %v2421, %v2423
      %v2425 = vrot.slane %v1875, 1
      %v2426 = vsel %vm831, %v2423, %v2425
      %v2427 = vrot.slane %v1876, 1
      %v2428 = vsel %vm831, %v2425, %v2427
      %v2429 = vrot.slane %v1877, 1
      %v2430 = vsel %vm831, %v2427, %v2429
      %v2431 = vrot.slane %v1878, 1
      %v2432 = vsel %vm831, %v2429, %v2431
      %v2433 = vrot.slane %v1879, 1
      %v2434 = vsel %vm831, %v2431, %v2433
      %v2435 = vrot.slane %v1880, 1
      %v2436 = vsel %vm831, %v2433, %v2435
      %v2437 = vrot.slane %v1881, 1
      %v2438 = vsel %vm831, %v2435, %v2437
      %v2439 = vrot.slane %v1882, 1
      %v2440 = vsel %vm831, %v2437, %v2439
      %v2441 = vrot.slane %v1883, 1
      %v2442 = vsel %vm831, %v2439, %v2441
      %v2443 = vrot.slane %v1884, 1
      %v2444 = vsel %vm831, %v2441, %v2443
      %v2445 = vrot.slane %v1885, 1
      %v2446 = vsel %vm831, %v2443, %v2445
      %v2447 = vrot.slane %v1886, 1
      %v2448 = vsel %vm831, %v2445, %v2447
      %v2449 = vsel %vm202, %v2418, 0
      %v2451 = vsel %vm202, %v2420, 0
      %v2453 = vsel %vm202, %v2422, 0
      %v2455 = vsel %vm202, %v2424, 0
      %v2457 = vsel %vm202, %v2426, 0
      %v2459 = vsel %vm202, %v2428, 0
      %v2461 = vsel %vm202, %v2430, 0
      %v2463 = vsel %vm202, %v2432, 0
      %v2465 = vsel %vm202, %v2434, 0
      %v2467 = vsel %vm202, %v2436, 0
      %v2469 = vsel %vm202, %v2438, 0
      %v2471 = vsel %vm202, %v2440, 0
      %v2473 = vsel %vm202, %v2442, 0
      %v2475 = vsel %vm202, %v2444, 0
      %v2477 = vsel %vm202, %v2446, 0
      %v2479 = vsel %vm202, %v2448, 0
      %v2482 = vsel %vm401, %v2414, 0
      %2484 = vmatprep.subr.mxu0 0.0
      %2485 = vmatpush1.msra.mxu0 %v2482
      %2486 = vmatprep.subr.mxu0 0.0
      %2487 = vmatpush1.msra.mxu0 0.0
      %2488 = vmatprep.subr.mxu0 0.0
      %2489 = vmatpush1.msra.mxu0 0.0
      %2490 = vmatprep.subr.mxu0 0.0
      %2491 = vmatpush1.msra.mxu0 0.0
      %2492 = vmatprep.subr.mxu0 0.0
      %2493 = vmatpush1.msra.mxu0 0.0
      %2494 = vmatprep.subr.mxu0 0.0
      %2495 = vmatpush1.msra.mxu0 0.0
      %2496 = vmatprep.subr.mxu0 0.0
      %2497 = vmatpush1.msra.mxu0 0.0
      %2498 = vmatprep.subr.mxu0 0.0
      %2499 = vmatpush1.msra.mxu0 0.0
      %2500 = vmatprep.subr.mxu0 0.0
      %2501 = vmatpush1.msra.mxu0 0.0
      %2502 = vmatprep.subr.mxu0 0.0
      %2503 = vmatpush1.msra.mxu0 0.0
      %2504 = vmatprep.subr.mxu0 0.0
      %2505 = vmatpush1.msra.mxu0 0.0
      %2506 = vmatprep.subr.mxu0 0.0
      %2507 = vmatpush1.msra.mxu0 0.0
      %2508 = vmatprep.subr.mxu0 0.0
      %2509 = vmatpush1.msra.mxu0 0.0
      %2510 = vmatprep.subr.mxu0 0.0
      %2511 = vmatpush1.msra.mxu0 0.0
      %2512 = vmatprep.subr.mxu0 0.0
      %2513 = vmatpush1.msra.mxu0 0.0
      %2514 = vmatprep.subr.mxu0 0.0
      %2515 = vmatpush1.msra.mxu0 0.0
      %2516 = vmatprep.subr.mxu0 0.0
      %2517 = vmatpush1.msra.mxu0 0.0
      %2518 = vmatprep.subr.mxu0 0.0
      %2519 = vmatpush1.msra.mxu0 0.0
      %2520 = vmatprep.subr.mxu0 0.0
      %2521 = vmatpush1.msra.mxu0 0.0
      %2522 = vmatprep.subr.mxu0 0.0
      %2523 = vmatpush1.msra.mxu0 0.0
      %2524 = vmatprep.subr.mxu0 0.0
      %2525 = vmatpush1.msra.mxu0 0.0
      %2526 = vmatprep.subr.mxu0 0.0
      %2527 = vmatpush1.msra.mxu0 0.0
      %2528 = vmatprep.subr.mxu0 0.0
      %2529 = vmatpush1.msra.mxu0 0.0
      %2530 = vmatprep.subr.mxu0 0.0
      %2531 = vmatpush1.msra.mxu0 0.0
      %2532 = vmatprep.subr.mxu0 0.0
      %2533 = vmatpush1.msra.mxu0 0.0
      %2534 = vmatprep.subr.mxu0 0.0
      %2535 = vmatpush1.msra.mxu0 0.0
      %2536 = vmatprep.subr.mxu0 0.0
      %2537 = vmatpush1.msra.mxu0 0.0
      %2538 = vmatprep.subr.mxu0 0.0
      %2539 = vmatpush1.msra.mxu0 0.0
      %2540 = vmatprep.subr.mxu0 0.0
      %2541 = vmatpush1.msra.mxu0 0.0
      %2542 = vmatprep.subr.mxu0 0.0
      %2543 = vmatpush1.msra.mxu0 0.0
      %2544 = vmatprep.subr.mxu0 0.0
      %2545 = vmatpush1.msra.mxu0 0.0
      %2546 = vmatprep.subr.mxu0 0.0
      %2547 = vmatpush1.msra.mxu0 0.0
      %2548 = vmatprep.mubr.f32.mxu0 0.0
      %2549 = vmatmul.mubr.f32.gmra.mrb[0].mxu0 %v2449
      %v2550 = vpop.f32.mrb[0].mxu0
      %v2551 = vadd.f32 0.0, %v2550
      %v2552 = vpop.f32.mrb[0].mxu0
      %2553 = vmatprep.mubr.f32.mxu0 0.0
      %2554 = vmatmul.mubr.f32.gmra.mrb[0].mxu0 %v2451
      %v2555 = vpop.f32.mrb[0].mxu0
      %v2556 = vadd.f32 0.0, %v2555
      %v2557 = vpop.f32.mrb[0].mxu0
      %2558 = vmatprep.mubr.f32.mxu0 0.0
      %2559 = vmatmul.mubr.f32.gmra.mrb[0].mxu0 %v2453
      %v2560 = vpop.f32.mrb[0].mxu0
      %v2561 = vadd.f32 0.0, %v2560
      %v2562 = vpop.f32.mrb[0].mxu0
      %2563 = vmatprep.mubr.f32.mxu0 0.0
      %2564 = vmatmul.mubr.f32.gmra.mrb[0].mxu0 %v2455
      %v2565 = vpop.f32.mrb[0].mxu0
      %v2566 = vadd.f32 0.0, %v2565
      %v2567 = vpop.f32.mrb[0].mxu0
      %2568 = vmatprep.mubr.f32.mxu0 0.0
      %2569 = vmatmul.mubr.f32.gmra.mrb[0].mxu0 %v2457
      %v2570 = vpop.f32.mrb[0].mxu0
      %v2571 = vadd.f32 0.0, %v2570
      %v2572 = vpop.f32.mrb[0].mxu0
      %2573 = vmatprep.mubr.f32.mxu0 0.0
      %2574 = vmatmul.mubr.f32.gmra.mrb[0].mxu0 %v2459
      %v2575 = vpop.f32.mrb[0].mxu0
      %v2576 = vadd.f32 0.0, %v2575
      %v2577 = vpop.f32.mrb[0].mxu0
      %2578 = vmatprep.mubr.f32.mxu0 0.0
      %2579 = vmatmul.mubr.f32.gmra.mrb[0].mxu0 %v2461
      %v2580 = vpop.f32.mrb[0].mxu0
      %v2581 = vadd.f32 0.0, %v2580
      %v2582 = vpop.f32.mrb[0].mxu0
      %2583 = vmatprep.mubr.f32.mxu0 0.0
      %2584 = vmatmul.mubr.f32.gmra.mrb[0].mxu0 %v2463
      %v2585 = vpop.f32.mrb[0].mxu0
      %v2586 = vadd.f32 0.0, %v2585
      %v2587 = vpop.f32.mrb[0].mxu0
      %2588 = vmatprep.mubr.f32.mxu0 0.0
      %2589 = vmatmul.mubr.f32.gmra.mrb[0].mxu0 %v2465
      %v2590 = vpop.f32.mrb[0].mxu0
      %v2591 = vadd.f32 0.0, %v2590
      %v2592 = vpop.f32.mrb[0].mxu0
      %2593 = vmatprep.mubr.f32.mxu0 0.0
      %2594 = vmatmul.mubr.f32.gmra.mrb[0].mxu0 %v2467
      %v2595 = vpop.f32.mrb[0].mxu0
      %v2596 = vadd.f32 0.0, %v2595
      %v2597 = vpop.f32.mrb[0].mxu0
      %2598 = vmatprep.mubr.f32.mxu0 0.0
      %2599 = vmatmul.mubr.f32.gmra.mrb[0].mxu0 %v2469
      %v2600 = vpop.f32.mrb[0].mxu0
      %v2601 = vadd.f32 0.0, %v2600
      %v2602 = vpop.f32.mrb[0].mxu0
      %2603 = vmatprep.mubr.f32.mxu0 0.0
      %2604 = vmatmul.mubr.f32.gmra.mrb[0].mxu0 %v2471
      %v2605 = vpop.f32.mrb[0].mxu0
      %v2606 = vadd.f32 0.0, %v2605
      %v2607 = vpop.f32.mrb[0].mxu0
      %2608 = vmatprep.mubr.f32.mxu0 0.0
      %2609 = vmatmul.mubr.f32.gmra.mrb[0].mxu0 %v2473
      %v2610 = vpop.f32.mrb[0].mxu0
      %v2611 = vadd.f32 0.0, %v2610
      %v2612 = vpop.f32.mrb[0].mxu0
      %2613 = vmatprep.mubr.f32.mxu0 0.0
      %2614 = vmatmul.mubr.f32.gmra.mrb[0].mxu0 %v2475
      %v2615 = vpop.f32.mrb[0].mxu0
      %v2616 = vadd.f32 0.0, %v2615
      %v2617 = vpop.f32.mrb[0].mxu0
      %2618 = vmatprep.mubr.f32.mxu0 0.0
      %2619 = vmatmul.mubr.f32.gmra.mrb[0].mxu0 %v2477
      %v2620 = vpop.f32.mrb[0].mxu0
      %v2621 = vadd.f32 0.0, %v2620
      %v2622 = vpop.f32.mrb[0].mxu0
      %2623 = vmatprep.mubr.f32.mxu0 0.0
      %2624 = vmatmul.mubr.f32.gmra.mrb[0].mxu0 %v2479
      %v2625 = vpop.f32.mrb[0].mxu0
      %v2626 = vadd.f32 0.0, %v2625
      %v2627 = vpop.f32.mrb[0].mxu0
      %2628 = vdwg.mxu0
      %v2629 = vadd.f32 %v2397, %v2551
      %v2630 = vadd.f32 %v2398, %v2556
      %v2631 = vadd.f32 %v2399, %v2561
      %v2632 = vadd.f32 %v2400, %v2566
      %v2633 = vadd.f32 %v2401, %v2571
      %v2634 = vadd.f32 %v2402, %v2576
      %v2635 = vadd.f32 %v2403, %v2581
      %v2636 = vadd.f32 %v2404, %v2586
      %v2637 = vadd.f32 %v2405, %v2591
      %v2638 = vadd.f32 %v2406, %v2596
      %v2639 = vadd.f32 %v2407, %v2601
      %v2640 = vadd.f32 %v2408, %v2606
      %v2641 = vadd.f32 %v2409, %v2611
      %v2642 = vadd.f32 %v2410, %v2616
      %v2643 = vadd.f32 %v2411, %v2621
      %v2644 = vadd.f32 %v2412, %v2626
      %2645 = vst.msk [vmem:[#allocation3] sm:$0xff] %vm202, %v2629
      %2646 = vst.msk [vmem:[#allocation3 + $0x8] sm:$0xff] %vm202, %v2630
      %2647 = vst.msk [vmem:[#allocation3 + $0x10] sm:$0xff] %vm202, %v2631
      %2648 = vst.msk [vmem:[#allocation3 + $0x18] sm:$0xff] %vm202, %v2632
      %2649 = vst.msk [vmem:[#allocation3 + $0x20] sm:$0xff] %vm202, %v2633
      %2650 = vst.msk [vmem:[#allocation3 + $0x28] sm:$0xff] %vm202, %v2634
      %2651 = vst.msk [vmem:[#allocation3 + $0x30] sm:$0xff] %vm202, %v2635
      %2652 = vst.msk [vmem:[#allocation3 + $0x38] sm:$0xff] %vm202, %v2636
      %2653 = vst.msk [vmem:[#allocation3 + $0x40] sm:$0xff] %vm202, %v2637
      %2654 = vst.msk [vmem:[#allocation3 + $0x48] sm:$0xff] %vm202, %v2638
      %2655 = vst.msk [vmem:[#allocation3 + $0x50] sm:$0xff] %vm202, %v2639
      %2656 = vst.msk [vmem:[#allocation3 + $0x58] sm:$0xff] %vm202, %v2640
      %2657 = vst.msk [vmem:[#allocation3 + $0x60] sm:$0xff] %vm202, %v2641
      %2658 = vst.msk [vmem:[#allocation3 + $0x68] sm:$0xff] %vm202, %v2642
      %2659 = vst.msk [vmem:[#allocation3 + $0x70] sm:$0xff] %vm202, %v2643
      %2660 = vst.msk [vmem:[#allocation3 + $0x78] sm:$0xff] %vm202, %v2644
      %v2661 = vld [vmem:[#allocation3] sm:$0xff]
      %v2662 = vld [vmem:[#allocation3 + $0x10] sm:$0xff]
      %v2663 = vld [vmem:[#allocation3 + $0x20] sm:$0xff]
      %v2664 = vld [vmem:[#allocation3 + $0x30] sm:$0xff]
      %v2665 = vld [vmem:[#allocation3 + $0x40] sm:$0xff]
      %v2666 = vld [vmem:[#allocation3 + $0x50] sm:$0xff]
      %v2667 = vld [vmem:[#allocation3 + $0x60] sm:$0xff]
      %v2668 = vld [vmem:[#allocation3 + $0x70] sm:$0xff]
      %2669 = vst.msk [vmem:[%s192] sm:$0xff] %vm202, %v2661
      %2670 = vst.msk [vmem:[%s192 + $0x8] sm:$0xff] %vm202, %v2662
      %2671 = vst.msk [vmem:[%s192 + $0x10] sm:$0xff] %vm202, %v2663
      %2672 = vst.msk [vmem:[%s192 + $0x18] sm:$0xff] %vm202, %v2664
      %2673 = vst.msk [vmem:[%s192 + $0x20] sm:$0xff] %vm202, %v2665
      %2674 = vst.msk [vmem:[%s192 + $0x28] sm:$0xff] %vm202, %v2666
      %2675 = vst.msk [vmem:[%s192 + $0x30] sm:$0xff] %vm202, %v2667
      %2676 = vst.msk [vmem:[%s192 + $0x38] sm:$0xff] %vm202, %v2668
      %s2677 = smul.u32 8, %s19
      %p2678 = scmp.lt.s32.totalorder %s18, 1
      %s2679 = scalar_select %p2678, %s18, 1
      %p2680 = scmp.lt.s32.totalorder %s2677, 7
      %s2681 = scalar_select %p2680, %s2677, 7
      %s2682 = smul.addr %s2679, 8
      %s2683 = sadd.s32 %s2681, %s2682
      %s2684 = smul.addr %s2683, 8
      %s2685 = scalar_lea.vmem %s3, %s2684
      // Predicated region
      $region49: #{tpu_custom_call.1} parent=31 // pred_check
        %p2686 = pneg %p114
      $region50: #{tpu_custom_call.1} parent=31 // pred_check_branch
        %2688 = sbr.rel (%p2686) target = $region52
      $region51: #{tpu_custom_call.1} parent=31 // pred_region
        %s2689 = smul.u32 8, %s19
      $region52: #{tpu_custom_call.1} parent=31 // pred_fallthru
        _
    $region32: #{tpu_custom_call.1} parent=5 // pred_fallthru
      _
    %p2690 = scmp.le.s32.totalorder 2, %s9
    // Predicated region
    $region53: #{tpu_custom_call.1} parent=5 // pred_check
      %p2691 = pneg %p2690
    $region54: #{tpu_custom_call.1} parent=5 // pred_check_branch
      %2693 = sbr.rel (%p2691) target = $region56
    $region55: #{tpu_custom_call.1} parent=5 // pred_region
      %s2694 = ssub.s32 %s9, 2
      // Predicated region
      $region57: #{tpu_custom_call.1} parent=55 // pred_check
        %p2695 = pneg %p120
      $region58: #{tpu_custom_call.1} parent=55 // pred_check_branch
        %2697 = sbr.rel (%p2695) target = $region60
      $region59: #{tpu_custom_call.1} parent=55 // pred_region
        %s2698 = smul.u32 8, %s21
        %p2699 = scmp.lt.s32.totalorder %s20, 1
        %s2700 = scalar_select %p2699, %s20, 1
        %p2701 = scmp.lt.s32.totalorder %s2698, 7
        %s2702 = scalar_select %p2701, %s2698, 7
        %s2703 = smul.addr %s2700, 8
        %s2704 = sadd.s32 %s2702, %s2703
        %s2705 = smul.addr %s2704, 8
        %s2706 = scalar_lea.vmem %s3, %s2705
      $region60: #{tpu_custom_call.1} parent=55 // pred_fallthru
        _
    $region56: #{tpu_custom_call.1} parent=5 // pred_fallthru
      _
  $region6: #{tpu_custom_call.1} parent=0 // loop_footer
    %s13 = sadd.s32 1, %s9
  $region7: #{tpu_custom_call.1} parent=0 // loop_footer_branch
    %8 = sbr.rel target = $region3
  $region8: #{tpu_custom_call.1} parent=0 // loop_exit
    _

</llo_original>
